<compile_context>
chip_gen: v7x
topology: tpu7x:2x2x1
jax: 0.10.0
libtpu: 0.0.40
codegen_flags: <defaults>
</compile_context>

<pallas_src>
import numpy as np
import jax
import jax.numpy as jnp
from jax import lax
from jax.experimental import pallas as pl
from jax.experimental.pallas import tpu as pltpu


# ------------------------------ fused kernel -------------------------------- #

def lenet_kernel(x_ref, w1_ref, b1_ref, w2_ref, b2_ref,
                 f1w_ref, f1b_ref, f2w_ref, f2b_ref, f3w_ref, f3b_ref,
                 out_ref,
                 c1e_ref, c1o_ref, a1_ref, c2e_ref, c2o_ref, a2_ref):
    """One grid step = one image.  All intermediates live in VMEM / vregs.

    x_ref : (1, 28, 28) f32                       input image
    w1    : (10, 28, 72) f32   conv1 band, index = 2*di + parity(out col)
    w2    : (10, 72, 64) bf16  conv2 band, index = 2*di + parity(out col)
    f1w   : (4, 64, 120) bf16  fc1 weights, [pooled-row, w*16+cout, out]
    f2w   : (120, 84) bf16,  f3w : (84, 128) f32 (cols 10..127 zero)
    biases: (1, n) f32 (b1/b2 tiled to the banded column order)
    out   : (1, 1, 128) f32 (cols 10..127 are zero-weight padding)
    """
    TB = x_ref.shape[0]
    f32, bf16 = jnp.float32, jnp.bfloat16

    # ---- conv1 (1->6, 5x5, VALID) as banded MXU matmuls, local accumulators ----
    # rows = (b, out_h), cols = out_w_half*6 + c ; even / odd out_w kept separate
    acc_e = jnp.zeros((TB * 24, 72), f32)
    acc_o = jnp.zeros((TB * 24, 72), f32)
    for di in range(5):
        xs = x_ref[:, di:di + 24, :].reshape(TB * 24, 28)     # tile-aligned relabel
        acc_e = acc_e + jnp.dot(xs, w1_ref[2 * di], preferred_element_type=f32)
        acc_o = acc_o + jnp.dot(xs, w1_ref[2 * di + 1], preferred_element_type=f32)
    c1e_ref[...] = jnp.maximum(acc_e + b1_ref[...], 0.0).reshape(c1e_ref.shape)
    c1o_ref[...] = jnp.maximum(acc_o + b1_ref[...], 0.0).reshape(c1o_ref.shape)

    # ---- maxpool 2x2/2: H via sublane-strided reads, W via the parity split ----
    hp_e = jnp.maximum(c1e_ref[:, pl.ds(0, 12, stride=2), :],
                       c1e_ref[:, pl.ds(1, 12, stride=2), :])
    hp_o = jnp.maximum(c1o_ref[:, pl.ds(0, 12, stride=2), :],
                       c1o_ref[:, pl.ds(1, 12, stride=2), :])
    a1_ref[...] = jnp.maximum(hp_e, hp_o)          # (TB, 12, 12*6) pooled

    # ---- conv2 (6->16, 5x5) as banded bf16 MXU matmuls, local accumulators ----
    acc2_e = jnp.zeros((TB * 8, 64), f32)
    acc2_o = jnp.zeros((TB * 8, 64), f32)
    for di in range(5):
        o = a1_ref[:, di:di + 8, :].reshape(TB * 8, 72).astype(bf16)
        acc2_e = acc2_e + jnp.dot(o, w2_ref[2 * di], preferred_element_type=f32)
        acc2_o = acc2_o + jnp.dot(o, w2_ref[2 * di + 1], preferred_element_type=f32)
    c2e_ref[...] = jnp.maximum(acc2_e + b2_ref[...], 0.0).reshape(c2e_ref.shape)
    c2o_ref[...] = jnp.maximum(acc2_o + b2_ref[...], 0.0).reshape(c2o_ref.shape)

    # ---- maxpool 2x2/2 ----
    hp2_e = jnp.maximum(c2e_ref[:, pl.ds(0, 4, stride=2), :],
                        c2e_ref[:, pl.ds(1, 4, stride=2), :])
    hp2_o = jnp.maximum(c2o_ref[:, pl.ds(0, 4, stride=2), :],
                        c2o_ref[:, pl.ds(1, 4, stride=2), :])
    a2_ref[...] = jnp.maximum(hp2_e, hp2_o)        # (TB, 4, 4*16) pooled

    # ---- fc1 (256->120): 4 accumulated K=64 bf16 matmuls (one per pooled row) ----
    h = jnp.zeros((TB, 120), f32)
    for ip in range(4):
        h = h + jnp.dot(a2_ref[:, ip, :].astype(bf16), f1w_ref[ip],
                        preferred_element_type=f32)
    h = jnp.maximum(h + f1b_ref[...], 0.0)

    # ---- fc2 -> ReLU -> fc3 (fc3 kept f32; output padded to 128 lanes) ----
    h = jnp.maximum(
        jnp.dot(h.astype(bf16), f2w_ref[...], preferred_element_type=f32)
        + f2b_ref[...], 0.0)
    logits = jnp.dot(h, f3w_ref[...], preferred_element_type=f32) + f3b_ref[...]
    out_ref[...] = logits.reshape(out_ref.shape)


# ------------------------------ parameter prep ------------------------------- #

def prepare_params(p):
    """One-time host-side conversion of PyTorch-layout params to kernel layout."""
    c1w = np.asarray(p["conv1_w"], np.float32)          # (6,1,5,5)
    c1b = np.asarray(p["conv1_b"], np.float32)          # (6,)
    c2w = np.asarray(p["conv2_w"], np.float32)          # (16,6,5,5)
    c2b = np.asarray(p["conv2_b"], np.float32)          # (16,)

    # conv1 band: [2*di+parity, w_in(28), out_col = (out_w//2)*6 + c]
    w1 = np.zeros((10, 28, 72), np.float32)
    for di in range(5):
        for j in range(24):
            par, jh = j % 2, j // 2
            for dj in range(5):
                w1[2 * di + par, j + dj, jh * 6:(jh + 1) * 6] = c1w[:, 0, di, dj]
    b1 = np.tile(c1b, 12).reshape(1, 72)

    # conv2 band: [2*di+parity, in_col = w_in*6 + cin, out_col = (out_w//2)*16 + cout]
    w2 = np.zeros((10, 72, 64), np.float32)
    for di in range(5):
        for j in range(8):
            par, jh = j % 2, j // 2
            for dj in range(5):
                jin = j + dj
                for c in range(6):
                    w2[2 * di + par, jin * 6 + c, jh * 16:(jh + 1) * 16] = c2w[:, c, di, dj]
    b2 = np.tile(c2b, 4).reshape(1, 64)

    # fc1: a2 layout is [row = pooled_h, col = pooled_w*16 + cout]; PyTorch flat
    # feature index is cout*16 + h*4 + w  ->  permute weights accordingly.
    f1w = np.transpose(np.asarray(p["fc1_w"], np.float32).reshape(120, 16, 4, 4),
                       (2, 3, 1, 0)).reshape(4, 64, 120)

    # fc3 padded to 128 lane-dense output columns (cols 10..127 are zero).
    f3w = np.zeros((84, 128), np.float32)
    f3w[:, :10] = np.asarray(p["fc3_w"], np.float32).T
    f3b = np.zeros((1, 128), np.float32)
    f3b[0, :10] = np.asarray(p["fc3_b"], np.float32)

    bf16 = jnp.bfloat16
    return dict(
        w1=jnp.asarray(w1), b1=jnp.asarray(b1),
        w2=jnp.asarray(w2, dtype=bf16), b2=jnp.asarray(b2),
        f1w=jnp.asarray(f1w, dtype=bf16),
        f1b=jnp.asarray(np.asarray(p["fc1_b"], np.float32).reshape(1, 120)),
        f2w=jnp.asarray(np.asarray(p["fc2_w"], np.float32).T, dtype=bf16),
        f2b=jnp.asarray(np.asarray(p["fc2_b"], np.float32).reshape(1, 84)),
        f3w=jnp.asarray(f3w), f3b=jnp.asarray(f3b),
    )


# ------------------------------ wrapper -------------------------------------- #

@jax.jit
def lenet_forward(x_nchw, kp):
    B = x_nchw.shape[0]
    x = x_nchw.reshape(B, 28, 28)        # drop the size-1 channel: pure relabel
    f32 = jnp.float32

    def full_spec(shape):
        nd = len(shape)
        return pl.BlockSpec(tuple(shape), lambda i, _nd=nd: (0,) * _nd)

    out = pl.pallas_call(
        lenet_kernel,
        out_shape=jax.ShapeDtypeStruct((B, 1, 128), f32),
        grid=(B,),                       # one image per step; megacore on v7x
        in_specs=[
            pl.BlockSpec((1, 28, 28), lambda i: (i, 0, 0)),
            full_spec(kp["w1"].shape), full_spec(kp["b1"].shape),
            full_spec(kp["w2"].shape), full_spec(kp["b2"].shape),
            full_spec(kp["f1w"].shape), full_spec(kp["f1b"].shape),
            full_spec(kp["f2w"].shape), full_spec(kp["f2b"].shape),
            full_spec(kp["f3w"].shape), full_spec(kp["f3b"].shape),
        ],
        out_specs=pl.BlockSpec((1, 1, 128), lambda i: (i, 0, 0)),
        scratch_shapes=[
            pltpu.VMEM((1, 24, 72), f32),    # conv1 relu, even output columns
            pltpu.VMEM((1, 24, 72), f32),    # conv1 relu, odd  output columns
            pltpu.VMEM((1, 12, 72), f32),    # pool1
            pltpu.VMEM((1, 8, 64), f32),     # conv2 relu, even output columns
            pltpu.VMEM((1, 8, 64), f32),     # conv2 relu, odd  output columns
            pltpu.VMEM((1, 4, 64), f32),     # pool2
        ],
        compiler_params=pltpu.CompilerParams(
            dimension_semantics=("parallel",)),
    )(x, kp["w1"], kp["b1"], kp["w2"], kp["b2"],
      kp["f1w"], kp["f1b"], kp["f2w"], kp["f2b"], kp["f3w"], kp["f3b"])
    return out.reshape(B, 128)[:, :10]


# ------------------------ deterministic parameter init ----------------------- #

def init_params(key):
    def u(k, shape, fan_in):
        bound = 1.0 / np.sqrt(fan_in)
        return jax.random.uniform(k, shape, jnp.float32, -bound, bound)
    ks = jax.random.split(key, 10)
    return {
        "conv1_w": u(ks[0], (6, 1, 5, 5), 25),
        "conv1_b": u(ks[1], (6,), 25),
        "conv2_w": u(ks[2], (16, 6, 5, 5), 150),
        "conv2_b": u(ks[3], (16,), 150),
        "fc1_w": u(ks[4], (120, 256), 256),
        "fc1_b": u(ks[5], (120,), 256),
        "fc2_w": u(ks[6], (84, 120), 120),
        "fc2_b": u(ks[7], (84,), 120),
        "fc3_w": u(ks[8], (10, 84), 84),
        "fc3_b": u(ks[9], (10,), 84),
    }


# ------------------------------ pure-JAX reference --------------------------- #

def lenet_reference(x, p):
    def conv(h, w, b):
        y = lax.conv_general_dilated(h, w, (1, 1), "VALID",
                                     dimension_numbers=("NCHW", "OIHW", "NCHW"))
        return y + b[None, :, None, None]

    def maxpool(h):
        return lax.reduce_window(h, -jnp.inf, lax.max,
                                 (1, 1, 2, 2), (1, 1, 2, 2), "VALID")

    h = maxpool(jax.nn.relu(conv(x, p["conv1_w"], p["conv1_b"])))
    h = maxpool(jax.nn.relu(conv(h, p["conv2_w"], p["conv2_b"])))
    h = h.reshape(h.shape[0], -1)
    h = jax.nn.relu(h @ p["fc1_w"].T + p["fc1_b"])
    h = jax.nn.relu(h @ p["fc2_w"].T + p["fc2_b"])
    return h @ p["fc3_w"].T + p["fc3_b"]


# ----------------------------------- main ------------------------------------ #

if __name__ == "__main__":
    key = jax.random.PRNGKey(0)
    kx, kparam = jax.random.split(key)
    # LeNet's fc1(256) requires 28x28 input: conv(5)->24, pool->12, conv(5)->8,
    # pool->4, 16*4*4 = 256.
    x = jax.random.normal(kx, (2, 1, 28, 28), jnp.float32)
    params = init_params(kparam)
    kparams = prepare_params(params)          # hoisted one-time weight prep

    out = jax.block_until_ready(lenet_forward(x, kparams))
    ref = jax.block_until_ready(lenet_reference(x, params))

    assert out.shape == (2, 10), out.shape
    # conv2/fc1/fc2 use bf16 MXU operands with f32 accumulation -> relaxed tol.
    np.testing.assert_allclose(np.asarray(out), np.asarray(ref),
                               rtol=2e-2, atol=2e-2)
    print("KERNEL_OK")
</pallas_src>

<mosaic_0001>
module attributes {stable_mosaic.version = 11 : i64} {
  func.func @lenet_kernel(%arg0: i32, %arg1: memref<1x28x28xf32, #tpu.memory_space<vmem>>, %arg2: memref<10x28x72xf32, #tpu.memory_space<vmem>>, %arg3: memref<1x72xf32, #tpu.memory_space<vmem>>, %arg4: memref<10x72x64xbf16, #tpu.memory_space<vmem>>, %arg5: memref<1x64xf32, #tpu.memory_space<vmem>>, %arg6: memref<4x64x120xbf16, #tpu.memory_space<vmem>>, %arg7: memref<1x120xf32, #tpu.memory_space<vmem>>, %arg8: memref<120x84xbf16, #tpu.memory_space<vmem>>, %arg9: memref<1x84xf32, #tpu.memory_space<vmem>>, %arg10: memref<84x128xf32, #tpu.memory_space<vmem>>, %arg11: memref<1x128xf32, #tpu.memory_space<vmem>>, %arg12: memref<1x1x128xf32, #tpu.memory_space<vmem>>, %arg13: memref<1x24x72xf32, #tpu.memory_space<vmem>>, %arg14: memref<1x24x72xf32, #tpu.memory_space<vmem>>, %arg15: memref<1x12x72xf32, #tpu.memory_space<vmem>>, %arg16: memref<1x8x64xf32, #tpu.memory_space<vmem>>, %arg17: memref<1x8x64xf32, #tpu.memory_space<vmem>>, %arg18: memref<1x4x64xf32, #tpu.memory_space<vmem>>) attributes {dimension_semantics = [#tpu.dimension_semantics<parallel>], iteration_bounds = array<i64: 2>, scalar_prefetch = 0 : i64, scratch_operands = 6 : i64, tpu.core_type = #tpu.core_type<tc>, window_params = [{transform_indices = @transform_0, window_bounds = array<i64: 1, 28, 28>}, {pipeline_mode = #tpu.pipeline_mode<synchronous>, transform_indices = @transform_1, window_bounds = array<i64: 10, 28, 72>}, {pipeline_mode = #tpu.pipeline_mode<synchronous>, transform_indices = @transform_2, window_bounds = array<i64: 1, 72>}, {pipeline_mode = #tpu.pipeline_mode<synchronous>, transform_indices = @transform_3, window_bounds = array<i64: 10, 72, 64>}, {pipeline_mode = #tpu.pipeline_mode<synchronous>, transform_indices = @transform_4, window_bounds = array<i64: 1, 64>}, {pipeline_mode = #tpu.pipeline_mode<synchronous>, transform_indices = @transform_5, window_bounds = array<i64: 4, 64, 120>}, {pipeline_mode = #tpu.pipeline_mode<synchronous>, transform_indices = @transform_6, window_bounds = array<i64: 1, 120>}, {pipeline_mode = #tpu.pipeline_mode<synchronous>, transform_indices = @transform_7, window_bounds = array<i64: 120, 84>}, {pipeline_mode = #tpu.pipeline_mode<synchronous>, transform_indices = @transform_8, window_bounds = array<i64: 1, 84>}, {pipeline_mode = #tpu.pipeline_mode<synchronous>, transform_indices = @transform_9, window_bounds = array<i64: 84, 128>}, {pipeline_mode = #tpu.pipeline_mode<synchronous>, transform_indices = @transform_10, window_bounds = array<i64: 1, 128>}, {transform_indices = @transform_11, window_bounds = array<i64: 1, 1, 128>}]} {
    %cst = arith.constant 0.000000e+00 : f32
    %0 = vector.broadcast %cst : f32 to vector<24x72xf32>
    %cst_0 = arith.constant 0.000000e+00 : f32
    %1 = vector.broadcast %cst_0 : f32 to vector<24x72xf32>
    %c0 = arith.constant 0 : index
    %c0_1 = arith.constant 0 : index
    %c0_2 = arith.constant 0 : index
    %2 = vector.load %arg1[%c0, %c0_1, %c0_2] : memref<1x28x28xf32, #tpu.memory_space<vmem>>, vector<1x24x28xf32>
    %3 = vector.shape_cast %2 : vector<1x24x28xf32> to vector<24x28xf32>
    %c0_3 = arith.constant 0 : index
    %c0_4 = arith.constant 0 : index
    %c0_5 = arith.constant 0 : index
    %4 = vector.load %arg2[%c0_3, %c0_4, %c0_5] : memref<10x28x72xf32, #tpu.memory_space<vmem>>, vector<1x28x72xf32>
    %5 = vector.shape_cast %4 : vector<1x28x72xf32> to vector<28x72xf32>
    %cst_6 = arith.constant dense<0.000000e+00> : vector<24x72xf32>
    %6 = tpu.matmul %3, %5, %cst_6 {dimension_numbers = #tpu.dot_dimension_numbers<[1], [0], [0], [1], [0, 0, 1, 1], [], []>} : vector<24x28xf32>, vector<28x72xf32>, vector<24x72xf32> -> vector<24x72xf32>
    %7 = arith.addf %0, %6 : vector<24x72xf32>
    %c1 = arith.constant 1 : index
    %c0_7 = arith.constant 0 : index
    %c0_8 = arith.constant 0 : index
    %8 = vector.load %arg2[%c1, %c0_7, %c0_8] : memref<10x28x72xf32, #tpu.memory_space<vmem>>, vector<1x28x72xf32>
    %9 = vector.shape_cast %8 : vector<1x28x72xf32> to vector<28x72xf32>
    %cst_9 = arith.constant dense<0.000000e+00> : vector<24x72xf32>
    %10 = tpu.matmul %3, %9, %cst_9 {dimension_numbers = #tpu.dot_dimension_numbers<[1], [0], [0], [1], [0, 0, 1, 1], [], []>} : vector<24x28xf32>, vector<28x72xf32>, vector<24x72xf32> -> vector<24x72xf32>
    %11 = arith.addf %1, %10 : vector<24x72xf32>
    %c0_10 = arith.constant 0 : index
    %c1_11 = arith.constant 1 : index
    %c0_12 = arith.constant 0 : index
    %12 = vector.load %arg1[%c0_10, %c1_11, %c0_12] : memref<1x28x28xf32, #tpu.memory_space<vmem>>, vector<1x24x28xf32>
    %13 = vector.shape_cast %12 : vector<1x24x28xf32> to vector<24x28xf32>
    %c2 = arith.constant 2 : index
    %c0_13 = arith.constant 0 : index
    %c0_14 = arith.constant 0 : index
    %14 = vector.load %arg2[%c2, %c0_13, %c0_14] : memref<10x28x72xf32, #tpu.memory_space<vmem>>, vector<1x28x72xf32>
    %15 = vector.shape_cast %14 : vector<1x28x72xf32> to vector<28x72xf32>
    %cst_15 = arith.constant dense<0.000000e+00> : vector<24x72xf32>
    %16 = tpu.matmul %13, %15, %cst_15 {dimension_numbers = #tpu.dot_dimension_numbers<[1], [0], [0], [1], [0, 0, 1, 1], [], []>} : vector<24x28xf32>, vector<28x72xf32>, vector<24x72xf32> -> vector<24x72xf32>
    %17 = arith.addf %7, %16 : vector<24x72xf32>
    %c3 = arith.constant 3 : index
    %c0_16 = arith.constant 0 : index
    %c0_17 = arith.constant 0 : index
    %18 = vector.load %arg2[%c3, %c0_16, %c0_17] : memref<10x28x72xf32, #tpu.memory_space<vmem>>, vector<1x28x72xf32>
    %19 = vector.shape_cast %18 : vector<1x28x72xf32> to vector<28x72xf32>
    %cst_18 = arith.constant dense<0.000000e+00> : vector<24x72xf32>
    %20 = tpu.matmul %13, %19, %cst_18 {dimension_numbers = #tpu.dot_dimension_numbers<[1], [0], [0], [1], [0, 0, 1, 1], [], []>} : vector<24x28xf32>, vector<28x72xf32>, vector<24x72xf32> -> vector<24x72xf32>
    %21 = arith.addf %11, %20 : vector<24x72xf32>
    %c0_19 = arith.constant 0 : index
    %c2_20 = arith.constant 2 : index
    %c0_21 = arith.constant 0 : index
    %22 = vector.load %arg1[%c0_19, %c2_20, %c0_21] : memref<1x28x28xf32, #tpu.memory_space<vmem>>, vector<1x24x28xf32>
    %23 = vector.shape_cast %22 : vector<1x24x28xf32> to vector<24x28xf32>
    %c4 = arith.constant 4 : index
    %c0_22 = arith.constant 0 : index
    %c0_23 = arith.constant 0 : index
    %24 = vector.load %arg2[%c4, %c0_22, %c0_23] : memref<10x28x72xf32, #tpu.memory_space<vmem>>, vector<1x28x72xf32>
    %25 = vector.shape_cast %24 : vector<1x28x72xf32> to vector<28x72xf32>
    %cst_24 = arith.constant dense<0.000000e+00> : vector<24x72xf32>
    %26 = tpu.matmul %23, %25, %cst_24 {dimension_numbers = #tpu.dot_dimension_numbers<[1], [0], [0], [1], [0, 0, 1, 1], [], []>} : vector<24x28xf32>, vector<28x72xf32>, vector<24x72xf32> -> vector<24x72xf32>
    %27 = arith.addf %17, %26 : vector<24x72xf32>
    %c5 = arith.constant 5 : index
    %c0_25 = arith.constant 0 : index
    %c0_26 = arith.constant 0 : index
    %28 = vector.load %arg2[%c5, %c0_25, %c0_26] : memref<10x28x72xf32, #tpu.memory_space<vmem>>, vector<1x28x72xf32>
    %29 = vector.shape_cast %28 : vector<1x28x72xf32> to vector<28x72xf32>
    %cst_27 = arith.constant dense<0.000000e+00> : vector<24x72xf32>
    %30 = tpu.matmul %23, %29, %cst_27 {dimension_numbers = #tpu.dot_dimension_numbers<[1], [0], [0], [1], [0, 0, 1, 1], [], []>} : vector<24x28xf32>, vector<28x72xf32>, vector<24x72xf32> -> vector<24x72xf32>
    %31 = arith.addf %21, %30 : vector<24x72xf32>
    %c0_28 = arith.constant 0 : index
    %c3_29 = arith.constant 3 : index
    %c0_30 = arith.constant 0 : index
    %32 = vector.load %arg1[%c0_28, %c3_29, %c0_30] : memref<1x28x28xf32, #tpu.memory_space<vmem>>, vector<1x24x28xf32>
    %33 = vector.shape_cast %32 : vector<1x24x28xf32> to vector<24x28xf32>
    %c6 = arith.constant 6 : index
    %c0_31 = arith.constant 0 : index
    %c0_32 = arith.constant 0 : index
    %34 = vector.load %arg2[%c6, %c0_31, %c0_32] : memref<10x28x72xf32, #tpu.memory_space<vmem>>, vector<1x28x72xf32>
    %35 = vector.shape_cast %34 : vector<1x28x72xf32> to vector<28x72xf32>
    %cst_33 = arith.constant dense<0.000000e+00> : vector<24x72xf32>
    %36 = tpu.matmul %33, %35, %cst_33 {dimension_numbers = #tpu.dot_dimension_numbers<[1], [0], [0], [1], [0, 0, 1, 1], [], []>} : vector<24x28xf32>, vector<28x72xf32>, vector<24x72xf32> -> vector<24x72xf32>
    %37 = arith.addf %27, %36 : vector<24x72xf32>
    %c7 = arith.constant 7 : index
    %c0_34 = arith.constant 0 : index
    %c0_35 = arith.constant 0 : index
    %38 = vector.load %arg2[%c7, %c0_34, %c0_35] : memref<10x28x72xf32, #tpu.memory_space<vmem>>, vector<1x28x72xf32>
    %39 = vector.shape_cast %38 : vector<1x28x72xf32> to vector<28x72xf32>
    %cst_36 = arith.constant dense<0.000000e+00> : vector<24x72xf32>
    %40 = tpu.matmul %33, %39, %cst_36 {dimension_numbers = #tpu.dot_dimension_numbers<[1], [0], [0], [1], [0, 0, 1, 1], [], []>} : vector<24x28xf32>, vector<28x72xf32>, vector<24x72xf32> -> vector<24x72xf32>
    %41 = arith.addf %31, %40 : vector<24x72xf32>
    %c0_37 = arith.constant 0 : index
    %c4_38 = arith.constant 4 : index
    %c0_39 = arith.constant 0 : index
    %42 = vector.load %arg1[%c0_37, %c4_38, %c0_39] : memref<1x28x28xf32, #tpu.memory_space<vmem>>, vector<1x24x28xf32>
    %43 = vector.shape_cast %42 : vector<1x24x28xf32> to vector<24x28xf32>
    %c8 = arith.constant 8 : index
    %c0_40 = arith.constant 0 : index
    %c0_41 = arith.constant 0 : index
    %44 = vector.load %arg2[%c8, %c0_40, %c0_41] : memref<10x28x72xf32, #tpu.memory_space<vmem>>, vector<1x28x72xf32>
    %45 = vector.shape_cast %44 : vector<1x28x72xf32> to vector<28x72xf32>
    %cst_42 = arith.constant dense<0.000000e+00> : vector<24x72xf32>
    %46 = tpu.matmul %43, %45, %cst_42 {dimension_numbers = #tpu.dot_dimension_numbers<[1], [0], [0], [1], [0, 0, 1, 1], [], []>} : vector<24x28xf32>, vector<28x72xf32>, vector<24x72xf32> -> vector<24x72xf32>
    %47 = arith.addf %37, %46 : vector<24x72xf32>
    %c9 = arith.constant 9 : index
    %c0_43 = arith.constant 0 : index
    %c0_44 = arith.constant 0 : index
    %48 = vector.load %arg2[%c9, %c0_43, %c0_44] : memref<10x28x72xf32, #tpu.memory_space<vmem>>, vector<1x28x72xf32>
    %49 = vector.shape_cast %48 : vector<1x28x72xf32> to vector<28x72xf32>
    %cst_45 = arith.constant dense<0.000000e+00> : vector<24x72xf32>
    %50 = tpu.matmul %43, %49, %cst_45 {dimension_numbers = #tpu.dot_dimension_numbers<[1], [0], [0], [1], [0, 0, 1, 1], [], []>} : vector<24x28xf32>, vector<28x72xf32>, vector<24x72xf32> -> vector<24x72xf32>
    %51 = arith.addf %41, %50 : vector<24x72xf32>
    %c0_46 = arith.constant 0 : index
    %c0_47 = arith.constant 0 : index
    %52 = vector.load %arg3[%c0_46, %c0_47] : memref<1x72xf32, #tpu.memory_space<vmem>>, vector<1x72xf32>
    %53 = vector.broadcast %52 : vector<1x72xf32> to vector<24x72xf32>
    %54 = arith.addf %47, %53 : vector<24x72xf32>
    %cst_48 = arith.constant 0.000000e+00 : f32
    %55 = vector.broadcast %cst_48 : f32 to vector<24x72xf32>
    %56 = arith.maximumf %54, %55 : vector<24x72xf32>
    %57 = vector.shape_cast %56 : vector<24x72xf32> to vector<1x24x72xf32>
    %c0_49 = arith.constant 0 : index
    %c0_50 = arith.constant 0 : index
    %c0_51 = arith.constant 0 : index
    %58 = vector.load %arg13[%c0_49, %c0_50, %c0_51] : memref<1x24x72xf32, #tpu.memory_space<vmem>>, vector<1x24x72xf32>
    tpu.vector_store %arg13[%c0_49, %c0_50, %c0_51], %57 {strides = array<i32>} : memref<1x24x72xf32, #tpu.memory_space<vmem>>, vector<1x24x72xf32>,
    %c0_52 = arith.constant 0 : index
    %c0_53 = arith.constant 0 : index
    %59 = vector.load %arg3[%c0_52, %c0_53] : memref<1x72xf32, #tpu.memory_space<vmem>>, vector<1x72xf32>
    %60 = vector.broadcast %59 : vector<1x72xf32> to vector<24x72xf32>
    %61 = arith.addf %51, %60 : vector<24x72xf32>
    %cst_54 = arith.constant 0.000000e+00 : f32
    %62 = vector.broadcast %cst_54 : f32 to vector<24x72xf32>
    %63 = arith.maximumf %61, %62 : vector<24x72xf32>
    %64 = vector.shape_cast %63 : vector<24x72xf32> to vector<1x24x72xf32>
    %c0_55 = arith.constant 0 : index
    %c0_56 = arith.constant 0 : index
    %c0_57 = arith.constant 0 : index
    %65 = vector.load %arg14[%c0_55, %c0_56, %c0_57] : memref<1x24x72xf32, #tpu.memory_space<vmem>>, vector<1x24x72xf32>
    tpu.vector_store %arg14[%c0_55, %c0_56, %c0_57], %64 {strides = array<i32>} : memref<1x24x72xf32, #tpu.memory_space<vmem>>, vector<1x24x72xf32>,
    %c0_58 = arith.constant 0 : index
    %c0_59 = arith.constant 0 : index
    %c0_60 = arith.constant 0 : index
    %66 = tpu.strided_load %arg13[%c0_58, %c0_59, %c0_60] {strides = array<i32: 1, 2, 1>} : memref<1x24x72xf32, #tpu.memory_space<vmem>>, vector<1x12x72xf32>
    %c0_61 = arith.constant 0 : index
    %c1_62 = arith.constant 1 : index
    %c0_63 = arith.constant 0 : index
    %67 = tpu.strided_load %arg13[%c0_61, %c1_62, %c0_63] {strides = array<i32: 1, 2, 1>} : memref<1x24x72xf32, #tpu.memory_space<vmem>>, vector<1x12x72xf32>
    %68 = arith.maximumf %66, %67 : vector<1x12x72xf32>
    %c0_64 = arith.constant 0 : index
    %c0_65 = arith.constant 0 : index
    %c0_66 = arith.constant 0 : index
    %69 = tpu.strided_load %arg14[%c0_64, %c0_65, %c0_66] {strides = array<i32: 1, 2, 1>} : memref<1x24x72xf32, #tpu.memory_space<vmem>>, vector<1x12x72xf32>
    %c0_67 = arith.constant 0 : index
    %c1_68 = arith.constant 1 : index
    %c0_69 = arith.constant 0 : index
    %70 = tpu.strided_load %arg14[%c0_67, %c1_68, %c0_69] {strides = array<i32: 1, 2, 1>} : memref<1x24x72xf32, #tpu.memory_space<vmem>>, vector<1x12x72xf32>
    %71 = arith.maximumf %69, %70 : vector<1x12x72xf32>
    %72 = arith.maximumf %68, %71 : vector<1x12x72xf32>
    %c0_70 = arith.constant 0 : index
    %c0_71 = arith.constant 0 : index
    %c0_72 = arith.constant 0 : index
    %73 = vector.load %arg15[%c0_70, %c0_71, %c0_72] : memref<1x12x72xf32, #tpu.memory_space<vmem>>, vector<1x12x72xf32>
    tpu.vector_store %arg15[%c0_70, %c0_71, %c0_72], %72 {strides = array<i32>} : memref<1x12x72xf32, #tpu.memory_space<vmem>>, vector<1x12x72xf32>,
    %cst_73 = arith.constant 0.000000e+00 : f32
    %74 = vector.broadcast %cst_73 : f32 to vector<8x64xf32>
    %cst_74 = arith.constant 0.000000e+00 : f32
    %75 = vector.broadcast %cst_74 : f32 to vector<8x64xf32>
    %c0_75 = arith.constant 0 : index
    %c0_76 = arith.constant 0 : index
    %c0_77 = arith.constant 0 : index
    %76 = vector.load %arg15[%c0_75, %c0_76, %c0_77] : memref<1x12x72xf32, #tpu.memory_space<vmem>>, vector<1x8x72xf32>
    %77 = vector.shape_cast %76 : vector<1x8x72xf32> to vector<8x72xf32>
    %78 = arith.truncf %77 : vector<8x72xf32> to vector<8x72xbf16>
    %c0_78 = arith.constant 0 : index
    %c0_79 = arith.constant 0 : index
    %c0_80 = arith.constant 0 : index
    %79 = vector.load %arg4[%c0_78, %c0_79, %c0_80] : memref<10x72x64xbf16, #tpu.memory_space<vmem>>, vector<1x72x64xbf16>
    %80 = vector.shape_cast %79 : vector<1x72x64xbf16> to vector<72x64xbf16>
    %cst_81 = arith.constant dense<0.000000e+00> : vector<8x64xf32>
    %81 = tpu.matmul %78, %80, %cst_81 {dimension_numbers = #tpu.dot_dimension_numbers<[1], [0], [0], [1], [0, 0, 1, 1], [], []>} : vector<8x72xbf16>, vector<72x64xbf16>, vector<8x64xf32> -> vector<8x64xf32>
    %82 = arith.addf %74, %81 : vector<8x64xf32>
    %c1_82 = arith.constant 1 : index
    %c0_83 = arith.constant 0 : index
    %c0_84 = arith.constant 0 : index
    %83 = vector.load %arg4[%c1_82, %c0_83, %c0_84] : memref<10x72x64xbf16, #tpu.memory_space<vmem>>, vector<1x72x64xbf16>
    %84 = vector.shape_cast %83 : vector<1x72x64xbf16> to vector<72x64xbf16>
    %cst_85 = arith.constant dense<0.000000e+00> : vector<8x64xf32>
    %85 = tpu.matmul %78, %84, %cst_85 {dimension_numbers = #tpu.dot_dimension_numbers<[1], [0], [0], [1], [0, 0, 1, 1], [], []>} : vector<8x72xbf16>, vector<72x64xbf16>, vector<8x64xf32> -> vector<8x64xf32>
    %86 = arith.addf %75, %85 : vector<8x64xf32>
    %c0_86 = arith.constant 0 : index
    %c1_87 = arith.constant 1 : index
    %c0_88 = arith.constant 0 : index
    %87 = vector.load %arg15[%c0_86, %c1_87, %c0_88] : memref<1x12x72xf32, #tpu.memory_space<vmem>>, vector<1x8x72xf32>
    %88 = vector.shape_cast %87 : vector<1x8x72xf32> to vector<8x72xf32>
    %89 = arith.truncf %88 : vector<8x72xf32> to vector<8x72xbf16>
    %c2_89 = arith.constant 2 : index
    %c0_90 = arith.constant 0 : index
    %c0_91 = arith.constant 0 : index
    %90 = vector.load %arg4[%c2_89, %c0_90, %c0_91] : memref<10x72x64xbf16, #tpu.memory_space<vmem>>, vector<1x72x64xbf16>
    %91 = vector.shape_cast %90 : vector<1x72x64xbf16> to vector<72x64xbf16>
    %cst_92 = arith.constant dense<0.000000e+00> : vector<8x64xf32>
    %92 = tpu.matmul %89, %91, %cst_92 {dimension_numbers = #tpu.dot_dimension_numbers<[1], [0], [0], [1], [0, 0, 1, 1], [], []>} : vector<8x72xbf16>, vector<72x64xbf16>, vector<8x64xf32> -> vector<8x64xf32>
    %93 = arith.addf %82, %92 : vector<8x64xf32>
    %c3_93 = arith.constant 3 : index
    %c0_94 = arith.constant 0 : index
    %c0_95 = arith.constant 0 : index
    %94 = vector.load %arg4[%c3_93, %c0_94, %c0_95] : memref<10x72x64xbf16, #tpu.memory_space<vmem>>, vector<1x72x64xbf16>
    %95 = vector.shape_cast %94 : vector<1x72x64xbf16> to vector<72x64xbf16>
    %cst_96 = arith.constant dense<0.000000e+00> : vector<8x64xf32>
    %96 = tpu.matmul %89, %95, %cst_96 {dimension_numbers = #tpu.dot_dimension_numbers<[1], [0], [0], [1], [0, 0, 1, 1], [], []>} : vector<8x72xbf16>, vector<72x64xbf16>, vector<8x64xf32> -> vector<8x64xf32>
    %97 = arith.addf %86, %96 : vector<8x64xf32>
    %c0_97 = arith.constant 0 : index
    %c2_98 = arith.constant 2 : index
    %c0_99 = arith.constant 0 : index
    %98 = vector.load %arg15[%c0_97, %c2_98, %c0_99] : memref<1x12x72xf32, #tpu.memory_space<vmem>>, vector<1x8x72xf32>
    %99 = vector.shape_cast %98 : vector<1x8x72xf32> to vector<8x72xf32>
    %100 = arith.truncf %99 : vector<8x72xf32> to vector<8x72xbf16>
    %c4_100 = arith.constant 4 : index
    %c0_101 = arith.constant 0 : index
    %c0_102 = arith.constant 0 : index
    %101 = vector.load %arg4[%c4_100, %c0_101, %c0_102] : memref<10x72x64xbf16, #tpu.memory_space<vmem>>, vector<1x72x64xbf16>
    %102 = vector.shape_cast %101 : vector<1x72x64xbf16> to vector<72x64xbf16>
    %cst_103 = arith.constant dense<0.000000e+00> : vector<8x64xf32>
    %103 = tpu.matmul %100, %102, %cst_103 {dimension_numbers = #tpu.dot_dimension_numbers<[1], [0], [0], [1], [0, 0, 1, 1], [], []>} : vector<8x72xbf16>, vector<72x64xbf16>, vector<8x64xf32> -> vector<8x64xf32>
    %104 = arith.addf %93, %103 : vector<8x64xf32>
    %c5_104 = arith.constant 5 : index
    %c0_105 = arith.constant 0 : index
    %c0_106 = arith.constant 0 : index
    %105 = vector.load %arg4[%c5_104, %c0_105, %c0_106] : memref<10x72x64xbf16, #tpu.memory_space<vmem>>, vector<1x72x64xbf16>
    %106 = vector.shape_cast %105 : vector<1x72x64xbf16> to vector<72x64xbf16>
    %cst_107 = arith.constant dense<0.000000e+00> : vector<8x64xf32>
    %107 = tpu.matmul %100, %106, %cst_107 {dimension_numbers = #tpu.dot_dimension_numbers<[1], [0], [0], [1], [0, 0, 1, 1], [], []>} : vector<8x72xbf16>, vector<72x64xbf16>, vector<8x64xf32> -> vector<8x64xf32>
    %108 = arith.addf %97, %107 : vector<8x64xf32>
    %c0_108 = arith.constant 0 : index
    %c3_109 = arith.constant 3 : index
    %c0_110 = arith.constant 0 : index
    %109 = vector.load %arg15[%c0_108, %c3_109, %c0_110] : memref<1x12x72xf32, #tpu.memory_space<vmem>>, vector<1x8x72xf32>
    %110 = vector.shape_cast %109 : vector<1x8x72xf32> to vector<8x72xf32>
    %111 = arith.truncf %110 : vector<8x72xf32> to vector<8x72xbf16>
    %c6_111 = arith.constant 6 : index
    %c0_112 = arith.constant 0 : index
    %c0_113 = arith.constant 0 : index
    %112 = vector.load %arg4[%c6_111, %c0_112, %c0_113] : memref<10x72x64xbf16, #tpu.memory_space<vmem>>, vector<1x72x64xbf16>
    %113 = vector.shape_cast %112 : vector<1x72x64xbf16> to vector<72x64xbf16>
    %cst_114 = arith.constant dense<0.000000e+00> : vector<8x64xf32>
    %114 = tpu.matmul %111, %113, %cst_114 {dimension_numbers = #tpu.dot_dimension_numbers<[1], [0], [0], [1], [0, 0, 1, 1], [], []>} : vector<8x72xbf16>, vector<72x64xbf16>, vector<8x64xf32> -> vector<8x64xf32>
    %115 = arith.addf %104, %114 : vector<8x64xf32>
    %c7_115 = arith.constant 7 : index
    %c0_116 = arith.constant 0 : index
    %c0_117 = arith.constant 0 : index
    %116 = vector.load %arg4[%c7_115, %c0_116, %c0_117] : memref<10x72x64xbf16, #tpu.memory_space<vmem>>, vector<1x72x64xbf16>
    %117 = vector.shape_cast %116 : vector<1x72x64xbf16> to vector<72x64xbf16>
    %cst_118 = arith.constant dense<0.000000e+00> : vector<8x64xf32>
    %118 = tpu.matmul %111, %117, %cst_118 {dimension_numbers = #tpu.dot_dimension_numbers<[1], [0], [0], [1], [0, 0, 1, 1], [], []>} : vector<8x72xbf16>, vector<72x64xbf16>, vector<8x64xf32> -> vector<8x64xf32>
    %119 = arith.addf %108, %118 : vector<8x64xf32>
    %c0_119 = arith.constant 0 : index
    %c4_120 = arith.constant 4 : index
    %c0_121 = arith.constant 0 : index
    %120 = vector.load %arg15[%c0_119, %c4_120, %c0_121] : memref<1x12x72xf32, #tpu.memory_space<vmem>>, vector<1x8x72xf32>
    %121 = vector.shape_cast %120 : vector<1x8x72xf32> to vector<8x72xf32>
    %122 = arith.truncf %121 : vector<8x72xf32> to vector<8x72xbf16>
    %c8_122 = arith.constant 8 : index
    %c0_123 = arith.constant 0 : index
    %c0_124 = arith.constant 0 : index
    %123 = vector.load %arg4[%c8_122, %c0_123, %c0_124] : memref<10x72x64xbf16, #tpu.memory_space<vmem>>, vector<1x72x64xbf16>
    %124 = vector.shape_cast %123 : vector<1x72x64xbf16> to vector<72x64xbf16>
    %cst_125 = arith.constant dense<0.000000e+00> : vector<8x64xf32>
    %125 = tpu.matmul %122, %124, %cst_125 {dimension_numbers = #tpu.dot_dimension_numbers<[1], [0], [0], [1], [0, 0, 1, 1], [], []>} : vector<8x72xbf16>, vector<72x64xbf16>, vector<8x64xf32> -> vector<8x64xf32>
    %126 = arith.addf %115, %125 : vector<8x64xf32>
    %c9_126 = arith.constant 9 : index
    %c0_127 = arith.constant 0 : index
    %c0_128 = arith.constant 0 : index
    %127 = vector.load %arg4[%c9_126, %c0_127, %c0_128] : memref<10x72x64xbf16, #tpu.memory_space<vmem>>, vector<1x72x64xbf16>
    %128 = vector.shape_cast %127 : vector<1x72x64xbf16> to vector<72x64xbf16>
    %cst_129 = arith.constant dense<0.000000e+00> : vector<8x64xf32>
    %129 = tpu.matmul %122, %128, %cst_129 {dimension_numbers = #tpu.dot_dimension_numbers<[1], [0], [0], [1], [0, 0, 1, 1], [], []>} : vector<8x72xbf16>, vector<72x64xbf16>, vector<8x64xf32> -> vector<8x64xf32>
    %130 = arith.addf %119, %129 : vector<8x64xf32>
    %c0_130 = arith.constant 0 : index
    %c0_131 = arith.constant 0 : index
    %131 = vector.load %arg5[%c0_130, %c0_131] : memref<1x64xf32, #tpu.memory_space<vmem>>, vector<1x64xf32>
    %132 = vector.broadcast %131 : vector<1x64xf32> to vector<8x64xf32>
    %133 = arith.addf %126, %132 : vector<8x64xf32>
    %cst_132 = arith.constant 0.000000e+00 : f32
    %134 = vector.broadcast %cst_132 : f32 to vector<8x64xf32>
    %135 = arith.maximumf %133, %134 : vector<8x64xf32>
    %136 = vector.shape_cast %135 : vector<8x64xf32> to vector<1x8x64xf32>
    %c0_133 = arith.constant 0 : index
    %c0_134 = arith.constant 0 : index
    %c0_135 = arith.constant 0 : index
    %137 = vector.load %arg16[%c0_133, %c0_134, %c0_135] : memref<1x8x64xf32, #tpu.memory_space<vmem>>, vector<1x8x64xf32>
    tpu.vector_store %arg16[%c0_133, %c0_134, %c0_135], %136 {strides = array<i32>} : memref<1x8x64xf32, #tpu.memory_space<vmem>>, vector<1x8x64xf32>,
    %c0_136 = arith.constant 0 : index
    %c0_137 = arith.constant 0 : index
    %138 = vector.load %arg5[%c0_136, %c0_137] : memref<1x64xf32, #tpu.memory_space<vmem>>, vector<1x64xf32>
    %139 = vector.broadcast %138 : vector<1x64xf32> to vector<8x64xf32>
    %140 = arith.addf %130, %139 : vector<8x64xf32>
    %cst_138 = arith.constant 0.000000e+00 : f32
    %141 = vector.broadcast %cst_138 : f32 to vector<8x64xf32>
    %142 = arith.maximumf %140, %141 : vector<8x64xf32>
    %143 = vector.shape_cast %142 : vector<8x64xf32> to vector<1x8x64xf32>
    %c0_139 = arith.constant 0 : index
    %c0_140 = arith.constant 0 : index
    %c0_141 = arith.constant 0 : index
    %144 = vector.load %arg17[%c0_139, %c0_140, %c0_141] : memref<1x8x64xf32, #tpu.memory_space<vmem>>, vector<1x8x64xf32>
    tpu.vector_store %arg17[%c0_139, %c0_140, %c0_141], %143 {strides = array<i32>} : memref<1x8x64xf32, #tpu.memory_space<vmem>>, vector<1x8x64xf32>,
    %c0_142 = arith.constant 0 : index
    %c0_143 = arith.constant 0 : index
    %c0_144 = arith.constant 0 : index
    %145 = tpu.strided_load %arg16[%c0_142, %c0_143, %c0_144] {strides = array<i32: 1, 2, 1>} : memref<1x8x64xf32, #tpu.memory_space<vmem>>, vector<1x4x64xf32>
    %c0_145 = arith.constant 0 : index
    %c1_146 = arith.constant 1 : index
    %c0_147 = arith.constant 0 : index
    %146 = tpu.strided_load %arg16[%c0_145, %c1_146, %c0_147] {strides = array<i32: 1, 2, 1>} : memref<1x8x64xf32, #tpu.memory_space<vmem>>, vector<1x4x64xf32>
    %147 = arith.maximumf %145, %146 : vector<1x4x64xf32>
    %c0_148 = arith.constant 0 : index
    %c0_149 = arith.constant 0 : index
    %c0_150 = arith.constant 0 : index
    %148 = tpu.strided_load %arg17[%c0_148, %c0_149, %c0_150] {strides = array<i32: 1, 2, 1>} : memref<1x8x64xf32, #tpu.memory_space<vmem>>, vector<1x4x64xf32>
    %c0_151 = arith.constant 0 : index
    %c1_152 = arith.constant 1 : index
    %c0_153 = arith.constant 0 : index
    %149 = tpu.strided_load %arg17[%c0_151, %c1_152, %c0_153] {strides = array<i32: 1, 2, 1>} : memref<1x8x64xf32, #tpu.memory_space<vmem>>, vector<1x4x64xf32>
    %150 = arith.maximumf %148, %149 : vector<1x4x64xf32>
    %151 = arith.maximumf %147, %150 : vector<1x4x64xf32>
    %c0_154 = arith.constant 0 : index
    %c0_155 = arith.constant 0 : index
    %c0_156 = arith.constant 0 : index
    %152 = vector.load %arg18[%c0_154, %c0_155, %c0_156] : memref<1x4x64xf32, #tpu.memory_space<vmem>>, vector<1x4x64xf32>
    tpu.vector_store %arg18[%c0_154, %c0_155, %c0_156], %151 {strides = array<i32>} : memref<1x4x64xf32, #tpu.memory_space<vmem>>, vector<1x4x64xf32>,
    %cst_157 = arith.constant 0.000000e+00 : f32
    %153 = vector.broadcast %cst_157 : f32 to vector<1x120xf32>
    %c0_158 = arith.constant 0 : index
    %c0_159 = arith.constant 0 : index
    %c0_160 = arith.constant 0 : index
    %154 = vector.load %arg18[%c0_158, %c0_159, %c0_160] : memref<1x4x64xf32, #tpu.memory_space<vmem>>, vector<1x1x64xf32>
    %155 = vector.shape_cast %154 : vector<1x1x64xf32> to vector<1x64xf32>
    %156 = arith.truncf %155 : vector<1x64xf32> to vector<1x64xbf16>
    %c0_161 = arith.constant 0 : index
    %c0_162 = arith.constant 0 : index
    %c0_163 = arith.constant 0 : index
    %157 = vector.load %arg6[%c0_161, %c0_162, %c0_163] : memref<4x64x120xbf16, #tpu.memory_space<vmem>>, vector<1x64x120xbf16>
    %158 = vector.shape_cast %157 : vector<1x64x120xbf16> to vector<64x120xbf16>
    %cst_164 = arith.constant dense<0.000000e+00> : vector<1x120xf32>
    %159 = tpu.matmul %156, %158, %cst_164 {dimension_numbers = #tpu.dot_dimension_numbers<[1], [0], [0], [1], [0, 0, 1, 1], [], []>} : vector<1x64xbf16>, vector<64x120xbf16>, vector<1x120xf32> -> vector<1x120xf32>
    %160 = arith.addf %153, %159 : vector<1x120xf32>
    %c0_165 = arith.constant 0 : index
    %c1_166 = arith.constant 1 : index
    %c0_167 = arith.constant 0 : index
    %161 = vector.load %arg18[%c0_165, %c1_166, %c0_167] : memref<1x4x64xf32, #tpu.memory_space<vmem>>, vector<1x1x64xf32>
    %162 = vector.shape_cast %161 : vector<1x1x64xf32> to vector<1x64xf32>
    %163 = arith.truncf %162 : vector<1x64xf32> to vector<1x64xbf16>
    %c1_168 = arith.constant 1 : index
    %c0_169 = arith.constant 0 : index
    %c0_170 = arith.constant 0 : index
    %164 = vector.load %arg6[%c1_168, %c0_169, %c0_170] : memref<4x64x120xbf16, #tpu.memory_space<vmem>>, vector<1x64x120xbf16>
    %165 = vector.shape_cast %164 : vector<1x64x120xbf16> to vector<64x120xbf16>
    %cst_171 = arith.constant dense<0.000000e+00> : vector<1x120xf32>
    %166 = tpu.matmul %163, %165, %cst_171 {dimension_numbers = #tpu.dot_dimension_numbers<[1], [0], [0], [1], [0, 0, 1, 1], [], []>} : vector<1x64xbf16>, vector<64x120xbf16>, vector<1x120xf32> -> vector<1x120xf32>
    %167 = arith.addf %160, %166 : vector<1x120xf32>
    %c0_172 = arith.constant 0 : index
    %c2_173 = arith.constant 2 : index
    %c0_174 = arith.constant 0 : index
    %168 = vector.load %arg18[%c0_172, %c2_173, %c0_174] : memref<1x4x64xf32, #tpu.memory_space<vmem>>, vector<1x1x64xf32>
    %169 = vector.shape_cast %168 : vector<1x1x64xf32> to vector<1x64xf32>
    %170 = arith.truncf %169 : vector<1x64xf32> to vector<1x64xbf16>
    %c2_175 = arith.constant 2 : index
    %c0_176 = arith.constant 0 : index
    %c0_177 = arith.constant 0 : index
    %171 = vector.load %arg6[%c2_175, %c0_176, %c0_177] : memref<4x64x120xbf16, #tpu.memory_space<vmem>>, vector<1x64x120xbf16>
    %172 = vector.shape_cast %171 : vector<1x64x120xbf16> to vector<64x120xbf16>
    %cst_178 = arith.constant dense<0.000000e+00> : vector<1x120xf32>
    %173 = tpu.matmul %170, %172, %cst_178 {dimension_numbers = #tpu.dot_dimension_numbers<[1], [0], [0], [1], [0, 0, 1, 1], [], []>} : vector<1x64xbf16>, vector<64x120xbf16>, vector<1x120xf32> -> vector<1x120xf32>
    %174 = arith.addf %167, %173 : vector<1x120xf32>
    %c0_179 = arith.constant 0 : index
    %c3_180 = arith.constant 3 : index
    %c0_181 = arith.constant 0 : index
    %175 = vector.load %arg18[%c0_179, %c3_180, %c0_181] : memref<1x4x64xf32, #tpu.memory_space<vmem>>, vector<1x1x64xf32>
    %176 = vector.shape_cast %175 : vector<1x1x64xf32> to vector<1x64xf32>
    %177 = arith.truncf %176 : vector<1x64xf32> to vector<1x64xbf16>
    %c3_182 = arith.constant 3 : index
    %c0_183 = arith.constant 0 : index
    %c0_184 = arith.constant 0 : index
    %178 = vector.load %arg6[%c3_182, %c0_183, %c0_184] : memref<4x64x120xbf16, #tpu.memory_space<vmem>>, vector<1x64x120xbf16>
    %179 = vector.shape_cast %178 : vector<1x64x120xbf16> to vector<64x120xbf16>
    %cst_185 = arith.constant dense<0.000000e+00> : vector<1x120xf32>
    %180 = tpu.matmul %177, %179, %cst_185 {dimension_numbers = #tpu.dot_dimension_numbers<[1], [0], [0], [1], [0, 0, 1, 1], [], []>} : vector<1x64xbf16>, vector<64x120xbf16>, vector<1x120xf32> -> vector<1x120xf32>
    %181 = arith.addf %174, %180 : vector<1x120xf32>
    %c0_186 = arith.constant 0 : index
    %c0_187 = arith.constant 0 : index
    %182 = vector.load %arg7[%c0_186, %c0_187] : memref<1x120xf32, #tpu.memory_space<vmem>>, vector<1x120xf32>
    %183 = arith.addf %181, %182 : vector<1x120xf32>
    %cst_188 = arith.constant 0.000000e+00 : f32
    %184 = vector.broadcast %cst_188 : f32 to vector<1x120xf32>
    %185 = arith.maximumf %183, %184 : vector<1x120xf32>
    %186 = arith.truncf %185 : vector<1x120xf32> to vector<1x120xbf16>
    %c0_189 = arith.constant 0 : index
    %c0_190 = arith.constant 0 : index
    %187 = vector.load %arg8[%c0_189, %c0_190] : memref<120x84xbf16, #tpu.memory_space<vmem>>, vector<120x84xbf16>
    %cst_191 = arith.constant dense<0.000000e+00> : vector<1x84xf32>
    %188 = tpu.matmul %186, %187, %cst_191 {dimension_numbers = #tpu.dot_dimension_numbers<[1], [0], [0], [1], [0, 0, 1, 1], [], []>} : vector<1x120xbf16>, vector<120x84xbf16>, vector<1x84xf32> -> vector<1x84xf32>
    %c0_192 = arith.constant 0 : index
    %c0_193 = arith.constant 0 : index
    %189 = vector.load %arg9[%c0_192, %c0_193] : memref<1x84xf32, #tpu.memory_space<vmem>>, vector<1x84xf32>
    %190 = arith.addf %188, %189 : vector<1x84xf32>
    %cst_194 = arith.constant 0.000000e+00 : f32
    %191 = vector.broadcast %cst_194 : f32 to vector<1x84xf32>
    %192 = arith.maximumf %190, %191 : vector<1x84xf32>
    %c0_195 = arith.constant 0 : index
    %c0_196 = arith.constant 0 : index
    %193 = vector.load %arg10[%c0_195, %c0_196] : memref<84x128xf32, #tpu.memory_space<vmem>>, vector<84x128xf32>
    %cst_197 = arith.constant dense<0.000000e+00> : vector<1x128xf32>
    %194 = tpu.matmul %192, %193, %cst_197 {dimension_numbers = #tpu.dot_dimension_numbers<[1], [0], [0], [1], [0, 0, 1, 1], [], []>} : vector<1x84xf32>, vector<84x128xf32>, vector<1x128xf32> -> vector<1x128xf32>
    %c0_198 = arith.constant 0 : index
    %c0_199 = arith.constant 0 : index
    %195 = vector.load %arg11[%c0_198, %c0_199] : memref<1x128xf32, #tpu.memory_space<vmem>>, vector<1x128xf32>
    %196 = arith.addf %194, %195 : vector<1x128xf32>
    %197 = vector.shape_cast %196 : vector<1x128xf32> to vector<1x1x128xf32>
    %c0_200 = arith.constant 0 : index
    %c0_201 = arith.constant 0 : index
    %c0_202 = arith.constant 0 : index
    %198 = vector.load %arg12[%c0_200, %c0_201, %c0_202] : memref<1x1x128xf32, #tpu.memory_space<vmem>>, vector<1x1x128xf32>
    tpu.vector_store %arg12[%c0_200, %c0_201, %c0_202], %197 {strides = array<i32>} : memref<1x1x128xf32, #tpu.memory_space<vmem>>, vector<1x1x128xf32>,
    return
  }
  func.func @transform_0(%arg0: i32) -> (i32, i32, i32) {
    %c0_i32 = arith.constant 0 : i32
    %c0_i32_0 = arith.constant 0 : i32
    %c0_i32_1 = arith.constant 0 : i32
    return %arg0, %c0_i32, %c0_i32_0 : i32, i32, i32
  }
  func.func @transform_1(%arg0: i32) -> (i32, i32, i32) {
    %c0_i32 = arith.constant 0 : i32
    %c0_i32_0 = arith.constant 0 : i32
    %c0_i32_1 = arith.constant 0 : i32
    %c0_i32_2 = arith.constant 0 : i32
    return %c0_i32, %c0_i32_0, %c0_i32_1 : i32, i32, i32
  }
  func.func @transform_2(%arg0: i32) -> (i32, i32) {
    %c0_i32 = arith.constant 0 : i32
    %c0_i32_0 = arith.constant 0 : i32
    %c0_i32_1 = arith.constant 0 : i32
    return %c0_i32, %c0_i32_0 : i32, i32
  }
  func.func @transform_3(%arg0: i32) -> (i32, i32, i32) {
    %c0_i32 = arith.constant 0 : i32
    %c0_i32_0 = arith.constant 0 : i32
    %c0_i32_1 = arith.constant 0 : i32
    %c0_i32_2 = arith.constant 0 : i32
    return %c0_i32, %c0_i32_0, %c0_i32_1 : i32, i32, i32
  }
  func.func @transform_4(%arg0: i32) -> (i32, i32) {
    %c0_i32 = arith.constant 0 : i32
    %c0_i32_0 = arith.constant 0 : i32
    %c0_i32_1 = arith.constant 0 : i32
    return %c0_i32, %c0_i32_0 : i32, i32
  }
  func.func @transform_5(%arg0: i32) -> (i32, i32, i32) {
    %c0_i32 = arith.constant 0 : i32
    %c0_i32_0 = arith.constant 0 : i32
    %c0_i32_1 = arith.constant 0 : i32
    %c0_i32_2 = arith.constant 0 : i32
    return %c0_i32, %c0_i32_0, %c0_i32_1 : i32, i32, i32
  }
  func.func @transform_6(%arg0: i32) -> (i32, i32) {
    %c0_i32 = arith.constant 0 : i32
    %c0_i32_0 = arith.constant 0 : i32
    %c0_i32_1 = arith.constant 0 : i32
    return %c0_i32, %c0_i32_0 : i32, i32
  }
  func.func @transform_7(%arg0: i32) -> (i32, i32) {
    %c0_i32 = arith.constant 0 : i32
    %c0_i32_0 = arith.constant 0 : i32
    %c0_i32_1 = arith.constant 0 : i32
    return %c0_i32, %c0_i32_0 : i32, i32
  }
  func.func @transform_8(%arg0: i32) -> (i32, i32) {
    %c0_i32 = arith.constant 0 : i32
    %c0_i32_0 = arith.constant 0 : i32
    %c0_i32_1 = arith.constant 0 : i32
    return %c0_i32, %c0_i32_0 : i32, i32
  }
  func.func @transform_9(%arg0: i32) -> (i32, i32) {
    %c0_i32 = arith.constant 0 : i32
    %c0_i32_0 = arith.constant 0 : i32
    %c0_i32_1 = arith.constant 0 : i32
    return %c0_i32, %c0_i32_0 : i32, i32
  }
  func.func @transform_10(%arg0: i32) -> (i32, i32) {
    %c0_i32 = arith.constant 0 : i32
    %c0_i32_0 = arith.constant 0 : i32
    %c0_i32_1 = arith.constant 0 : i32
    return %c0_i32, %c0_i32_0 : i32, i32
  }
  func.func @transform_11(%arg0: i32) -> (i32, i32, i32) {
    %c0_i32 = arith.constant 0 : i32
    %c0_i32_0 = arith.constant 0 : i32
    %c0_i32_1 = arith.constant 0 : i32
    return %arg0, %c0_i32, %c0_i32_0 : i32, i32, i32
  }
}

</mosaic_0001>

<llo_original>
// kernel: lenet_forward.1
$region0: #{lenet_forward.1}
  #allocation0 [shape = 'u32[]', space=smem, size = 0x4, offset = 0x4, fixed_abs, tag = 'smem constant byte address 0x4 - core index']
  #allocation1 [shape = 'u32[144,128]{1,0:T(1,128)}', space=vmem, size = 0x12000, scoped, tag = 'internal scratch']
  #allocation2 [shape = 'f32[1,24,72]{2,1,0:T(8,128)}', space=vmem, size = 0x3000, scoped, tag = 'scratch operand']
  #allocation3 [shape = 'f32[1,24,72]{2,1,0:T(8,128)}', space=vmem, size = 0x3000, scoped, tag = 'scratch operand']
  #allocation4 [shape = 'f32[1,12,72]{2,1,0:T(8,128)}', space=vmem, size = 0x2000, scoped, tag = 'scratch operand']
  #allocation5 [shape = 'f32[1,8,64]{2,1,0:T(8,128)}', space=vmem, size = 0x1000, scoped, tag = 'scratch operand']
  #allocation6 [shape = 'f32[1,8,64]{2,1,0:T(8,128)}', space=vmem, size = 0x1000, scoped, tag = 'scratch operand']
  #allocation7 [shape = 'f32[1,4,64]{2,1,0:T(4,128)}', space=vmem, size = 0x800, scoped, tag = 'scratch operand']
  %s0 = inlined_call_operand.vmem [shape: f32[2,28,28], index: 0, kind: input, shape index: {}]
  %s1 = inlined_call_operand.vmem [shape: f32[10,28,72], index: 1, kind: input, shape index: {}]
  %s2 = inlined_call_operand.vmem [shape: f32[1,72], index: 2, kind: input, shape index: {}]
  %s3 = inlined_call_operand.vmem [shape: bf16[10,72,64], index: 3, kind: input, shape index: {}]
  %s4 = inlined_call_operand.vmem [shape: f32[1,64], index: 4, kind: input, shape index: {}]
  %s5 = inlined_call_operand.vmem [shape: bf16[4,64,120], index: 5, kind: input, shape index: {}]
  %s6 = inlined_call_operand.vmem [shape: f32[1,120], index: 6, kind: input, shape index: {}]
  %s7 = inlined_call_operand.vmem [shape: bf16[120,84], index: 7, kind: input, shape index: {}]
  %s8 = inlined_call_operand.vmem [shape: f32[1,84], index: 8, kind: input, shape index: {}]
  %s9 = inlined_call_operand.vmem [shape: f32[84,128], index: 9, kind: input, shape index: {}]
  %s10 = inlined_call_operand.vmem [shape: f32[1,128], index: 10, kind: input, shape index: {}]
  %s11 = inlined_call_operand.hbm [shape: f32[2,1,128], index: 11, kind: output, shape index: {}]
  %s12 = sld [smem:[#allocation0]]
  $region77: #{lenet_forward.1} parent=0
    _
  %s14 = ssub.s32 1, %s12
  %s15 = scalar_select 0, %s14, %s12
  $region1: #{lenet_forward.1} parent=0
    #allocation8 [shape = 'u8[1024]{0}', space=vmem, size = 0x400, scoped, tag = 'output window, operand 0']
    #allocation9 [shape = 's32[2]{0}', space=sflag, size = 0x8, scoped, tag = 'scoped memory for lenet_forward.1']
    %16 = vsyncpa [#allocation9], 0
    %s17 = scalar_lea.sflag [#allocation9], 1
    %18 = vsyncpa %s17, 0
    loop: start=0, step=1, limit=4
    $region2: #{lenet_forward.1} parent=1 // loop_pre_header
      _
    $region3: #{lenet_forward.1} parent=1 // loop_header
      %s20 = sphi 0, %s24
      %p21 = scmp.ge.s32.totalorder %s20, 4
      %s30 = sphi 0, %s32
      %s33 = sphi 0, %s30
      %s34 = sphi 0, %s33
      %s50 = sphi 0, %s34
      %s54 = sphi 0, %s54
      %s56 = sphi 0, %s54
      %s57 = sphi 0, %s56
      %s71 = sphi 0, %s57
      %s75 = sphi 0, %s75
      %s77 = sphi 0, %s75
      %s78 = sphi 0, %s77
      %s92 = sphi 0, %s78
      %s96 = sphi 0, %s96
      %s98 = sphi 0, %s96
      %s99 = sphi 0, %s98
      %s113 = sphi 0, %s99
      %s117 = sphi 0, %s117
      %s119 = sphi 0, %s117
      %s120 = sphi 0, %s119
      %s134 = sphi 0, %s120
      %s138 = sphi 0, %s138
      %s140 = sphi 0, %s138
      %s141 = sphi 0, %s140
      %s155 = sphi 0, %s141
      %s159 = sphi 0, %s159
      %s161 = sphi 0, %s159
      %s162 = sphi 0, %s161
      %s176 = sphi 0, %s162
      %s180 = sphi 0, %s180
      %s182 = sphi 0, %s180
      %s183 = sphi 0, %s182
      %s197 = sphi 0, %s183
      %s201 = sphi 0, %s201
      %s203 = sphi 0, %s201
      %s204 = sphi 0, %s203
      %s218 = sphi 0, %s204
      %s222 = sphi 0, %s222
      %s224 = sphi 0, %s222
      %s225 = sphi 0, %s224
      %s239 = sphi 0, %s225
      %s243 = sphi 0, %s243
      %s245 = sphi 0, %s243
      %s246 = sphi 0, %s245
      %s260 = sphi 0, %s246
      %s266 = sphi 0, %s268
      %s269 = sphi 0, %s266
      %s270 = sphi 0, %s269
      %s286 = sphi 0, %s270
    $region4: #{lenet_forward.1} parent=1 // loop_header_branch
      %23 = sbr.rel (%p21) target = $region8
    $region5: #{lenet_forward.1} parent=1 // loop_body
      %s25 = ssub.s32 %s20, 1
      %s26 = ssub.s32 %s20, 2
      %s27 = sadd.s32 %s20, 1
      %s28 = ssub.s32 %s20, %s27
      %p29 = scmp.eq.s32.totalorder %s28, 0
      %s31 = sadd.s32 %s30, 1
      %s32 = scalar_select %p29, %s30, %s31
      %p35 = pneg %p29
      %p36 = scmp.eq.s32.totalorder %s20, 1
      %p37 = por %p35, %p36
      %p38 = scmp.ne.s32.totalorder %s30, %s33
      %p39 = scmp.eq.s32.totalorder %s20, 0
      %p40 = por %p38, %p39
      %p41 = scmp.ne.s32.totalorder %s30, %s33
      %p42 = scmp.eq.s32.totalorder %s25, 1
      %p43 = por %p41, %p42
      %p44 = scmp.ne.s32.totalorder %s33, %s34
      %p45 = scmp.eq.s32.totalorder %s25, 0
      %p46 = por %p44, %p45
      %p47 = scmp.ne.s32.totalorder %s33, %s34
      %p48 = scmp.eq.s32.totalorder %s26, 1
      %p49 = por %p47, %p48
      %p51 = scmp.ne.s32.totalorder %s34, %s50
      %p52 = scmp.eq.s32.totalorder %s26, 0
      %p53 = por %p51, %p52
      %s55 = sadd.s32 %s54, 1
      %p58 = scmp.eq.s32.totalorder %s20, 1
      %p59 = scmp.ne.s32.totalorder %s54, %s56
      %p60 = scmp.eq.s32.totalorder %s20, 0
      %p61 = por %p59, %p60
      %p62 = scmp.ne.s32.totalorder %s54, %s56
      %p63 = scmp.eq.s32.totalorder %s25, 1
      %p64 = por %p62, %p63
      %p65 = scmp.ne.s32.totalorder %s56, %s57
      %p66 = scmp.eq.s32.totalorder %s25, 0
      %p67 = por %p65, %p66
      %p68 = scmp.ne.s32.totalorder %s56, %s57
      %p69 = scmp.eq.s32.totalorder %s26, 1
      %p70 = por %p68, %p69
      %p72 = scmp.ne.s32.totalorder %s57, %s71
      %p73 = scmp.eq.s32.totalorder %s26, 0
      %p74 = por %p72, %p73
      %s76 = sadd.s32 %s75, 1
      %p79 = scmp.eq.s32.totalorder %s20, 1
      %p80 = scmp.ne.s32.totalorder %s75, %s77
      %p81 = scmp.eq.s32.totalorder %s20, 0
      %p82 = por %p80, %p81
      %p83 = scmp.ne.s32.totalorder %s75, %s77
      %p84 = scmp.eq.s32.totalorder %s25, 1
      %p85 = por %p83, %p84
      %p86 = scmp.ne.s32.totalorder %s77, %s78
      %p87 = scmp.eq.s32.totalorder %s25, 0
      %p88 = por %p86, %p87
      %p89 = scmp.ne.s32.totalorder %s77, %s78
      %p90 = scmp.eq.s32.totalorder %s26, 1
      %p91 = por %p89, %p90
      %p93 = scmp.ne.s32.totalorder %s78, %s92
      %p94 = scmp.eq.s32.totalorder %s26, 0
      %p95 = por %p93, %p94
      %s97 = sadd.s32 %s96, 1
      %p100 = scmp.eq.s32.totalorder %s20, 1
      %p101 = scmp.ne.s32.totalorder %s96, %s98
      %p102 = scmp.eq.s32.totalorder %s20, 0
      %p103 = por %p101, %p102
      %p104 = scmp.ne.s32.totalorder %s96, %s98
      %p105 = scmp.eq.s32.totalorder %s25, 1
      %p106 = por %p104, %p105
      %p107 = scmp.ne.s32.totalorder %s98, %s99
      %p108 = scmp.eq.s32.totalorder %s25, 0
      %p109 = por %p107, %p108
      %p110 = scmp.ne.s32.totalorder %s98, %s99
      %p111 = scmp.eq.s32.totalorder %s26, 1
      %p112 = por %p110, %p111
      %p114 = scmp.ne.s32.totalorder %s99, %s113
      %p115 = scmp.eq.s32.totalorder %s26, 0
      %p116 = por %p114, %p115
      %s118 = sadd.s32 %s117, 1
      %p121 = scmp.eq.s32.totalorder %s20, 1
      %p122 = scmp.ne.s32.totalorder %s117, %s119
      %p123 = scmp.eq.s32.totalorder %s20, 0
      %p124 = por %p122, %p123
      %p125 = scmp.ne.s32.totalorder %s117, %s119
      %p126 = scmp.eq.s32.totalorder %s25, 1
      %p127 = por %p125, %p126
      %p128 = scmp.ne.s32.totalorder %s119, %s120
      %p129 = scmp.eq.s32.totalorder %s25, 0
      %p130 = por %p128, %p129
      %p131 = scmp.ne.s32.totalorder %s119, %s120
      %p132 = scmp.eq.s32.totalorder %s26, 1
      %p133 = por %p131, %p132
      %p135 = scmp.ne.s32.totalorder %s120, %s134
      %p136 = scmp.eq.s32.totalorder %s26, 0
      %p137 = por %p135, %p136
      %s139 = sadd.s32 %s138, 1
      %p142 = scmp.eq.s32.totalorder %s20, 1
      %p143 = scmp.ne.s32.totalorder %s138, %s140
      %p144 = scmp.eq.s32.totalorder %s20, 0
      %p145 = por %p143, %p144
      %p146 = scmp.ne.s32.totalorder %s138, %s140
      %p147 = scmp.eq.s32.totalorder %s25, 1
      %p148 = por %p146, %p147
      %p149 = scmp.ne.s32.totalorder %s140, %s141
      %p150 = scmp.eq.s32.totalorder %s25, 0
      %p151 = por %p149, %p150
      %p152 = scmp.ne.s32.totalorder %s140, %s141
      %p153 = scmp.eq.s32.totalorder %s26, 1
      %p154 = por %p152, %p153
      %p156 = scmp.ne.s32.totalorder %s141, %s155
      %p157 = scmp.eq.s32.totalorder %s26, 0
      %p158 = por %p156, %p157
      %s160 = sadd.s32 %s159, 1
      %p163 = scmp.eq.s32.totalorder %s20, 1
      %p164 = scmp.ne.s32.totalorder %s159, %s161
      %p165 = scmp.eq.s32.totalorder %s20, 0
      %p166 = por %p164, %p165
      %p167 = scmp.ne.s32.totalorder %s159, %s161
      %p168 = scmp.eq.s32.totalorder %s25, 1
      %p169 = por %p167, %p168
      %p170 = scmp.ne.s32.totalorder %s161, %s162
      %p171 = scmp.eq.s32.totalorder %s25, 0
      %p172 = por %p170, %p171
      %p173 = scmp.ne.s32.totalorder %s161, %s162
      %p174 = scmp.eq.s32.totalorder %s26, 1
      %p175 = por %p173, %p174
      %p177 = scmp.ne.s32.totalorder %s162, %s176
      %p178 = scmp.eq.s32.totalorder %s26, 0
      %p179 = por %p177, %p178
      %s181 = sadd.s32 %s180, 1
      %p184 = scmp.eq.s32.totalorder %s20, 1
      %p185 = scmp.ne.s32.totalorder %s180, %s182
      %p186 = scmp.eq.s32.totalorder %s20, 0
      %p187 = por %p185, %p186
      %p188 = scmp.ne.s32.totalorder %s180, %s182
      %p189 = scmp.eq.s32.totalorder %s25, 1
      %p190 = por %p188, %p189
      %p191 = scmp.ne.s32.totalorder %s182, %s183
      %p192 = scmp.eq.s32.totalorder %s25, 0
      %p193 = por %p191, %p192
      %p194 = scmp.ne.s32.totalorder %s182, %s183
      %p195 = scmp.eq.s32.totalorder %s26, 1
      %p196 = por %p194, %p195
      %p198 = scmp.ne.s32.totalorder %s183, %s197
      %p199 = scmp.eq.s32.totalorder %s26, 0
      %p200 = por %p198, %p199
      %s202 = sadd.s32 %s201, 1
      %p205 = scmp.eq.s32.totalorder %s20, 1
      %p206 = scmp.ne.s32.totalorder %s201, %s203
      %p207 = scmp.eq.s32.totalorder %s20, 0
      %p208 = por %p206, %p207
      %p209 = scmp.ne.s32.totalorder %s201, %s203
      %p210 = scmp.eq.s32.totalorder %s25, 1
      %p211 = por %p209, %p210
      %p212 = scmp.ne.s32.totalorder %s203, %s204
      %p213 = scmp.eq.s32.totalorder %s25, 0
      %p214 = por %p212, %p213
      %p215 = scmp.ne.s32.totalorder %s203, %s204
      %p216 = scmp.eq.s32.totalorder %s26, 1
      %p217 = por %p215, %p216
      %p219 = scmp.ne.s32.totalorder %s204, %s218
      %p220 = scmp.eq.s32.totalorder %s26, 0
      %p221 = por %p219, %p220
      %s223 = sadd.s32 %s222, 1
      %p226 = scmp.eq.s32.totalorder %s20, 1
      %p227 = scmp.ne.s32.totalorder %s222, %s224
      %p228 = scmp.eq.s32.totalorder %s20, 0
      %p229 = por %p227, %p228
      %p230 = scmp.ne.s32.totalorder %s222, %s224
      %p231 = scmp.eq.s32.totalorder %s25, 1
      %p232 = por %p230, %p231
      %p233 = scmp.ne.s32.totalorder %s224, %s225
      %p234 = scmp.eq.s32.totalorder %s25, 0
      %p235 = por %p233, %p234
      %p236 = scmp.ne.s32.totalorder %s224, %s225
      %p237 = scmp.eq.s32.totalorder %s26, 1
      %p238 = por %p236, %p237
      %p240 = scmp.ne.s32.totalorder %s225, %s239
      %p241 = scmp.eq.s32.totalorder %s26, 0
      %p242 = por %p240, %p241
      %s244 = sadd.s32 %s243, 1
      %p247 = scmp.eq.s32.totalorder %s20, 1
      %p248 = scmp.ne.s32.totalorder %s243, %s245
      %p249 = scmp.eq.s32.totalorder %s20, 0
      %p250 = por %p248, %p249
      %p251 = scmp.ne.s32.totalorder %s243, %s245
      %p252 = scmp.eq.s32.totalorder %s25, 1
      %p253 = por %p251, %p252
      %p254 = scmp.ne.s32.totalorder %s245, %s246
      %p255 = scmp.eq.s32.totalorder %s25, 0
      %p256 = por %p254, %p255
      %p257 = scmp.ne.s32.totalorder %s245, %s246
      %p258 = scmp.eq.s32.totalorder %s26, 1
      %p259 = por %p257, %p258
      %p261 = scmp.ne.s32.totalorder %s246, %s260
      %p262 = scmp.eq.s32.totalorder %s26, 0
      %p263 = por %p261, %p262
      %s264 = ssub.s32 %s20, %s27
      %p265 = scmp.eq.s32.totalorder %s264, 0
      %s267 = sadd.s32 %s266, 1
      %s268 = scalar_select %p265, %s266, %s267
      %p271 = pneg %p265
      %p272 = scmp.eq.s32.totalorder %s20, 1
      %p273 = por %p271, %p272
      %p274 = scmp.ne.s32.totalorder %s266, %s269
      %p275 = scmp.eq.s32.totalorder %s20, 0
      %p276 = por %p274, %p275
      %p277 = scmp.ne.s32.totalorder %s266, %s269
      %p278 = scmp.eq.s32.totalorder %s25, 1
      %p279 = por %p277, %p278
      %p280 = scmp.ne.s32.totalorder %s269, %s270
      %p281 = scmp.eq.s32.totalorder %s25, 0
      %p282 = por %p280, %p281
      %p283 = scmp.ne.s32.totalorder %s269, %s270
      %p284 = scmp.eq.s32.totalorder %s26, 1
      %p285 = por %p283, %p284
      %p287 = scmp.ne.s32.totalorder %s270, %s286
      %p288 = scmp.eq.s32.totalorder %s26, 0
      %p289 = por %p287, %p288
      %p290 = scmp.le.s32.totalorder 1, %s20
      %p291 = scmp.lt.s32.totalorder %s20, 3
      %p292 = pnand %p290, %p291
      %p293 = pneg %p292
      // Predicated region
      $region9: #{lenet_forward.1} parent=5 // pred_check
        _
      $region10: #{lenet_forward.1} parent=5 // pred_check_branch
        %295 = sbr.rel (%p292) target = $region12
      $region11: #{lenet_forward.1} parent=5 // pred_region
        %s296 = ssub.s32 %s20, 1
        // Predicated region
        $region13: #{lenet_forward.1} parent=11 // pred_check
          %p297 = pneg %p67
        $region14: #{lenet_forward.1} parent=11 // pred_check_branch
          %299 = sbr.rel (%p297) target = $region16
        $region15: #{lenet_forward.1} parent=11 // pred_region
          _
        $region16: #{lenet_forward.1} parent=11 // pred_fallthru
          _
        // Predicated region
        $region17: #{lenet_forward.1} parent=11 // pred_check
          %p300 = pneg %p88
        $region18: #{lenet_forward.1} parent=11 // pred_check_branch
          %302 = sbr.rel (%p300) target = $region20
        $region19: #{lenet_forward.1} parent=11 // pred_region
          _
        $region20: #{lenet_forward.1} parent=11 // pred_fallthru
          _
        // Predicated region
        $region21: #{lenet_forward.1} parent=11 // pred_check
          %p303 = pneg %p109
        $region22: #{lenet_forward.1} parent=11 // pred_check_branch
          %305 = sbr.rel (%p303) target = $region24
        $region23: #{lenet_forward.1} parent=11 // pred_region
          _
        $region24: #{lenet_forward.1} parent=11 // pred_fallthru
          _
        // Predicated region
        $region25: #{lenet_forward.1} parent=11 // pred_check
          %p306 = pneg %p130
        $region26: #{lenet_forward.1} parent=11 // pred_check_branch
          %308 = sbr.rel (%p306) target = $region28
        $region27: #{lenet_forward.1} parent=11 // pred_region
          _
        $region28: #{lenet_forward.1} parent=11 // pred_fallthru
          _
        // Predicated region
        $region29: #{lenet_forward.1} parent=11 // pred_check
          %p309 = pneg %p151
        $region30: #{lenet_forward.1} parent=11 // pred_check_branch
          %311 = sbr.rel (%p309) target = $region32
        $region31: #{lenet_forward.1} parent=11 // pred_region
          _
        $region32: #{lenet_forward.1} parent=11 // pred_fallthru
          _
        // Predicated region
        $region33: #{lenet_forward.1} parent=11 // pred_check
          %p312 = pneg %p172
        $region34: #{lenet_forward.1} parent=11 // pred_check_branch
          %314 = sbr.rel (%p312) target = $region36
        $region35: #{lenet_forward.1} parent=11 // pred_region
          _
        $region36: #{lenet_forward.1} parent=11 // pred_fallthru
          _
        // Predicated region
        $region37: #{lenet_forward.1} parent=11 // pred_check
          %p315 = pneg %p193
        $region38: #{lenet_forward.1} parent=11 // pred_check_branch
          %317 = sbr.rel (%p315) target = $region40
        $region39: #{lenet_forward.1} parent=11 // pred_region
          _
        $region40: #{lenet_forward.1} parent=11 // pred_fallthru
          _
        // Predicated region
        $region41: #{lenet_forward.1} parent=11 // pred_check
          %p318 = pneg %p214
        $region42: #{lenet_forward.1} parent=11 // pred_check_branch
          %320 = sbr.rel (%p318) target = $region44
        $region43: #{lenet_forward.1} parent=11 // pred_region
          _
        $region44: #{lenet_forward.1} parent=11 // pred_fallthru
          _
        // Predicated region
        $region45: #{lenet_forward.1} parent=11 // pred_check
          %p321 = pneg %p235
        $region46: #{lenet_forward.1} parent=11 // pred_check_branch
          %323 = sbr.rel (%p321) target = $region48
        $region47: #{lenet_forward.1} parent=11 // pred_region
          _
        $region48: #{lenet_forward.1} parent=11 // pred_fallthru
          _
        // Predicated region
        $region49: #{lenet_forward.1} parent=11 // pred_check
          %p324 = pneg %p256
        $region50: #{lenet_forward.1} parent=11 // pred_check_branch
          %326 = sbr.rel (%p324) target = $region52
        $region51: #{lenet_forward.1} parent=11 // pred_region
          _
        $region52: #{lenet_forward.1} parent=11 // pred_fallthru
          _
      $region12: #{lenet_forward.1} parent=5 // pred_fallthru
        _
      %p327 = scmp.lt.s32.totalorder %s20, 2
      // Predicated region
      $region53: #{lenet_forward.1} parent=5 // pred_check
        %p328 = pneg %p327
      $region54: #{lenet_forward.1} parent=5 // pred_check_branch
        %330 = sbr.rel (%p328) target = $region56
      $region55: #{lenet_forward.1} parent=5 // pred_region
        // Predicated region
        $region57: #{lenet_forward.1} parent=55 // pred_check
          %p331 = pneg %p40
        $region58: #{lenet_forward.1} parent=55 // pred_check_branch
          %333 = sbr.rel (%p331) target = $region60
        $region59: #{lenet_forward.1} parent=55 // pred_region
          %p334 = scmp.lt.s32.totalorder %s20, 1
          %s335 = scalar_select %p334, %s20, 1
          %s336 = smul.addr %s335, 4
          %s337 = smul.addr %s336, 8
          %s338 = scalar_lea.vmem %s0, %s337
        $region60: #{lenet_forward.1} parent=55 // pred_fallthru
          _
      $region56: #{lenet_forward.1} parent=5 // pred_fallthru
        _
      %p339 = scmp.le.s32.totalorder 1, %s20
      %p340 = scmp.lt.s32.totalorder %s20, 3
      %p341 = pnand %p339, %p340
      %p342 = pneg %p341
      // Predicated region
      $region61: #{lenet_forward.1} parent=5 // pred_check
        _
      $region62: #{lenet_forward.1} parent=5 // pred_check_branch
        %344 = sbr.rel (%p341) target = $region64
      $region63: #{lenet_forward.1} parent=5 // pred_region
        %s345 = ssub.s32 %s20, 1
        %p346 = scmp.lt.s32.totalorder %s25, 1
        %s347 = scalar_select %p346, %s25, 1
        %s348 = smul.addr %s347, 4
        %s349 = smul.addr %s348, 8
        %s350 = scalar_lea.vmem %s0, %s349
        %p351 = pneg %p46
        %p352 = pneg %p43
        %p353 = pneg %p67
        %p354 = pneg %p64
        %p355 = pneg %p88
        %p356 = pneg %p85
        %p357 = pneg %p109
        %p358 = pneg %p106
        %p359 = pneg %p130
        %p360 = pneg %p127
        %p361 = pneg %p151
        %p362 = pneg %p148
        %p363 = pneg %p172
        %p364 = pneg %p169
        %p365 = pneg %p193
        %p366 = pneg %p190
        %p367 = pneg %p214
        %p368 = pneg %p211
        %p369 = pneg %p235
        %p370 = pneg %p232
        %p371 = pneg %p256
        %p372 = pneg %p253
        %p373 = pneg %p282
        %p374 = pneg %p279
        %s375 = sand.u32 %s269, 1
        %s376 = scalar_lea.sflag [#allocation9], %s375
        %s377 = sand.u32 %s269, 1
        %s378 = scalar_lea.vmem [#allocation8], %s377
        %p379 = scmp.lt.s32.totalorder %s25, 1
        %s380 = scalar_select %p379, %s25, 1
        %s381 = smul.addr %s380, 4
        %s382 = smul.addr %s381, 8
        %s383 = scalar_lea.vmem %s0, %s382
        %v385 = vld [vmem:[%s383] sm:$0xff]
        %v386 = vld [vmem:[%s383 + $0x8] sm:$0xff]
        %v387 = vld [vmem:[%s383 + $0x10] sm:$0xff]
        %v388 = vld [vmem:[%s1] sm:$0xff]
        %v389 = vld [vmem:[%s1 + $0x8] sm:$0xff]
        %v390 = vld [vmem:[%s1 + $0x10] sm:$0xff]
        %v391 = vld [vmem:[%s1 + $0x18] sm:$0xf]
        %s392 = scalar_lea.vmem %s1, 32
        %v393 = vld [vmem:[%s392] sm:$0xff]
        %v394 = vld [vmem:[%s392 + $0x8] sm:$0xff]
        %v395 = vld [vmem:[%s392 + $0x10] sm:$0xff]
        %v396 = vld [vmem:[%s392 + $0x18] sm:$0xf]
        %v397 = vld [vmem:[%s383 + $0x1] sm:$0xff]
        %v398 = vld [vmem:[%s383 + $0x9] sm:$0xff]
        %v399 = vld [vmem:[%s383 + $0x11] sm:$0xff]
        %s400 = scalar_lea.vmem %s1, 64
        %v401 = vld [vmem:[%s400] sm:$0xff]
        %v402 = vld [vmem:[%s400 + $0x8] sm:$0xff]
        %v403 = vld [vmem:[%s400 + $0x10] sm:$0xff]
        %v404 = vld [vmem:[%s400 + $0x18] sm:$0xf]
        %vm405 = vcmask 228352
        %v407 = vsel %vm405, %v397, 0
        %v410 = vsel %vm405, %v398, 0
        %v413 = vsel %vm405, %v399, 0
        %vm415 = vcmask 1043456
        %v417 = vsel %vm415, %v404, 0
        %419 = vmatprep.subr.mxu0 0.0
        %420 = vmatpush1.msra.mxu0 %v401
        %421 = vmatprep.subr.mxu0 0.0
        %422 = vmatpush1.msra.mxu0 %v402
        %423 = vmatprep.subr.mxu0 0.0
        %424 = vmatpush1.msra.mxu0 %v403
        %425 = vmatprep.subr.mxu0 0.0
        %426 = vmatpush1.msra.mxu0 %v417
        %427 = vmatprep.subr.mxu0 0.0
        %428 = vmatpush1.msra.mxu0 0.0
        %429 = vmatprep.subr.mxu0 0.0
        %430 = vmatpush1.msra.mxu0 0.0
        %431 = vmatprep.subr.mxu0 0.0
        %432 = vmatpush1.msra.mxu0 0.0
        %433 = vmatprep.subr.mxu0 0.0
        %434 = vmatpush1.msra.mxu0 0.0
        %435 = vmatprep.subr.mxu0 0.0
        %436 = vmatpush1.msra.mxu0 0.0
        %437 = vmatprep.subr.mxu0 0.0
        %438 = vmatpush1.msra.mxu0 0.0
        %439 = vmatprep.subr.mxu0 0.0
        %440 = vmatpush1.msra.mxu0 0.0
        %441 = vmatprep.subr.mxu0 0.0
        %442 = vmatpush1.msra.mxu0 0.0
        %443 = vmatprep.subr.mxu0 0.0
        %444 = vmatpush1.msra.mxu0 0.0
        %445 = vmatprep.subr.mxu0 0.0
        %446 = vmatpush1.msra.mxu0 0.0
        %447 = vmatprep.subr.mxu0 0.0
        %448 = vmatpush1.msra.mxu0 0.0
        %449 = vmatprep.subr.mxu0 0.0
        %450 = vmatpush1.msra.mxu0 0.0
        %451 = vmatprep.subr.mxu0 0.0
        %452 = vmatpush1.msra.mxu0 0.0
        %453 = vmatprep.subr.mxu0 0.0
        %454 = vmatpush1.msra.mxu0 0.0
        %455 = vmatprep.subr.mxu0 0.0
        %456 = vmatpush1.msra.mxu0 0.0
        %457 = vmatprep.subr.mxu0 0.0
        %458 = vmatpush1.msra.mxu0 0.0
        %459 = vmatprep.subr.mxu0 0.0
        %460 = vmatpush1.msra.mxu0 0.0
        %461 = vmatprep.subr.mxu0 0.0
        %462 = vmatpush1.msra.mxu0 0.0
        %463 = vmatprep.subr.mxu0 0.0
        %464 = vmatpush1.msra.mxu0 0.0
        %465 = vmatprep.subr.mxu0 0.0
        %466 = vmatpush1.msra.mxu0 0.0
        %467 = vmatprep.subr.mxu0 0.0
        %468 = vmatpush1.msra.mxu0 0.0
        %469 = vmatprep.subr.mxu0 0.0
        %470 = vmatpush1.msra.mxu0 0.0
        %471 = vmatprep.subr.mxu0 0.0
        %472 = vmatpush1.msra.mxu0 0.0
        %473 = vmatprep.subr.mxu0 0.0
        %474 = vmatpush1.msra.mxu0 0.0
        %475 = vmatprep.subr.mxu0 0.0
        %476 = vmatpush1.msra.mxu0 0.0
        %477 = vmatprep.subr.mxu0 0.0
        %478 = vmatpush1.msra.mxu0 0.0
        %479 = vmatprep.subr.mxu0 0.0
        %480 = vmatpush1.msra.mxu0 0.0
        %481 = vmatprep.subr.mxu0 0.0
        %482 = vmatpush1.msra.mxu0 0.0
        %483 = vmatprep.mubr.f32.mxu0 0.0
        %484 = vmatmul.mubr.f32.gmra.mrb[0].mxu0 %v407
        %v485 = vpop.f32.mrb[0].mxu0
        %v486 = vadd.f32 0.0, %v485
        %v487 = vpop.f32.mrb[0].mxu0
        %488 = vmatprep.mubr.f32.mxu0 0.0
        %489 = vmatmul.mubr.f32.gmra.mrb[0].mxu0 %v410
        %v490 = vpop.f32.mrb[0].mxu0
        %v491 = vadd.f32 0.0, %v490
        %v492 = vpop.f32.mrb[0].mxu0
        %493 = vmatprep.mubr.f32.mxu0 0.0
        %494 = vmatmul.mubr.f32.gmra.mrb[0].mxu0 %v413
        %v495 = vpop.f32.mrb[0].mxu0
        %v496 = vadd.f32 0.0, %v495
        %v497 = vpop.f32.mrb[0].mxu0
        %498 = vdwg.mxu0
        %v500 = vsel %vm405, %v385, 0
        %v503 = vsel %vm405, %v386, 0
        %v506 = vsel %vm405, %v387, 0
        %v509 = vsel %vm415, %v391, 0
        %511 = vmatprep.subr.mxu0 0.0
        %512 = vmatpush1.msra.mxu0 %v388
        %513 = vmatprep.subr.mxu0 0.0
        %514 = vmatpush1.msra.mxu0 %v389
        %515 = vmatprep.subr.mxu0 0.0
        %516 = vmatpush1.msra.mxu0 %v390
        %517 = vmatprep.subr.mxu0 0.0
        %518 = vmatpush1.msra.mxu0 %v509
        %519 = vmatprep.subr.mxu0 0.0
        %520 = vmatpush1.msra.mxu0 0.0
        %521 = vmatprep.subr.mxu0 0.0
        %522 = vmatpush1.msra.mxu0 0.0
        %523 = vmatprep.subr.mxu0 0.0
        %524 = vmatpush1.msra.mxu0 0.0
        %525 = vmatprep.subr.mxu0 0.0
        %526 = vmatpush1.msra.mxu0 0.0
        %527 = vmatprep.subr.mxu0 0.0
        %528 = vmatpush1.msra.mxu0 0.0
        %529 = vmatprep.subr.mxu0 0.0
        %530 = vmatpush1.msra.mxu0 0.0
        %531 = vmatprep.subr.mxu0 0.0
        %532 = vmatpush1.msra.mxu0 0.0
        %533 = vmatprep.subr.mxu0 0.0
        %534 = vmatpush1.msra.mxu0 0.0
        %535 = vmatprep.subr.mxu0 0.0
        %536 = vmatpush1.msra.mxu0 0.0
        %537 = vmatprep.subr.mxu0 0.0
        %538 = vmatpush1.msra.mxu0 0.0
        %539 = vmatprep.subr.mxu0 0.0
        %540 = vmatpush1.msra.mxu0 0.0
        %541 = vmatprep.subr.mxu0 0.0
        %542 = vmatpush1.msra.mxu0 0.0
        %543 = vmatprep.subr.mxu0 0.0
        %544 = vmatpush1.msra.mxu0 0.0
        %545 = vmatprep.subr.mxu0 0.0
        %546 = vmatpush1.msra.mxu0 0.0
        %547 = vmatprep.subr.mxu0 0.0
        %548 = vmatpush1.msra.mxu0 0.0
        %549 = vmatprep.subr.mxu0 0.0
        %550 = vmatpush1.msra.mxu0 0.0
        %551 = vmatprep.subr.mxu0 0.0
        %552 = vmatpush1.msra.mxu0 0.0
        %553 = vmatprep.subr.mxu0 0.0
        %554 = vmatpush1.msra.mxu0 0.0
        %555 = vmatprep.subr.mxu0 0.0
        %556 = vmatpush1.msra.mxu0 0.0
        %557 = vmatprep.subr.mxu0 0.0
        %558 = vmatpush1.msra.mxu0 0.0
        %559 = vmatprep.subr.mxu0 0.0
        %560 = vmatpush1.msra.mxu0 0.0
        %561 = vmatprep.subr.mxu0 0.0
        %562 = vmatpush1.msra.mxu0 0.0
        %563 = vmatprep.subr.mxu0 0.0
        %564 = vmatpush1.msra.mxu0 0.0
        %565 = vmatprep.subr.mxu0 0.0
        %566 = vmatpush1.msra.mxu0 0.0
        %567 = vmatprep.subr.mxu0 0.0
        %568 = vmatpush1.msra.mxu0 0.0
        %569 = vmatprep.subr.mxu0 0.0
        %570 = vmatpush1.msra.mxu0 0.0
        %571 = vmatprep.subr.mxu0 0.0
        %572 = vmatpush1.msra.mxu0 0.0
        %573 = vmatprep.subr.mxu0 0.0
        %574 = vmatpush1.msra.mxu0 0.0
        %575 = vmatprep.mubr.f32.mxu0 0.0
        %576 = vmatmul.mubr.f32.gmra.mrb[0].mxu0 %v500
        %v577 = vpop.f32.mrb[0].mxu0
        %v578 = vadd.f32 %v486, %v577
        %v579 = vpop.f32.mrb[0].mxu0
        %580 = vmatprep.mubr.f32.mxu0 0.0
        %581 = vmatmul.mubr.f32.gmra.mrb[0].mxu0 %v503
        %v582 = vpop.f32.mrb[0].mxu0
        %v583 = vadd.f32 %v491, %v582
        %v584 = vpop.f32.mrb[0].mxu0
        %585 = vmatprep.mubr.f32.mxu0 0.0
        %586 = vmatmul.mubr.f32.gmra.mrb[0].mxu0 %v506
        %v587 = vpop.f32.mrb[0].mxu0
        %v588 = vadd.f32 %v496, %v587
        %v589 = vpop.f32.mrb[0].mxu0
        %590 = vdwg.mxu0
        %s591 = scalar_lea.vmem %s1, 96
        %v592 = vld [vmem:[%s591] sm:$0xff]
        %v593 = vld [vmem:[%s591 + $0x8] sm:$0xff]
        %v594 = vld [vmem:[%s591 + $0x10] sm:$0xff]
        %v595 = vld [vmem:[%s591 + $0x18] sm:$0xf]
        %v597 = vsel %vm415, %v595, 0
        %599 = vmatprep.subr.mxu0 0.0
        %600 = vmatpush1.msra.mxu0 %v592
        %601 = vmatprep.subr.mxu0 0.0
        %602 = vmatpush1.msra.mxu0 %v593
        %603 = vmatprep.subr.mxu0 0.0
        %604 = vmatpush1.msra.mxu0 %v594
        %605 = vmatprep.subr.mxu0 0.0
        %606 = vmatpush1.msra.mxu0 %v597
        %607 = vmatprep.subr.mxu0 0.0
        %608 = vmatpush1.msra.mxu0 0.0
        %609 = vmatprep.subr.mxu0 0.0
        %610 = vmatpush1.msra.mxu0 0.0
        %611 = vmatprep.subr.mxu0 0.0
        %612 = vmatpush1.msra.mxu0 0.0
        %613 = vmatprep.subr.mxu0 0.0
        %614 = vmatpush1.msra.mxu0 0.0
        %615 = vmatprep.subr.mxu0 0.0
        %616 = vmatpush1.msra.mxu0 0.0
        %617 = vmatprep.subr.mxu0 0.0
        %618 = vmatpush1.msra.mxu0 0.0
        %619 = vmatprep.subr.mxu0 0.0
        %620 = vmatpush1.msra.mxu0 0.0
        %621 = vmatprep.subr.mxu0 0.0
        %622 = vmatpush1.msra.mxu0 0.0
        %623 = vmatprep.subr.mxu0 0.0
        %624 = vmatpush1.msra.mxu0 0.0
        %625 = vmatprep.subr.mxu0 0.0
        %626 = vmatpush1.msra.mxu0 0.0
        %627 = vmatprep.subr.mxu0 0.0
        %628 = vmatpush1.msra.mxu0 0.0
        %629 = vmatprep.subr.mxu0 0.0
        %630 = vmatpush1.msra.mxu0 0.0
        %631 = vmatprep.subr.mxu0 0.0
        %632 = vmatpush1.msra.mxu0 0.0
        %633 = vmatprep.subr.mxu0 0.0
        %634 = vmatpush1.msra.mxu0 0.0
        %635 = vmatprep.subr.mxu0 0.0
        %636 = vmatpush1.msra.mxu0 0.0
        %637 = vmatprep.subr.mxu0 0.0
        %638 = vmatpush1.msra.mxu0 0.0
        %639 = vmatprep.subr.mxu0 0.0
        %640 = vmatpush1.msra.mxu0 0.0
        %641 = vmatprep.subr.mxu0 0.0
        %642 = vmatpush1.msra.mxu0 0.0
        %643 = vmatprep.subr.mxu0 0.0
        %644 = vmatpush1.msra.mxu0 0.0
        %645 = vmatprep.subr.mxu0 0.0
        %646 = vmatpush1.msra.mxu0 0.0
        %647 = vmatprep.subr.mxu0 0.0
        %648 = vmatpush1.msra.mxu0 0.0
        %649 = vmatprep.subr.mxu0 0.0
        %650 = vmatpush1.msra.mxu0 0.0
        %651 = vmatprep.subr.mxu0 0.0
        %652 = vmatpush1.msra.mxu0 0.0
        %653 = vmatprep.subr.mxu0 0.0
        %654 = vmatpush1.msra.mxu0 0.0
        %655 = vmatprep.subr.mxu0 0.0
        %656 = vmatpush1.msra.mxu0 0.0
        %657 = vmatprep.subr.mxu0 0.0
        %658 = vmatpush1.msra.mxu0 0.0
        %659 = vmatprep.subr.mxu0 0.0
        %660 = vmatpush1.msra.mxu0 0.0
        %661 = vmatprep.subr.mxu0 0.0
        %662 = vmatpush1.msra.mxu0 0.0
        %663 = vmatprep.mubr.f32.mxu0 0.0
        %664 = vmatmul.mubr.f32.gmra.mrb[0].mxu0 %v407
        %v665 = vpop.f32.mrb[0].mxu0
        %v666 = vadd.f32 0.0, %v665
        %v667 = vpop.f32.mrb[0].mxu0
        %668 = vmatprep.mubr.f32.mxu0 0.0
        %669 = vmatmul.mubr.f32.gmra.mrb[0].mxu0 %v410
        %v670 = vpop.f32.mrb[0].mxu0
        %v671 = vadd.f32 0.0, %v670
        %v672 = vpop.f32.mrb[0].mxu0
        %673 = vmatprep.mubr.f32.mxu0 0.0
        %674 = vmatmul.mubr.f32.gmra.mrb[0].mxu0 %v413
        %v675 = vpop.f32.mrb[0].mxu0
        %v676 = vadd.f32 0.0, %v675
        %v677 = vpop.f32.mrb[0].mxu0
        %678 = vdwg.mxu0
        %v680 = vsel %vm415, %v396, 0
        %682 = vmatprep.subr.mxu0 0.0
        %683 = vmatpush1.msra.mxu0 %v393
        %684 = vmatprep.subr.mxu0 0.0
        %685 = vmatpush1.msra.mxu0 %v394
        %686 = vmatprep.subr.mxu0 0.0
        %687 = vmatpush1.msra.mxu0 %v395
        %688 = vmatprep.subr.mxu0 0.0
        %689 = vmatpush1.msra.mxu0 %v680
        %690 = vmatprep.subr.mxu0 0.0
        %691 = vmatpush1.msra.mxu0 0.0
        %692 = vmatprep.subr.mxu0 0.0
        %693 = vmatpush1.msra.mxu0 0.0
        %694 = vmatprep.subr.mxu0 0.0
        %695 = vmatpush1.msra.mxu0 0.0
        %696 = vmatprep.subr.mxu0 0.0
        %697 = vmatpush1.msra.mxu0 0.0
        %698 = vmatprep.subr.mxu0 0.0
        %699 = vmatpush1.msra.mxu0 0.0
        %700 = vmatprep.subr.mxu0 0.0
        %701 = vmatpush1.msra.mxu0 0.0
        %702 = vmatprep.subr.mxu0 0.0
        %703 = vmatpush1.msra.mxu0 0.0
        %704 = vmatprep.subr.mxu0 0.0
        %705 = vmatpush1.msra.mxu0 0.0
        %706 = vmatprep.subr.mxu0 0.0
        %707 = vmatpush1.msra.mxu0 0.0
        %708 = vmatprep.subr.mxu0 0.0
        %709 = vmatpush1.msra.mxu0 0.0
        %710 = vmatprep.subr.mxu0 0.0
        %711 = vmatpush1.msra.mxu0 0.0
        %712 = vmatprep.subr.mxu0 0.0
        %713 = vmatpush1.msra.mxu0 0.0
        %714 = vmatprep.subr.mxu0 0.0
        %715 = vmatpush1.msra.mxu0 0.0
        %716 = vmatprep.subr.mxu0 0.0
        %717 = vmatpush1.msra.mxu0 0.0
        %718 = vmatprep.subr.mxu0 0.0
        %719 = vmatpush1.msra.mxu0 0.0
        %720 = vmatprep.subr.mxu0 0.0
        %721 = vmatpush1.msra.mxu0 0.0
        %722 = vmatprep.subr.mxu0 0.0
        %723 = vmatpush1.msra.mxu0 0.0
        %724 = vmatprep.subr.mxu0 0.0
        %725 = vmatpush1.msra.mxu0 0.0
        %726 = vmatprep.subr.mxu0 0.0
        %727 = vmatpush1.msra.mxu0 0.0
        %728 = vmatprep.subr.mxu0 0.0
        %729 = vmatpush1.msra.mxu0 0.0
        %730 = vmatprep.subr.mxu0 0.0
        %731 = vmatpush1.msra.mxu0 0.0
        %732 = vmatprep.subr.mxu0 0.0
        %733 = vmatpush1.msra.mxu0 0.0
        %734 = vmatprep.subr.mxu0 0.0
        %735 = vmatpush1.msra.mxu0 0.0
        %736 = vmatprep.subr.mxu0 0.0
        %737 = vmatpush1.msra.mxu0 0.0
        %738 = vmatprep.subr.mxu0 0.0
        %739 = vmatpush1.msra.mxu0 0.0
        %740 = vmatprep.subr.mxu0 0.0
        %741 = vmatpush1.msra.mxu0 0.0
        %742 = vmatprep.subr.mxu0 0.0
        %743 = vmatpush1.msra.mxu0 0.0
        %744 = vmatprep.subr.mxu0 0.0
        %745 = vmatpush1.msra.mxu0 0.0
        %746 = vmatprep.mubr.f32.mxu0 0.0
        %747 = vmatmul.mubr.f32.gmra.mrb[0].mxu0 %v500
        %v748 = vpop.f32.mrb[0].mxu0
        %v749 = vadd.f32 %v666, %v748
        %v750 = vpop.f32.mrb[0].mxu0
        %751 = vmatprep.mubr.f32.mxu0 0.0
        %752 = vmatmul.mubr.f32.gmra.mrb[0].mxu0 %v503
        %v753 = vpop.f32.mrb[0].mxu0
        %v754 = vadd.f32 %v671, %v753
        %v755 = vpop.f32.mrb[0].mxu0
        %756 = vmatprep.mubr.f32.mxu0 0.0
        %757 = vmatmul.mubr.f32.gmra.mrb[0].mxu0 %v506
        %v758 = vpop.f32.mrb[0].mxu0
        %v759 = vadd.f32 %v676, %v758
        %v760 = vpop.f32.mrb[0].mxu0
        %761 = vdwg.mxu0
        %v762 = vld [vmem:[%s383 + $0x2] sm:$0xff]
        %v763 = vld [vmem:[%s383 + $0xa] sm:$0xff]
        %v764 = vld [vmem:[%s383 + $0x12] sm:$0xff]
        %s765 = scalar_lea.vmem %s1, 128
        %v766 = vld [vmem:[%s765] sm:$0xff]
        %v767 = vld [vmem:[%s765 + $0x8] sm:$0xff]
        %v768 = vld [vmem:[%s765 + $0x10] sm:$0xff]
        %v769 = vld [vmem:[%s765 + $0x18] sm:$0xf]
        %v771 = vsel %vm405, %v762, 0
        %v774 = vsel %vm405, %v763, 0
        %v777 = vsel %vm405, %v764, 0
        %v780 = vsel %vm415, %v769, 0
        %782 = vmatprep.subr.mxu0 0.0
        %783 = vmatpush1.msra.mxu0 %v766
        %784 = vmatprep.subr.mxu0 0.0
        %785 = vmatpush1.msra.mxu0 %v767
        %786 = vmatprep.subr.mxu0 0.0
        %787 = vmatpush1.msra.mxu0 %v768
        %788 = vmatprep.subr.mxu0 0.0
        %789 = vmatpush1.msra.mxu0 %v780
        %790 = vmatprep.subr.mxu0 0.0
        %791 = vmatpush1.msra.mxu0 0.0
        %792 = vmatprep.subr.mxu0 0.0
        %793 = vmatpush1.msra.mxu0 0.0
        %794 = vmatprep.subr.mxu0 0.0
        %795 = vmatpush1.msra.mxu0 0.0
        %796 = vmatprep.subr.mxu0 0.0
        %797 = vmatpush1.msra.mxu0 0.0
        %798 = vmatprep.subr.mxu0 0.0
        %799 = vmatpush1.msra.mxu0 0.0
        %800 = vmatprep.subr.mxu0 0.0
        %801 = vmatpush1.msra.mxu0 0.0
        %802 = vmatprep.subr.mxu0 0.0
        %803 = vmatpush1.msra.mxu0 0.0
        %804 = vmatprep.subr.mxu0 0.0
        %805 = vmatpush1.msra.mxu0 0.0
        %806 = vmatprep.subr.mxu0 0.0
        %807 = vmatpush1.msra.mxu0 0.0
        %808 = vmatprep.subr.mxu0 0.0
        %809 = vmatpush1.msra.mxu0 0.0
        %810 = vmatprep.subr.mxu0 0.0
        %811 = vmatpush1.msra.mxu0 0.0
        %812 = vmatprep.subr.mxu0 0.0
        %813 = vmatpush1.msra.mxu0 0.0
        %814 = vmatprep.subr.mxu0 0.0
        %815 = vmatpush1.msra.mxu0 0.0
        %816 = vmatprep.subr.mxu0 0.0
        %817 = vmatpush1.msra.mxu0 0.0
        %818 = vmatprep.subr.mxu0 0.0
        %819 = vmatpush1.msra.mxu0 0.0
        %820 = vmatprep.subr.mxu0 0.0
        %821 = vmatpush1.msra.mxu0 0.0
        %822 = vmatprep.subr.mxu0 0.0
        %823 = vmatpush1.msra.mxu0 0.0
        %824 = vmatprep.subr.mxu0 0.0
        %825 = vmatpush1.msra.mxu0 0.0
        %826 = vmatprep.subr.mxu0 0.0
        %827 = vmatpush1.msra.mxu0 0.0
        %828 = vmatprep.subr.mxu0 0.0
        %829 = vmatpush1.msra.mxu0 0.0
        %830 = vmatprep.subr.mxu0 0.0
        %831 = vmatpush1.msra.mxu0 0.0
        %832 = vmatprep.subr.mxu0 0.0
        %833 = vmatpush1.msra.mxu0 0.0
        %834 = vmatprep.subr.mxu0 0.0
        %835 = vmatpush1.msra.mxu0 0.0
        %836 = vmatprep.subr.mxu0 0.0
        %837 = vmatpush1.msra.mxu0 0.0
        %838 = vmatprep.subr.mxu0 0.0
        %839 = vmatpush1.msra.mxu0 0.0
        %840 = vmatprep.subr.mxu0 0.0
        %841 = vmatpush1.msra.mxu0 0.0
        %842 = vmatprep.subr.mxu0 0.0
        %843 = vmatpush1.msra.mxu0 0.0
        %844 = vmatprep.subr.mxu0 0.0
        %845 = vmatpush1.msra.mxu0 0.0
        %846 = vmatprep.mubr.f32.mxu0 0.0
        %847 = vmatmul.mubr.f32.gmra.mrb[0].mxu0 %v771
        %v848 = vpop.f32.mrb[0].mxu0
        %v849 = vadd.f32 0.0, %v848
        %v850 = vpop.f32.mrb[0].mxu0
        %851 = vmatprep.mubr.f32.mxu0 0.0
        %852 = vmatmul.mubr.f32.gmra.mrb[0].mxu0 %v774
        %v853 = vpop.f32.mrb[0].mxu0
        %v854 = vadd.f32 0.0, %v853
        %v855 = vpop.f32.mrb[0].mxu0
        %856 = vmatprep.mubr.f32.mxu0 0.0
        %857 = vmatmul.mubr.f32.gmra.mrb[0].mxu0 %v777
        %v858 = vpop.f32.mrb[0].mxu0
        %v859 = vadd.f32 0.0, %v858
        %v860 = vpop.f32.mrb[0].mxu0
        %861 = vdwg.mxu0
        %v862 = vadd.f32 %v578, %v849
        %v863 = vadd.f32 %v583, %v854
        %v864 = vadd.f32 %v588, %v859
        %s865 = scalar_lea.vmem %s1, 160
        %v866 = vld [vmem:[%s865] sm:$0xff]
        %v867 = vld [vmem:[%s865 + $0x8] sm:$0xff]
        %v868 = vld [vmem:[%s865 + $0x10] sm:$0xff]
        %v869 = vld [vmem:[%s865 + $0x18] sm:$0xf]
        %v871 = vsel %vm415, %v869, 0
        %873 = vmatprep.subr.mxu0 0.0
        %874 = vmatpush1.msra.mxu0 %v866
        %875 = vmatprep.subr.mxu0 0.0
        %876 = vmatpush1.msra.mxu0 %v867
        %877 = vmatprep.subr.mxu0 0.0
        %878 = vmatpush1.msra.mxu0 %v868
        %879 = vmatprep.subr.mxu0 0.0
        %880 = vmatpush1.msra.mxu0 %v871
        %881 = vmatprep.subr.mxu0 0.0
        %882 = vmatpush1.msra.mxu0 0.0
        %883 = vmatprep.subr.mxu0 0.0
        %884 = vmatpush1.msra.mxu0 0.0
        %885 = vmatprep.subr.mxu0 0.0
        %886 = vmatpush1.msra.mxu0 0.0
        %887 = vmatprep.subr.mxu0 0.0
        %888 = vmatpush1.msra.mxu0 0.0
        %889 = vmatprep.subr.mxu0 0.0
        %890 = vmatpush1.msra.mxu0 0.0
        %891 = vmatprep.subr.mxu0 0.0
        %892 = vmatpush1.msra.mxu0 0.0
        %893 = vmatprep.subr.mxu0 0.0
        %894 = vmatpush1.msra.mxu0 0.0
        %895 = vmatprep.subr.mxu0 0.0
        %896 = vmatpush1.msra.mxu0 0.0
        %897 = vmatprep.subr.mxu0 0.0
        %898 = vmatpush1.msra.mxu0 0.0
        %899 = vmatprep.subr.mxu0 0.0
        %900 = vmatpush1.msra.mxu0 0.0
        %901 = vmatprep.subr.mxu0 0.0
        %902 = vmatpush1.msra.mxu0 0.0
        %903 = vmatprep.subr.mxu0 0.0
        %904 = vmatpush1.msra.mxu0 0.0
        %905 = vmatprep.subr.mxu0 0.0
        %906 = vmatpush1.msra.mxu0 0.0
        %907 = vmatprep.subr.mxu0 0.0
        %908 = vmatpush1.msra.mxu0 0.0
        %909 = vmatprep.subr.mxu0 0.0
        %910 = vmatpush1.msra.mxu0 0.0
        %911 = vmatprep.subr.mxu0 0.0
        %912 = vmatpush1.msra.mxu0 0.0
        %913 = vmatprep.subr.mxu0 0.0
        %914 = vmatpush1.msra.mxu0 0.0
        %915 = vmatprep.subr.mxu0 0.0
        %916 = vmatpush1.msra.mxu0 0.0
        %917 = vmatprep.subr.mxu0 0.0
        %918 = vmatpush1.msra.mxu0 0.0
        %919 = vmatprep.subr.mxu0 0.0
        %920 = vmatpush1.msra.mxu0 0.0
        %921 = vmatprep.subr.mxu0 0.0
        %922 = vmatpush1.msra.mxu0 0.0
        %923 = vmatprep.subr.mxu0 0.0
        %924 = vmatpush1.msra.mxu0 0.0
        %925 = vmatprep.subr.mxu0 0.0
        %926 = vmatpush1.msra.mxu0 0.0
        %927 = vmatprep.subr.mxu0 0.0
        %928 = vmatpush1.msra.mxu0 0.0
        %929 = vmatprep.subr.mxu0 0.0
        %930 = vmatpush1.msra.mxu0 0.0
        %931 = vmatprep.subr.mxu0 0.0
        %932 = vmatpush1.msra.mxu0 0.0
        %933 = vmatprep.subr.mxu0 0.0
        %934 = vmatpush1.msra.mxu0 0.0
        %935 = vmatprep.subr.mxu0 0.0
        %936 = vmatpush1.msra.mxu0 0.0
        %937 = vmatprep.mubr.f32.mxu0 0.0
        %938 = vmatmul.mubr.f32.gmra.mrb[0].mxu0 %v771
        %v939 = vpop.f32.mrb[0].mxu0
        %v940 = vadd.f32 0.0, %v939
        %v941 = vpop.f32.mrb[0].mxu0
        %942 = vmatprep.mubr.f32.mxu0 0.0
        %943 = vmatmul.mubr.f32.gmra.mrb[0].mxu0 %v774
        %v944 = vpop.f32.mrb[0].mxu0
        %v945 = vadd.f32 0.0, %v944
        %v946 = vpop.f32.mrb[0].mxu0
        %947 = vmatprep.mubr.f32.mxu0 0.0
        %948 = vmatmul.mubr.f32.gmra.mrb[0].mxu0 %v777
        %v949 = vpop.f32.mrb[0].mxu0
        %v950 = vadd.f32 0.0, %v949
        %v951 = vpop.f32.mrb[0].mxu0
        %952 = vdwg.mxu0
        %v953 = vadd.f32 %v749, %v940
        %v954 = vadd.f32 %v754, %v945
        %v955 = vadd.f32 %v759, %v950
        %v956 = vld [vmem:[%s383 + $0x3] sm:$0xff]
        %v957 = vld [vmem:[%s383 + $0xb] sm:$0xff]
        %v958 = vld [vmem:[%s383 + $0x13] sm:$0xff]
        %s959 = scalar_lea.vmem %s1, 192
        %v960 = vld [vmem:[%s959] sm:$0xff]
        %v961 = vld [vmem:[%s959 + $0x8] sm:$0xff]
        %v962 = vld [vmem:[%s959 + $0x10] sm:$0xff]
        %v963 = vld [vmem:[%s959 + $0x18] sm:$0xf]
        %v965 = vsel %vm405, %v956, 0
        %v968 = vsel %vm405, %v957, 0
        %v971 = vsel %vm405, %v958, 0
        %v974 = vsel %vm415, %v963, 0
        %976 = vmatprep.subr.mxu0 0.0
        %977 = vmatpush1.msra.mxu0 %v960
        %978 = vmatprep.subr.mxu0 0.0
        %979 = vmatpush1.msra.mxu0 %v961
        %980 = vmatprep.subr.mxu0 0.0
        %981 = vmatpush1.msra.mxu0 %v962
        %982 = vmatprep.subr.mxu0 0.0
        %983 = vmatpush1.msra.mxu0 %v974
        %984 = vmatprep.subr.mxu0 0.0
        %985 = vmatpush1.msra.mxu0 0.0
        %986 = vmatprep.subr.mxu0 0.0
        %987 = vmatpush1.msra.mxu0 0.0
        %988 = vmatprep.subr.mxu0 0.0
        %989 = vmatpush1.msra.mxu0 0.0
        %990 = vmatprep.subr.mxu0 0.0
        %991 = vmatpush1.msra.mxu0 0.0
        %992 = vmatprep.subr.mxu0 0.0
        %993 = vmatpush1.msra.mxu0 0.0
        %994 = vmatprep.subr.mxu0 0.0
        %995 = vmatpush1.msra.mxu0 0.0
        %996 = vmatprep.subr.mxu0 0.0
        %997 = vmatpush1.msra.mxu0 0.0
        %998 = vmatprep.subr.mxu0 0.0
        %999 = vmatpush1.msra.mxu0 0.0
        %1000 = vmatprep.subr.mxu0 0.0
        %1001 = vmatpush1.msra.mxu0 0.0
        %1002 = vmatprep.subr.mxu0 0.0
        %1003 = vmatpush1.msra.mxu0 0.0
        %1004 = vmatprep.subr.mxu0 0.0
        %1005 = vmatpush1.msra.mxu0 0.0
        %1006 = vmatprep.subr.mxu0 0.0
        %1007 = vmatpush1.msra.mxu0 0.0
        %1008 = vmatprep.subr.mxu0 0.0
        %1009 = vmatpush1.msra.mxu0 0.0
        %1010 = vmatprep.subr.mxu0 0.0
        %1011 = vmatpush1.msra.mxu0 0.0
        %1012 = vmatprep.subr.mxu0 0.0
        %1013 = vmatpush1.msra.mxu0 0.0
        %1014 = vmatprep.subr.mxu0 0.0
        %1015 = vmatpush1.msra.mxu0 0.0
        %1016 = vmatprep.subr.mxu0 0.0
        %1017 = vmatpush1.msra.mxu0 0.0
        %1018 = vmatprep.subr.mxu0 0.0
        %1019 = vmatpush1.msra.mxu0 0.0
        %1020 = vmatprep.subr.mxu0 0.0
        %1021 = vmatpush1.msra.mxu0 0.0
        %1022 = vmatprep.subr.mxu0 0.0
        %1023 = vmatpush1.msra.mxu0 0.0
        %1024 = vmatprep.subr.mxu0 0.0
        %1025 = vmatpush1.msra.mxu0 0.0
        %1026 = vmatprep.subr.mxu0 0.0
        %1027 = vmatpush1.msra.mxu0 0.0
        %1028 = vmatprep.subr.mxu0 0.0
        %1029 = vmatpush1.msra.mxu0 0.0
        %1030 = vmatprep.subr.mxu0 0.0
        %1031 = vmatpush1.msra.mxu0 0.0
        %1032 = vmatprep.subr.mxu0 0.0
        %1033 = vmatpush1.msra.mxu0 0.0
        %1034 = vmatprep.subr.mxu0 0.0
        %1035 = vmatpush1.msra.mxu0 0.0
        %1036 = vmatprep.subr.mxu0 0.0
        %1037 = vmatpush1.msra.mxu0 0.0
        %1038 = vmatprep.subr.mxu0 0.0
        %1039 = vmatpush1.msra.mxu0 0.0
        %1040 = vmatprep.mubr.f32.mxu0 0.0
        %1041 = vmatmul.mubr.f32.gmra.mrb[0].mxu0 %v965
        %v1042 = vpop.f32.mrb[0].mxu0
        %v1043 = vadd.f32 0.0, %v1042
        %v1044 = vpop.f32.mrb[0].mxu0
        %1045 = vmatprep.mubr.f32.mxu0 0.0
        %1046 = vmatmul.mubr.f32.gmra.mrb[0].mxu0 %v968
        %v1047 = vpop.f32.mrb[0].mxu0
        %v1048 = vadd.f32 0.0, %v1047
        %v1049 = vpop.f32.mrb[0].mxu0
        %1050 = vmatprep.mubr.f32.mxu0 0.0
        %1051 = vmatmul.mubr.f32.gmra.mrb[0].mxu0 %v971
        %v1052 = vpop.f32.mrb[0].mxu0
        %v1053 = vadd.f32 0.0, %v1052
        %v1054 = vpop.f32.mrb[0].mxu0
        %1055 = vdwg.mxu0
        %v1056 = vadd.f32 %v862, %v1043
        %v1057 = vadd.f32 %v863, %v1048
        %v1058 = vadd.f32 %v864, %v1053
        %s1059 = scalar_lea.vmem %s1, 224
        %v1060 = vld [vmem:[%s1059] sm:$0xff]
        %v1061 = vld [vmem:[%s1059 + $0x8] sm:$0xff]
        %v1062 = vld [vmem:[%s1059 + $0x10] sm:$0xff]
        %v1063 = vld [vmem:[%s1059 + $0x18] sm:$0xf]
        %v1065 = vsel %vm415, %v1063, 0
        %1067 = vmatprep.subr.mxu0 0.0
        %1068 = vmatpush1.msra.mxu0 %v1060
        %1069 = vmatprep.subr.mxu0 0.0
        %1070 = vmatpush1.msra.mxu0 %v1061
        %1071 = vmatprep.subr.mxu0 0.0
        %1072 = vmatpush1.msra.mxu0 %v1062
        %1073 = vmatprep.subr.mxu0 0.0
        %1074 = vmatpush1.msra.mxu0 %v1065
        %1075 = vmatprep.subr.mxu0 0.0
        %1076 = vmatpush1.msra.mxu0 0.0
        %1077 = vmatprep.subr.mxu0 0.0
        %1078 = vmatpush1.msra.mxu0 0.0
        %1079 = vmatprep.subr.mxu0 0.0
        %1080 = vmatpush1.msra.mxu0 0.0
        %1081 = vmatprep.subr.mxu0 0.0
        %1082 = vmatpush1.msra.mxu0 0.0
        %1083 = vmatprep.subr.mxu0 0.0
        %1084 = vmatpush1.msra.mxu0 0.0
        %1085 = vmatprep.subr.mxu0 0.0
        %1086 = vmatpush1.msra.mxu0 0.0
        %1087 = vmatprep.subr.mxu0 0.0
        %1088 = vmatpush1.msra.mxu0 0.0
        %1089 = vmatprep.subr.mxu0 0.0
        %1090 = vmatpush1.msra.mxu0 0.0
        %1091 = vmatprep.subr.mxu0 0.0
        %1092 = vmatpush1.msra.mxu0 0.0
        %1093 = vmatprep.subr.mxu0 0.0
        %1094 = vmatpush1.msra.mxu0 0.0
        %1095 = vmatprep.subr.mxu0 0.0
        %1096 = vmatpush1.msra.mxu0 0.0
        %1097 = vmatprep.subr.mxu0 0.0
        %1098 = vmatpush1.msra.mxu0 0.0
        %1099 = vmatprep.subr.mxu0 0.0
        %1100 = vmatpush1.msra.mxu0 0.0
        %1101 = vmatprep.subr.mxu0 0.0
        %1102 = vmatpush1.msra.mxu0 0.0
        %1103 = vmatprep.subr.mxu0 0.0
        %1104 = vmatpush1.msra.mxu0 0.0
        %1105 = vmatprep.subr.mxu0 0.0
        %1106 = vmatpush1.msra.mxu0 0.0
        %1107 = vmatprep.subr.mxu0 0.0
        %1108 = vmatpush1.msra.mxu0 0.0
        %1109 = vmatprep.subr.mxu0 0.0
        %1110 = vmatpush1.msra.mxu0 0.0
        %1111 = vmatprep.subr.mxu0 0.0
        %1112 = vmatpush1.msra.mxu0 0.0
        %1113 = vmatprep.subr.mxu0 0.0
        %1114 = vmatpush1.msra.mxu0 0.0
        %1115 = vmatprep.subr.mxu0 0.0
        %1116 = vmatpush1.msra.mxu0 0.0
        %1117 = vmatprep.subr.mxu0 0.0
        %1118 = vmatpush1.msra.mxu0 0.0
        %1119 = vmatprep.subr.mxu0 0.0
        %1120 = vmatpush1.msra.mxu0 0.0
        %1121 = vmatprep.subr.mxu0 0.0
        %1122 = vmatpush1.msra.mxu0 0.0
        %1123 = vmatprep.subr.mxu0 0.0
        %1124 = vmatpush1.msra.mxu0 0.0
        %1125 = vmatprep.subr.mxu0 0.0
        %1126 = vmatpush1.msra.mxu0 0.0
        %1127 = vmatprep.subr.mxu0 0.0
        %1128 = vmatpush1.msra.mxu0 0.0
        %1129 = vmatprep.subr.mxu0 0.0
        %1130 = vmatpush1.msra.mxu0 0.0
        %1131 = vmatprep.mubr.f32.mxu0 0.0
        %1132 = vmatmul.mubr.f32.gmra.mrb[0].mxu0 %v965
        %v1133 = vpop.f32.mrb[0].mxu0
        %v1134 = vadd.f32 0.0, %v1133
        %v1135 = vpop.f32.mrb[0].mxu0
        %1136 = vmatprep.mubr.f32.mxu0 0.0
        %1137 = vmatmul.mubr.f32.gmra.mrb[0].mxu0 %v968
        %v1138 = vpop.f32.mrb[0].mxu0
        %v1139 = vadd.f32 0.0, %v1138
        %v1140 = vpop.f32.mrb[0].mxu0
        %1141 = vmatprep.mubr.f32.mxu0 0.0
        %1142 = vmatmul.mubr.f32.gmra.mrb[0].mxu0 %v971
        %v1143 = vpop.f32.mrb[0].mxu0
        %v1144 = vadd.f32 0.0, %v1143
        %v1145 = vpop.f32.mrb[0].mxu0
        %1146 = vdwg.mxu0
        %v1147 = vadd.f32 %v953, %v1134
        %v1148 = vadd.f32 %v954, %v1139
        %v1149 = vadd.f32 %v955, %v1144
        %v1150 = vld [vmem:[%s383 + $0x4] sm:$0xff]
        %v1151 = vld [vmem:[%s383 + $0xc] sm:$0xff]
        %v1152 = vld [vmem:[%s383 + $0x14] sm:$0xff]
        %s1153 = scalar_lea.vmem %s1, 256
        %v1154 = vld [vmem:[%s1153] sm:$0xff]
        %v1155 = vld [vmem:[%s1153 + $0x8] sm:$0xff]
        %v1156 = vld [vmem:[%s1153 + $0x10] sm:$0xff]
        %v1157 = vld [vmem:[%s1153 + $0x18] sm:$0xf]
        %v1159 = vsel %vm405, %v1150, 0
        %v1162 = vsel %vm405, %v1151, 0
        %v1165 = vsel %vm405, %v1152, 0
        %v1168 = vsel %vm415, %v1157, 0
        %1170 = vmatprep.subr.mxu0 0.0
        %1171 = vmatpush1.msra.mxu0 %v1154
        %1172 = vmatprep.subr.mxu0 0.0
        %1173 = vmatpush1.msra.mxu0 %v1155
        %1174 = vmatprep.subr.mxu0 0.0
        %1175 = vmatpush1.msra.mxu0 %v1156
        %1176 = vmatprep.subr.mxu0 0.0
        %1177 = vmatpush1.msra.mxu0 %v1168
        %1178 = vmatprep.subr.mxu0 0.0
        %1179 = vmatpush1.msra.mxu0 0.0
        %1180 = vmatprep.subr.mxu0 0.0
        %1181 = vmatpush1.msra.mxu0 0.0
        %1182 = vmatprep.subr.mxu0 0.0
        %1183 = vmatpush1.msra.mxu0 0.0
        %1184 = vmatprep.subr.mxu0 0.0
        %1185 = vmatpush1.msra.mxu0 0.0
        %1186 = vmatprep.subr.mxu0 0.0
        %1187 = vmatpush1.msra.mxu0 0.0
        %1188 = vmatprep.subr.mxu0 0.0
        %1189 = vmatpush1.msra.mxu0 0.0
        %1190 = vmatprep.subr.mxu0 0.0
        %1191 = vmatpush1.msra.mxu0 0.0
        %1192 = vmatprep.subr.mxu0 0.0
        %1193 = vmatpush1.msra.mxu0 0.0
        %1194 = vmatprep.subr.mxu0 0.0
        %1195 = vmatpush1.msra.mxu0 0.0
        %1196 = vmatprep.subr.mxu0 0.0
        %1197 = vmatpush1.msra.mxu0 0.0
        %1198 = vmatprep.subr.mxu0 0.0
        %1199 = vmatpush1.msra.mxu0 0.0
        %1200 = vmatprep.subr.mxu0 0.0
        %1201 = vmatpush1.msra.mxu0 0.0
        %1202 = vmatprep.subr.mxu0 0.0
        %1203 = vmatpush1.msra.mxu0 0.0
        %1204 = vmatprep.subr.mxu0 0.0
        %1205 = vmatpush1.msra.mxu0 0.0
        %1206 = vmatprep.subr.mxu0 0.0
        %1207 = vmatpush1.msra.mxu0 0.0
        %1208 = vmatprep.subr.mxu0 0.0
        %1209 = vmatpush1.msra.mxu0 0.0
        %1210 = vmatprep.subr.mxu0 0.0
        %1211 = vmatpush1.msra.mxu0 0.0
        %1212 = vmatprep.subr.mxu0 0.0
        %1213 = vmatpush1.msra.mxu0 0.0
        %1214 = vmatprep.subr.mxu0 0.0
        %1215 = vmatpush1.msra.mxu0 0.0
        %1216 = vmatprep.subr.mxu0 0.0
        %1217 = vmatpush1.msra.mxu0 0.0
        %1218 = vmatprep.subr.mxu0 0.0
        %1219 = vmatpush1.msra.mxu0 0.0
        %1220 = vmatprep.subr.mxu0 0.0
        %1221 = vmatpush1.msra.mxu0 0.0
        %1222 = vmatprep.subr.mxu0 0.0
        %1223 = vmatpush1.msra.mxu0 0.0
        %1224 = vmatprep.subr.mxu0 0.0
        %1225 = vmatpush1.msra.mxu0 0.0
        %1226 = vmatprep.subr.mxu0 0.0
        %1227 = vmatpush1.msra.mxu0 0.0
        %1228 = vmatprep.subr.mxu0 0.0
        %1229 = vmatpush1.msra.mxu0 0.0
        %1230 = vmatprep.subr.mxu0 0.0
        %1231 = vmatpush1.msra.mxu0 0.0
        %1232 = vmatprep.subr.mxu0 0.0
        %1233 = vmatpush1.msra.mxu0 0.0
        %1234 = vmatprep.mubr.f32.mxu0 0.0
        %1235 = vmatmul.mubr.f32.gmra.mrb[0].mxu0 %v1159
        %v1236 = vpop.f32.mrb[0].mxu0
        %v1237 = vadd.f32 0.0, %v1236
        %v1238 = vpop.f32.mrb[0].mxu0
        %1239 = vmatprep.mubr.f32.mxu0 0.0
        %1240 = vmatmul.mubr.f32.gmra.mrb[0].mxu0 %v1162
        %v1241 = vpop.f32.mrb[0].mxu0
        %v1242 = vadd.f32 0.0, %v1241
        %v1243 = vpop.f32.mrb[0].mxu0
        %1244 = vmatprep.mubr.f32.mxu0 0.0
        %1245 = vmatmul.mubr.f32.gmra.mrb[0].mxu0 %v1165
        %v1246 = vpop.f32.mrb[0].mxu0
        %v1247 = vadd.f32 0.0, %v1246
        %v1248 = vpop.f32.mrb[0].mxu0
        %1249 = vdwg.mxu0
        %v1250 = vadd.f32 %v1056, %v1237
        %v1251 = vadd.f32 %v1057, %v1242
        %v1252 = vadd.f32 %v1058, %v1247
        %s1253 = scalar_lea.vmem %s1, 288
        %v1254 = vld [vmem:[%s1253] sm:$0xff]
        %v1255 = vld [vmem:[%s1253 + $0x8] sm:$0xff]
        %v1256 = vld [vmem:[%s1253 + $0x10] sm:$0xff]
        %v1257 = vld [vmem:[%s1253 + $0x18] sm:$0xf]
        %v1259 = vsel %vm415, %v1257, 0
        %1261 = vmatprep.subr.mxu0 0.0
        %1262 = vmatpush1.msra.mxu0 %v1254
        %1263 = vmatprep.subr.mxu0 0.0
        %1264 = vmatpush1.msra.mxu0 %v1255
        %1265 = vmatprep.subr.mxu0 0.0
        %1266 = vmatpush1.msra.mxu0 %v1256
        %1267 = vmatprep.subr.mxu0 0.0
        %1268 = vmatpush1.msra.mxu0 %v1259
        %1269 = vmatprep.subr.mxu0 0.0
        %1270 = vmatpush1.msra.mxu0 0.0
        %1271 = vmatprep.subr.mxu0 0.0
        %1272 = vmatpush1.msra.mxu0 0.0
        %1273 = vmatprep.subr.mxu0 0.0
        %1274 = vmatpush1.msra.mxu0 0.0
        %1275 = vmatprep.subr.mxu0 0.0
        %1276 = vmatpush1.msra.mxu0 0.0
        %1277 = vmatprep.subr.mxu0 0.0
        %1278 = vmatpush1.msra.mxu0 0.0
        %1279 = vmatprep.subr.mxu0 0.0
        %1280 = vmatpush1.msra.mxu0 0.0
        %1281 = vmatprep.subr.mxu0 0.0
        %1282 = vmatpush1.msra.mxu0 0.0
        %1283 = vmatprep.subr.mxu0 0.0
        %1284 = vmatpush1.msra.mxu0 0.0
        %1285 = vmatprep.subr.mxu0 0.0
        %1286 = vmatpush1.msra.mxu0 0.0
        %1287 = vmatprep.subr.mxu0 0.0
        %1288 = vmatpush1.msra.mxu0 0.0
        %1289 = vmatprep.subr.mxu0 0.0
        %1290 = vmatpush1.msra.mxu0 0.0
        %1291 = vmatprep.subr.mxu0 0.0
        %1292 = vmatpush1.msra.mxu0 0.0
        %1293 = vmatprep.subr.mxu0 0.0
        %1294 = vmatpush1.msra.mxu0 0.0
        %1295 = vmatprep.subr.mxu0 0.0
        %1296 = vmatpush1.msra.mxu0 0.0
        %1297 = vmatprep.subr.mxu0 0.0
        %1298 = vmatpush1.msra.mxu0 0.0
        %1299 = vmatprep.subr.mxu0 0.0
        %1300 = vmatpush1.msra.mxu0 0.0
        %1301 = vmatprep.subr.mxu0 0.0
        %1302 = vmatpush1.msra.mxu0 0.0
        %1303 = vmatprep.subr.mxu0 0.0
        %1304 = vmatpush1.msra.mxu0 0.0
        %1305 = vmatprep.subr.mxu0 0.0
        %1306 = vmatpush1.msra.mxu0 0.0
        %1307 = vmatprep.subr.mxu0 0.0
        %1308 = vmatpush1.msra.mxu0 0.0
        %1309 = vmatprep.subr.mxu0 0.0
        %1310 = vmatpush1.msra.mxu0 0.0
        %1311 = vmatprep.subr.mxu0 0.0
        %1312 = vmatpush1.msra.mxu0 0.0
        %1313 = vmatprep.subr.mxu0 0.0
        %1314 = vmatpush1.msra.mxu0 0.0
        %1315 = vmatprep.subr.mxu0 0.0
        %1316 = vmatpush1.msra.mxu0 0.0
        %1317 = vmatprep.subr.mxu0 0.0
        %1318 = vmatpush1.msra.mxu0 0.0
        %1319 = vmatprep.subr.mxu0 0.0
        %1320 = vmatpush1.msra.mxu0 0.0
        %1321 = vmatprep.subr.mxu0 0.0
        %1322 = vmatpush1.msra.mxu0 0.0
        %1323 = vmatprep.subr.mxu0 0.0
        %1324 = vmatpush1.msra.mxu0 0.0
        %1325 = vmatprep.mubr.f32.mxu0 0.0
        %1326 = vmatmul.mubr.f32.gmra.mrb[0].mxu0 %v1159
        %v1327 = vpop.f32.mrb[0].mxu0
        %v1328 = vadd.f32 0.0, %v1327
        %v1329 = vpop.f32.mrb[0].mxu0
        %1330 = vmatprep.mubr.f32.mxu0 0.0
        %1331 = vmatmul.mubr.f32.gmra.mrb[0].mxu0 %v1162
        %v1332 = vpop.f32.mrb[0].mxu0
        %v1333 = vadd.f32 0.0, %v1332
        %v1334 = vpop.f32.mrb[0].mxu0
        %1335 = vmatprep.mubr.f32.mxu0 0.0
        %1336 = vmatmul.mubr.f32.gmra.mrb[0].mxu0 %v1165
        %v1337 = vpop.f32.mrb[0].mxu0
        %v1338 = vadd.f32 0.0, %v1337
        %v1339 = vpop.f32.mrb[0].mxu0
        %1340 = vdwg.mxu0
        %v1341 = vadd.f32 %v1147, %v1328
        %v1342 = vadd.f32 %v1148, %v1333
        %v1343 = vadd.f32 %v1149, %v1338
        %v1344 = vld [vmem:[%s2] sm:$0x1]
        %v1346 = vlaneseq
        %v1347 = vshrl.u32 %v1346, 7
        %v1348 = vsub.s32 0, %v1347
        %v1349 = vrot.slane %v1344, %v1348
        %v1351 = vadd.f32 %v1250, %v1349
        %v1352 = vadd.f32 %v1251, %v1349
        %v1353 = vadd.f32 %v1252, %v1349
        %v1354 = vmax.f32 %v1351, 0.0
        %v1355 = vmax.f32 %v1352, 0.0
        %v1356 = vmax.f32 %v1353, 0.0
        %vm1357 = vcmask 588800
        %1358 = vst.msk [vmem:[#allocation2] sm:$0xff] %vm1357, %v1354
        %1359 = vst.msk [vmem:[#allocation2 + $0x8] sm:$0xff] %vm1357, %v1355
        %1360 = vst.msk [vmem:[#allocation2 + $0x10] sm:$0xff] %vm1357, %v1356
        %v1361 = vld [vmem:[%s2] sm:$0x1]
        %v1363 = vlaneseq
        %v1364 = vshrl.u32 %v1363, 7
        %v1365 = vsub.s32 0, %v1364
        %v1366 = vrot.slane %v1361, %v1365
        %v1368 = vadd.f32 %v1341, %v1366
        %v1369 = vadd.f32 %v1342, %v1366
        %v1370 = vadd.f32 %v1343, %v1366
        %v1371 = vmax.f32 %v1368, 0.0
        %v1372 = vmax.f32 %v1369, 0.0
        %v1373 = vmax.f32 %v1370, 0.0
        %1374 = vst.msk [vmem:[#allocation3] sm:$0xff] %vm1357, %v1371
        %1375 = vst.msk [vmem:[#allocation3 + $0x8] sm:$0xff] %vm1357, %v1372
        %1376 = vst.msk [vmem:[#allocation3 + $0x10] sm:$0xff] %vm1357, %v1373
        %v1377 = vld [vmem:[#allocation2] ss:$2 sm:$0xff]
        %s1378 = scalar_lea.vmem [#allocation2], 16
        %v1379 = vld [vmem:[%s1378] ss:$2 sm:$0xf]
        %s1380 = scalar_lea.vmem [#allocation2], 1
        %v1381 = vld [vmem:[%s1380] ss:$2 sm:$0xff]
        %s1382 = scalar_lea.vmem [#allocation2], 17
        %v1383 = vld [vmem:[%s1382] ss:$2 sm:$0xf]
        %v1384 = vmax.f32 %v1377, %v1381
        %v1385 = vmax.f32 %v1379, %v1383
        %v1386 = vld [vmem:[#allocation3] ss:$2 sm:$0xff]
        %s1387 = scalar_lea.vmem [#allocation3], 16
        %v1388 = vld [vmem:[%s1387] ss:$2 sm:$0xf]
        %s1389 = scalar_lea.vmem [#allocation3], 1
        %v1390 = vld [vmem:[%s1389] ss:$2 sm:$0xff]
        %s1391 = scalar_lea.vmem [#allocation3], 17
        %v1392 = vld [vmem:[%s1391] ss:$2 sm:$0xf]
        %v1393 = vmax.f32 %v1386, %v1390
        %v1394 = vmax.f32 %v1388, %v1392
        %v1395 = vmax.f32 %v1384, %v1393
        %v1396 = vmax.f32 %v1385, %v1394
        %1397 = vst.msk [vmem:[#allocation4] sm:$0xff] %vm1357, %v1395
        %vm1398 = vcmask 584704
        %1399 = vst.msk [vmem:[#allocation4 + $0x8] sm:$0xf] %vm1398, %v1396
        %v1400 = vld [vmem:[#allocation4] sm:$0xff]
        %v1401 = vpack.c.bf16 %v1400, %v1400
        %v1402 = vld [vmem:[%s3] sm:$0xf]
        %v1403 = vld [vmem:[%s3 + $0x4] sm:$0xf]
        %v1404 = vld [vmem:[%s3 + $0x8] sm:$0xf]
        %v1405 = vld [vmem:[%s3 + $0xc] sm:$0xf]
        %v1406 = vld [vmem:[%s3 + $0x10] sm:$0xf]
        %v1407 = vld [vmem:[%s3 + $0x14] sm:$0xf]
        %v1408 = vld [vmem:[%s3 + $0x18] sm:$0xf]
        %v1409 = vld [vmem:[%s3 + $0x1c] sm:$0xf]
        %v1410 = vld [vmem:[%s3 + $0x20] sm:$0xf]
        %s1411 = scalar_lea.vmem %s3, 36
        %v1412 = vld [vmem:[%s1411] sm:$0xf]
        %v1413 = vld [vmem:[%s1411 + $0x4] sm:$0xf]
        %v1414 = vld [vmem:[%s1411 + $0x8] sm:$0xf]
        %v1415 = vld [vmem:[%s1411 + $0xc] sm:$0xf]
        %v1416 = vld [vmem:[%s1411 + $0x10] sm:$0xf]
        %v1417 = vld [vmem:[%s1411 + $0x14] sm:$0xf]
        %v1418 = vld [vmem:[%s1411 + $0x18] sm:$0xf]
        %v1419 = vld [vmem:[%s1411 + $0x1c] sm:$0xf]
        %v1420 = vld [vmem:[%s1411 + $0x20] sm:$0xf]
        %v1421 = vld [vmem:[#allocation4 + $0x1] sm:$0xff]
        %v1422 = vpack.c.bf16 %v1421, %v1421
        %s1423 = scalar_lea.vmem %s3, 72
        %v1424 = vld [vmem:[%s1423] sm:$0xf]
        %v1425 = vld [vmem:[%s1423 + $0x4] sm:$0xf]
        %v1426 = vld [vmem:[%s1423 + $0x8] sm:$0xf]
        %v1427 = vld [vmem:[%s1423 + $0xc] sm:$0xf]
        %v1428 = vld [vmem:[%s1423 + $0x10] sm:$0xf]
        %v1429 = vld [vmem:[%s1423 + $0x14] sm:$0xf]
        %v1430 = vld [vmem:[%s1423 + $0x18] sm:$0xf]
        %v1431 = vld [vmem:[%s1423 + $0x1c] sm:$0xf]
        %v1432 = vld [vmem:[%s1423 + $0x20] sm:$0xf]
        %v1442 = vunpack.c.l.b16 %v1424
        %v1443 = vunpack.c.l.b16 %v1425
        %v1444 = vunpack.c.l.b16 %v1426
        %v1445 = vunpack.c.l.b16 %v1427
        %v1446 = vunpack.c.l.b16 %v1428
        %v1447 = vunpack.c.l.b16 %v1429
        %v1448 = vunpack.c.l.b16 %v1430
        %v1449 = vunpack.c.l.b16 %v1431
        %v1450 = vunpack.c.l.b16 %v1432
        %v1451 = vpack.c.b16 %v1443, %v1442
        %v1452 = vpack.c.b16 %v1445, %v1444
        %v1453 = vpack.c.b16 %v1447, %v1446
        %v1454 = vpack.c.b16 %v1449, %v1448
        %v1455 = vpack.c.b16 %v1450, %v1450
        %v1461 = vsel %vm1357, %v1422, 0
        %v1464 = vsel %vm415, %v1455, 0
        %1466 = vmatprep.subr.bf16.mxu0 0
        %1467 = vmatpush1.bf16.msra.mxu0 %v1451
        %1468 = vmatprep.subr.bf16.mxu0 0
        %1469 = vmatpush1.bf16.msra.mxu0 %v1452
        %1470 = vmatprep.subr.bf16.mxu0 0
        %1471 = vmatpush1.bf16.msra.mxu0 %v1453
        %1472 = vmatprep.subr.bf16.mxu0 0
        %1473 = vmatpush1.bf16.msra.mxu0 %v1454
        %1474 = vmatprep.subr.bf16.mxu0 0
        %1475 = vmatpush1.bf16.msra.mxu0 %v1464
        %1476 = vmatprep.subr.bf16.mxu0 0
        %1477 = vmatpush1.bf16.msra.mxu0 0
        %1478 = vmatprep.subr.bf16.mxu0 0
        %1479 = vmatpush1.bf16.msra.mxu0 0
        %1480 = vmatprep.subr.bf16.mxu0 0
        %1481 = vmatpush1.bf16.msra.mxu0 0
        %1482 = vmatprep.subr.bf16.mxu0 0
        %1483 = vmatpush1.bf16.msra.mxu0 0
        %1484 = vmatprep.subr.bf16.mxu0 0
        %1485 = vmatpush1.bf16.msra.mxu0 0
        %1486 = vmatprep.subr.bf16.mxu0 0
        %1487 = vmatpush1.bf16.msra.mxu0 0
        %1488 = vmatprep.subr.bf16.mxu0 0
        %1489 = vmatpush1.bf16.msra.mxu0 0
        %1490 = vmatprep.subr.bf16.mxu0 0
        %1491 = vmatpush1.bf16.msra.mxu0 0
        %1492 = vmatprep.subr.bf16.mxu0 0
        %1493 = vmatpush1.bf16.msra.mxu0 0
        %1494 = vmatprep.subr.bf16.mxu0 0
        %1495 = vmatpush1.bf16.msra.mxu0 0
        %1496 = vmatprep.subr.bf16.mxu0 0
        %1497 = vmatpush1.bf16.msra.mxu0 0
        %1498 = vmatprep.mubr.bf16.mxu0 0
        %1499 = vmatmul.mubr.bf16.gmra.mrb[0].mxu0 %v1461
        %v1500 = vpop.f32.mrb[0].mxu0
        %v1501 = vadd.f32 0.0, %v1500
        %v1502 = vpop.f32.mrb[0].mxu0
        %v1503 = vpop.f32.mrb[0].mxu0
        %v1504 = vpop.f32.mrb[0].mxu0
        %1505 = vdwg.mxu0
        %v1515 = vunpack.c.l.b16 %v1402
        %v1516 = vunpack.c.l.b16 %v1403
        %v1517 = vunpack.c.l.b16 %v1404
        %v1518 = vunpack.c.l.b16 %v1405
        %v1519 = vunpack.c.l.b16 %v1406
        %v1520 = vunpack.c.l.b16 %v1407
        %v1521 = vunpack.c.l.b16 %v1408
        %v1522 = vunpack.c.l.b16 %v1409
        %v1523 = vunpack.c.l.b16 %v1410
        %v1524 = vpack.c.b16 %v1516, %v1515
        %v1525 = vpack.c.b16 %v1518, %v1517
        %v1526 = vpack.c.b16 %v1520, %v1519
        %v1527 = vpack.c.b16 %v1522, %v1521
        %v1528 = vpack.c.b16 %v1523, %v1523
        %v1534 = vsel %vm1357, %v1401, 0
        %v1537 = vsel %vm415, %v1528, 0
        %1539 = vmatprep.subr.bf16.mxu0 0
        %1540 = vmatpush1.bf16.msra.mxu0 %v1524
        %1541 = vmatprep.subr.bf16.mxu0 0
        %1542 = vmatpush1.bf16.msra.mxu0 %v1525
        %1543 = vmatprep.subr.bf16.mxu0 0
        %1544 = vmatpush1.bf16.msra.mxu0 %v1526
        %1545 = vmatprep.subr.bf16.mxu0 0
        %1546 = vmatpush1.bf16.msra.mxu0 %v1527
        %1547 = vmatprep.subr.bf16.mxu0 0
        %1548 = vmatpush1.bf16.msra.mxu0 %v1537
        %1549 = vmatprep.subr.bf16.mxu0 0
        %1550 = vmatpush1.bf16.msra.mxu0 0
        %1551 = vmatprep.subr.bf16.mxu0 0
        %1552 = vmatpush1.bf16.msra.mxu0 0
        %1553 = vmatprep.subr.bf16.mxu0 0
        %1554 = vmatpush1.bf16.msra.mxu0 0
        %1555 = vmatprep.subr.bf16.mxu0 0
        %1556 = vmatpush1.bf16.msra.mxu0 0
        %1557 = vmatprep.subr.bf16.mxu0 0
        %1558 = vmatpush1.bf16.msra.mxu0 0
        %1559 = vmatprep.subr.bf16.mxu0 0
        %1560 = vmatpush1.bf16.msra.mxu0 0
        %1561 = vmatprep.subr.bf16.mxu0 0
        %1562 = vmatpush1.bf16.msra.mxu0 0
        %1563 = vmatprep.subr.bf16.mxu0 0
        %1564 = vmatpush1.bf16.msra.mxu0 0
        %1565 = vmatprep.subr.bf16.mxu0 0
        %1566 = vmatpush1.bf16.msra.mxu0 0
        %1567 = vmatprep.subr.bf16.mxu0 0
        %1568 = vmatpush1.bf16.msra.mxu0 0
        %1569 = vmatprep.subr.bf16.mxu0 0
        %1570 = vmatpush1.bf16.msra.mxu0 0
        %1571 = vmatprep.mubr.bf16.mxu0 0
        %1572 = vmatmul.mubr.bf16.gmra.mrb[0].mxu0 %v1534
        %v1573 = vpop.f32.mrb[0].mxu0
        %v1574 = vadd.f32 %v1501, %v1573
        %v1575 = vpop.f32.mrb[0].mxu0
        %v1576 = vpop.f32.mrb[0].mxu0
        %v1577 = vpop.f32.mrb[0].mxu0
        %1578 = vdwg.mxu0
        %s1579 = scalar_lea.vmem %s3, 108
        %v1580 = vld [vmem:[%s1579] sm:$0xf]
        %v1581 = vld [vmem:[%s1579 + $0x4] sm:$0xf]
        %v1582 = vld [vmem:[%s1579 + $0x8] sm:$0xf]
        %v1583 = vld [vmem:[%s1579 + $0xc] sm:$0xf]
        %v1584 = vld [vmem:[%s1579 + $0x10] sm:$0xf]
        %v1585 = vld [vmem:[%s1579 + $0x14] sm:$0xf]
        %v1586 = vld [vmem:[%s1579 + $0x18] sm:$0xf]
        %v1587 = vld [vmem:[%s1579 + $0x1c] sm:$0xf]
        %v1588 = vld [vmem:[%s1579 + $0x20] sm:$0xf]
        %v1598 = vunpack.c.l.b16 %v1580
        %v1599 = vunpack.c.l.b16 %v1581
        %v1600 = vunpack.c.l.b16 %v1582
        %v1601 = vunpack.c.l.b16 %v1583
        %v1602 = vunpack.c.l.b16 %v1584
        %v1603 = vunpack.c.l.b16 %v1585
        %v1604 = vunpack.c.l.b16 %v1586
        %v1605 = vunpack.c.l.b16 %v1587
        %v1606 = vunpack.c.l.b16 %v1588
        %v1607 = vpack.c.b16 %v1599, %v1598
        %v1608 = vpack.c.b16 %v1601, %v1600
        %v1609 = vpack.c.b16 %v1603, %v1602
        %v1610 = vpack.c.b16 %v1605, %v1604
        %v1611 = vpack.c.b16 %v1606, %v1606
        %v1617 = vsel %vm415, %v1611, 0
        %1619 = vmatprep.subr.bf16.mxu0 0
        %1620 = vmatpush1.bf16.msra.mxu0 %v1607
        %1621 = vmatprep.subr.bf16.mxu0 0
        %1622 = vmatpush1.bf16.msra.mxu0 %v1608
        %1623 = vmatprep.subr.bf16.mxu0 0
        %1624 = vmatpush1.bf16.msra.mxu0 %v1609
        %1625 = vmatprep.subr.bf16.mxu0 0
        %1626 = vmatpush1.bf16.msra.mxu0 %v1610
        %1627 = vmatprep.subr.bf16.mxu0 0
        %1628 = vmatpush1.bf16.msra.mxu0 %v1617
        %1629 = vmatprep.subr.bf16.mxu0 0
        %1630 = vmatpush1.bf16.msra.mxu0 0
        %1631 = vmatprep.subr.bf16.mxu0 0
        %1632 = vmatpush1.bf16.msra.mxu0 0
        %1633 = vmatprep.subr.bf16.mxu0 0
        %1634 = vmatpush1.bf16.msra.mxu0 0
        %1635 = vmatprep.subr.bf16.mxu0 0
        %1636 = vmatpush1.bf16.msra.mxu0 0
        %1637 = vmatprep.subr.bf16.mxu0 0
        %1638 = vmatpush1.bf16.msra.mxu0 0
        %1639 = vmatprep.subr.bf16.mxu0 0
        %1640 = vmatpush1.bf16.msra.mxu0 0
        %1641 = vmatprep.subr.bf16.mxu0 0
        %1642 = vmatpush1.bf16.msra.mxu0 0
        %1643 = vmatprep.subr.bf16.mxu0 0
        %1644 = vmatpush1.bf16.msra.mxu0 0
        %1645 = vmatprep.subr.bf16.mxu0 0
        %1646 = vmatpush1.bf16.msra.mxu0 0
        %1647 = vmatprep.subr.bf16.mxu0 0
        %1648 = vmatpush1.bf16.msra.mxu0 0
        %1649 = vmatprep.subr.bf16.mxu0 0
        %1650 = vmatpush1.bf16.msra.mxu0 0
        %1651 = vmatprep.mubr.bf16.mxu0 0
        %1652 = vmatmul.mubr.bf16.gmra.mrb[0].mxu0 %v1461
        %v1653 = vpop.f32.mrb[0].mxu0
        %v1654 = vadd.f32 0.0, %v1653
        %v1655 = vpop.f32.mrb[0].mxu0
        %v1656 = vpop.f32.mrb[0].mxu0
        %v1657 = vpop.f32.mrb[0].mxu0
        %1658 = vdwg.mxu0
        %v1668 = vunpack.c.l.b16 %v1412
        %v1669 = vunpack.c.l.b16 %v1413
        %v1670 = vunpack.c.l.b16 %v1414
        %v1671 = vunpack.c.l.b16 %v1415
        %v1672 = vunpack.c.l.b16 %v1416
        %v1673 = vunpack.c.l.b16 %v1417
        %v1674 = vunpack.c.l.b16 %v1418
        %v1675 = vunpack.c.l.b16 %v1419
        %v1676 = vunpack.c.l.b16 %v1420
        %v1677 = vpack.c.b16 %v1669, %v1668
        %v1678 = vpack.c.b16 %v1671, %v1670
        %v1679 = vpack.c.b16 %v1673, %v1672
        %v1680 = vpack.c.b16 %v1675, %v1674
        %v1681 = vpack.c.b16 %v1676, %v1676
        %v1687 = vsel %vm415, %v1681, 0
        %1689 = vmatprep.subr.bf16.mxu0 0
        %1690 = vmatpush1.bf16.msra.mxu0 %v1677
        %1691 = vmatprep.subr.bf16.mxu0 0
        %1692 = vmatpush1.bf16.msra.mxu0 %v1678
        %1693 = vmatprep.subr.bf16.mxu0 0
        %1694 = vmatpush1.bf16.msra.mxu0 %v1679
        %1695 = vmatprep.subr.bf16.mxu0 0
        %1696 = vmatpush1.bf16.msra.mxu0 %v1680
        %1697 = vmatprep.subr.bf16.mxu0 0
        %1698 = vmatpush1.bf16.msra.mxu0 %v1687
        %1699 = vmatprep.subr.bf16.mxu0 0
        %1700 = vmatpush1.bf16.msra.mxu0 0
        %1701 = vmatprep.subr.bf16.mxu0 0
        %1702 = vmatpush1.bf16.msra.mxu0 0
        %1703 = vmatprep.subr.bf16.mxu0 0
        %1704 = vmatpush1.bf16.msra.mxu0 0
        %1705 = vmatprep.subr.bf16.mxu0 0
        %1706 = vmatpush1.bf16.msra.mxu0 0
        %1707 = vmatprep.subr.bf16.mxu0 0
        %1708 = vmatpush1.bf16.msra.mxu0 0
        %1709 = vmatprep.subr.bf16.mxu0 0
        %1710 = vmatpush1.bf16.msra.mxu0 0
        %1711 = vmatprep.subr.bf16.mxu0 0
        %1712 = vmatpush1.bf16.msra.mxu0 0
        %1713 = vmatprep.subr.bf16.mxu0 0
        %1714 = vmatpush1.bf16.msra.mxu0 0
        %1715 = vmatprep.subr.bf16.mxu0 0
        %1716 = vmatpush1.bf16.msra.mxu0 0
        %1717 = vmatprep.subr.bf16.mxu0 0
        %1718 = vmatpush1.bf16.msra.mxu0 0
        %1719 = vmatprep.subr.bf16.mxu0 0
        %1720 = vmatpush1.bf16.msra.mxu0 0
        %1721 = vmatprep.mubr.bf16.mxu0 0
        %1722 = vmatmul.mubr.bf16.gmra.mrb[0].mxu0 %v1534
        %v1723 = vpop.f32.mrb[0].mxu0
        %v1724 = vadd.f32 %v1654, %v1723
        %v1725 = vpop.f32.mrb[0].mxu0
        %v1726 = vpop.f32.mrb[0].mxu0
        %v1727 = vpop.f32.mrb[0].mxu0
        %1728 = vdwg.mxu0
        %v1729 = vld [vmem:[#allocation4 + $0x2] sm:$0xff]
        %v1730 = vpack.c.bf16 %v1729, %v1729
        %s1731 = scalar_lea.vmem %s3, 144
        %v1732 = vld [vmem:[%s1731] sm:$0xf]
        %v1733 = vld [vmem:[%s1731 + $0x4] sm:$0xf]
        %v1734 = vld [vmem:[%s1731 + $0x8] sm:$0xf]
        %v1735 = vld [vmem:[%s1731 + $0xc] sm:$0xf]
        %v1736 = vld [vmem:[%s1731 + $0x10] sm:$0xf]
        %v1737 = vld [vmem:[%s1731 + $0x14] sm:$0xf]
        %v1738 = vld [vmem:[%s1731 + $0x18] sm:$0xf]
        %v1739 = vld [vmem:[%s1731 + $0x1c] sm:$0xf]
        %v1740 = vld [vmem:[%s1731 + $0x20] sm:$0xf]
        %v1750 = vunpack.c.l.b16 %v1732
        %v1751 = vunpack.c.l.b16 %v1733
        %v1752 = vunpack.c.l.b16 %v1734
        %v1753 = vunpack.c.l.b16 %v1735
        %v1754 = vunpack.c.l.b16 %v1736
        %v1755 = vunpack.c.l.b16 %v1737
        %v1756 = vunpack.c.l.b16 %v1738
        %v1757 = vunpack.c.l.b16 %v1739
        %v1758 = vunpack.c.l.b16 %v1740
        %v1759 = vpack.c.b16 %v1751, %v1750
        %v1760 = vpack.c.b16 %v1753, %v1752
        %v1761 = vpack.c.b16 %v1755, %v1754
        %v1762 = vpack.c.b16 %v1757, %v1756
        %v1763 = vpack.c.b16 %v1758, %v1758
        %v1769 = vsel %vm1357, %v1730, 0
        %v1772 = vsel %vm415, %v1763, 0
        %1774 = vmatprep.subr.bf16.mxu0 0
        %1775 = vmatpush1.bf16.msra.mxu0 %v1759
        %1776 = vmatprep.subr.bf16.mxu0 0
        %1777 = vmatpush1.bf16.msra.mxu0 %v1760
        %1778 = vmatprep.subr.bf16.mxu0 0
        %1779 = vmatpush1.bf16.msra.mxu0 %v1761
        %1780 = vmatprep.subr.bf16.mxu0 0
        %1781 = vmatpush1.bf16.msra.mxu0 %v1762
        %1782 = vmatprep.subr.bf16.mxu0 0
        %1783 = vmatpush1.bf16.msra.mxu0 %v1772
        %1784 = vmatprep.subr.bf16.mxu0 0
        %1785 = vmatpush1.bf16.msra.mxu0 0
        %1786 = vmatprep.subr.bf16.mxu0 0
        %1787 = vmatpush1.bf16.msra.mxu0 0
        %1788 = vmatprep.subr.bf16.mxu0 0
        %1789 = vmatpush1.bf16.msra.mxu0 0
        %1790 = vmatprep.subr.bf16.mxu0 0
        %1791 = vmatpush1.bf16.msra.mxu0 0
        %1792 = vmatprep.subr.bf16.mxu0 0
        %1793 = vmatpush1.bf16.msra.mxu0 0
        %1794 = vmatprep.subr.bf16.mxu0 0
        %1795 = vmatpush1.bf16.msra.mxu0 0
        %1796 = vmatprep.subr.bf16.mxu0 0
        %1797 = vmatpush1.bf16.msra.mxu0 0
        %1798 = vmatprep.subr.bf16.mxu0 0
        %1799 = vmatpush1.bf16.msra.mxu0 0
        %1800 = vmatprep.subr.bf16.mxu0 0
        %1801 = vmatpush1.bf16.msra.mxu0 0
        %1802 = vmatprep.subr.bf16.mxu0 0
        %1803 = vmatpush1.bf16.msra.mxu0 0
        %1804 = vmatprep.subr.bf16.mxu0 0
        %1805 = vmatpush1.bf16.msra.mxu0 0
        %1806 = vmatprep.mubr.bf16.mxu0 0
        %1807 = vmatmul.mubr.bf16.gmra.mrb[0].mxu0 %v1769
        %v1808 = vpop.f32.mrb[0].mxu0
        %v1809 = vadd.f32 0.0, %v1808
        %v1810 = vpop.f32.mrb[0].mxu0
        %v1811 = vpop.f32.mrb[0].mxu0
        %v1812 = vpop.f32.mrb[0].mxu0
        %1813 = vdwg.mxu0
        %v1814 = vadd.f32 %v1574, %v1809
        %s1815 = scalar_lea.vmem %s3, 180
        %v1816 = vld [vmem:[%s1815] sm:$0xf]
        %v1817 = vld [vmem:[%s1815 + $0x4] sm:$0xf]
        %v1818 = vld [vmem:[%s1815 + $0x8] sm:$0xf]
        %v1819 = vld [vmem:[%s1815 + $0xc] sm:$0xf]
        %v1820 = vld [vmem:[%s1815 + $0x10] sm:$0xf]
        %v1821 = vld [vmem:[%s1815 + $0x14] sm:$0xf]
        %v1822 = vld [vmem:[%s1815 + $0x18] sm:$0xf]
        %v1823 = vld [vmem:[%s1815 + $0x1c] sm:$0xf]
        %v1824 = vld [vmem:[%s1815 + $0x20] sm:$0xf]
        %v1834 = vunpack.c.l.b16 %v1816
        %v1835 = vunpack.c.l.b16 %v1817
        %v1836 = vunpack.c.l.b16 %v1818
        %v1837 = vunpack.c.l.b16 %v1819
        %v1838 = vunpack.c.l.b16 %v1820
        %v1839 = vunpack.c.l.b16 %v1821
        %v1840 = vunpack.c.l.b16 %v1822
        %v1841 = vunpack.c.l.b16 %v1823
        %v1842 = vunpack.c.l.b16 %v1824
        %v1843 = vpack.c.b16 %v1835, %v1834
        %v1844 = vpack.c.b16 %v1837, %v1836
        %v1845 = vpack.c.b16 %v1839, %v1838
        %v1846 = vpack.c.b16 %v1841, %v1840
        %v1847 = vpack.c.b16 %v1842, %v1842
        %v1853 = vsel %vm415, %v1847, 0
        %1855 = vmatprep.subr.bf16.mxu0 0
        %1856 = vmatpush1.bf16.msra.mxu0 %v1843
        %1857 = vmatprep.subr.bf16.mxu0 0
        %1858 = vmatpush1.bf16.msra.mxu0 %v1844
        %1859 = vmatprep.subr.bf16.mxu0 0
        %1860 = vmatpush1.bf16.msra.mxu0 %v1845
        %1861 = vmatprep.subr.bf16.mxu0 0
        %1862 = vmatpush1.bf16.msra.mxu0 %v1846
        %1863 = vmatprep.subr.bf16.mxu0 0
        %1864 = vmatpush1.bf16.msra.mxu0 %v1853
        %1865 = vmatprep.subr.bf16.mxu0 0
        %1866 = vmatpush1.bf16.msra.mxu0 0
        %1867 = vmatprep.subr.bf16.mxu0 0
        %1868 = vmatpush1.bf16.msra.mxu0 0
        %1869 = vmatprep.subr.bf16.mxu0 0
        %1870 = vmatpush1.bf16.msra.mxu0 0
        %1871 = vmatprep.subr.bf16.mxu0 0
        %1872 = vmatpush1.bf16.msra.mxu0 0
        %1873 = vmatprep.subr.bf16.mxu0 0
        %1874 = vmatpush1.bf16.msra.mxu0 0
        %1875 = vmatprep.subr.bf16.mxu0 0
        %1876 = vmatpush1.bf16.msra.mxu0 0
        %1877 = vmatprep.subr.bf16.mxu0 0
        %1878 = vmatpush1.bf16.msra.mxu0 0
        %1879 = vmatprep.subr.bf16.mxu0 0
        %1880 = vmatpush1.bf16.msra.mxu0 0
        %1881 = vmatprep.subr.bf16.mxu0 0
        %1882 = vmatpush1.bf16.msra.mxu0 0
        %1883 = vmatprep.subr.bf16.mxu0 0
        %1884 = vmatpush1.bf16.msra.mxu0 0
        %1885 = vmatprep.subr.bf16.mxu0 0
        %1886 = vmatpush1.bf16.msra.mxu0 0
        %1887 = vmatprep.mubr.bf16.mxu0 0
        %1888 = vmatmul.mubr.bf16.gmra.mrb[0].mxu0 %v1769
        %v1889 = vpop.f32.mrb[0].mxu0
        %v1890 = vadd.f32 0.0, %v1889
        %v1891 = vpop.f32.mrb[0].mxu0
        %v1892 = vpop.f32.mrb[0].mxu0
        %v1893 = vpop.f32.mrb[0].mxu0
        %1894 = vdwg.mxu0
        %v1895 = vadd.f32 %v1724, %v1890
        %v1896 = vld [vmem:[#allocation4 + $0x3] sm:$0xff]
        %v1897 = vpack.c.bf16 %v1896, %v1896
        %s1898 = scalar_lea.vmem %s3, 216
        %v1899 = vld [vmem:[%s1898] sm:$0xf]
        %v1900 = vld [vmem:[%s1898 + $0x4] sm:$0xf]
        %v1901 = vld [vmem:[%s1898 + $0x8] sm:$0xf]
        %v1902 = vld [vmem:[%s1898 + $0xc] sm:$0xf]
        %v1903 = vld [vmem:[%s1898 + $0x10] sm:$0xf]
        %v1904 = vld [vmem:[%s1898 + $0x14] sm:$0xf]
        %v1905 = vld [vmem:[%s1898 + $0x18] sm:$0xf]
        %v1906 = vld [vmem:[%s1898 + $0x1c] sm:$0xf]
        %v1907 = vld [vmem:[%s1898 + $0x20] sm:$0xf]
        %v1917 = vunpack.c.l.b16 %v1899
        %v1918 = vunpack.c.l.b16 %v1900
        %v1919 = vunpack.c.l.b16 %v1901
        %v1920 = vunpack.c.l.b16 %v1902
        %v1921 = vunpack.c.l.b16 %v1903
        %v1922 = vunpack.c.l.b16 %v1904
        %v1923 = vunpack.c.l.b16 %v1905
        %v1924 = vunpack.c.l.b16 %v1906
        %v1925 = vunpack.c.l.b16 %v1907
        %v1926 = vpack.c.b16 %v1918, %v1917
        %v1927 = vpack.c.b16 %v1920, %v1919
        %v1928 = vpack.c.b16 %v1922, %v1921
        %v1929 = vpack.c.b16 %v1924, %v1923
        %v1930 = vpack.c.b16 %v1925, %v1925
        %v1936 = vsel %vm1357, %v1897, 0
        %v1939 = vsel %vm415, %v1930, 0
        %1941 = vmatprep.subr.bf16.mxu0 0
        %1942 = vmatpush1.bf16.msra.mxu0 %v1926
        %1943 = vmatprep.subr.bf16.mxu0 0
        %1944 = vmatpush1.bf16.msra.mxu0 %v1927
        %1945 = vmatprep.subr.bf16.mxu0 0
        %1946 = vmatpush1.bf16.msra.mxu0 %v1928
        %1947 = vmatprep.subr.bf16.mxu0 0
        %1948 = vmatpush1.bf16.msra.mxu0 %v1929
        %1949 = vmatprep.subr.bf16.mxu0 0
        %1950 = vmatpush1.bf16.msra.mxu0 %v1939
        %1951 = vmatprep.subr.bf16.mxu0 0
        %1952 = vmatpush1.bf16.msra.mxu0 0
        %1953 = vmatprep.subr.bf16.mxu0 0
        %1954 = vmatpush1.bf16.msra.mxu0 0
        %1955 = vmatprep.subr.bf16.mxu0 0
        %1956 = vmatpush1.bf16.msra.mxu0 0
        %1957 = vmatprep.subr.bf16.mxu0 0
        %1958 = vmatpush1.bf16.msra.mxu0 0
        %1959 = vmatprep.subr.bf16.mxu0 0
        %1960 = vmatpush1.bf16.msra.mxu0 0
        %1961 = vmatprep.subr.bf16.mxu0 0
        %1962 = vmatpush1.bf16.msra.mxu0 0
        %1963 = vmatprep.subr.bf16.mxu0 0
        %1964 = vmatpush1.bf16.msra.mxu0 0
        %1965 = vmatprep.subr.bf16.mxu0 0
        %1966 = vmatpush1.bf16.msra.mxu0 0
        %1967 = vmatprep.subr.bf16.mxu0 0
        %1968 = vmatpush1.bf16.msra.mxu0 0
        %1969 = vmatprep.subr.bf16.mxu0 0
        %1970 = vmatpush1.bf16.msra.mxu0 0
        %1971 = vmatprep.subr.bf16.mxu0 0
        %1972 = vmatpush1.bf16.msra.mxu0 0
        %1973 = vmatprep.mubr.bf16.mxu0 0
        %1974 = vmatmul.mubr.bf16.gmra.mrb[0].mxu0 %v1936
        %v1975 = vpop.f32.mrb[0].mxu0
        %v1976 = vadd.f32 0.0, %v1975
        %v1977 = vpop.f32.mrb[0].mxu0
        %v1978 = vpop.f32.mrb[0].mxu0
        %v1979 = vpop.f32.mrb[0].mxu0
        %1980 = vdwg.mxu0
        %v1981 = vadd.f32 %v1814, %v1976
        %s1982 = scalar_lea.vmem %s3, 252
        %v1983 = vld [vmem:[%s1982] sm:$0xf]
        %v1984 = vld [vmem:[%s1982 + $0x4] sm:$0xf]
        %v1985 = vld [vmem:[%s1982 + $0x8] sm:$0xf]
        %v1986 = vld [vmem:[%s1982 + $0xc] sm:$0xf]
        %v1987 = vld [vmem:[%s1982 + $0x10] sm:$0xf]
        %v1988 = vld [vmem:[%s1982 + $0x14] sm:$0xf]
        %v1989 = vld [vmem:[%s1982 + $0x18] sm:$0xf]
        %v1990 = vld [vmem:[%s1982 + $0x1c] sm:$0xf]
        %v1991 = vld [vmem:[%s1982 + $0x20] sm:$0xf]
        %v2001 = vunpack.c.l.b16 %v1983
        %v2002 = vunpack.c.l.b16 %v1984
        %v2003 = vunpack.c.l.b16 %v1985
        %v2004 = vunpack.c.l.b16 %v1986
        %v2005 = vunpack.c.l.b16 %v1987
        %v2006 = vunpack.c.l.b16 %v1988
        %v2007 = vunpack.c.l.b16 %v1989
        %v2008 = vunpack.c.l.b16 %v1990
        %v2009 = vunpack.c.l.b16 %v1991
        %v2010 = vpack.c.b16 %v2002, %v2001
        %v2011 = vpack.c.b16 %v2004, %v2003
        %v2012 = vpack.c.b16 %v2006, %v2005
        %v2013 = vpack.c.b16 %v2008, %v2007
        %v2014 = vpack.c.b16 %v2009, %v2009
        %v2020 = vsel %vm415, %v2014, 0
        %2022 = vmatprep.subr.bf16.mxu0 0
        %2023 = vmatpush1.bf16.msra.mxu0 %v2010
        %2024 = vmatprep.subr.bf16.mxu0 0
        %2025 = vmatpush1.bf16.msra.mxu0 %v2011
        %2026 = vmatprep.subr.bf16.mxu0 0
        %2027 = vmatpush1.bf16.msra.mxu0 %v2012
        %2028 = vmatprep.subr.bf16.mxu0 0
        %2029 = vmatpush1.bf16.msra.mxu0 %v2013
        %2030 = vmatprep.subr.bf16.mxu0 0
        %2031 = vmatpush1.bf16.msra.mxu0 %v2020
        %2032 = vmatprep.subr.bf16.mxu0 0
        %2033 = vmatpush1.bf16.msra.mxu0 0
        %2034 = vmatprep.subr.bf16.mxu0 0
        %2035 = vmatpush1.bf16.msra.mxu0 0
        %2036 = vmatprep.subr.bf16.mxu0 0
        %2037 = vmatpush1.bf16.msra.mxu0 0
        %2038 = vmatprep.subr.bf16.mxu0 0
        %2039 = vmatpush1.bf16.msra.mxu0 0
        %2040 = vmatprep.subr.bf16.mxu0 0
        %2041 = vmatpush1.bf16.msra.mxu0 0
        %2042 = vmatprep.subr.bf16.mxu0 0
        %2043 = vmatpush1.bf16.msra.mxu0 0
        %2044 = vmatprep.subr.bf16.mxu0 0
        %2045 = vmatpush1.bf16.msra.mxu0 0
        %2046 = vmatprep.subr.bf16.mxu0 0
        %2047 = vmatpush1.bf16.msra.mxu0 0
        %2048 = vmatprep.subr.bf16.mxu0 0
        %2049 = vmatpush1.bf16.msra.mxu0 0
        %2050 = vmatprep.subr.bf16.mxu0 0
        %2051 = vmatpush1.bf16.msra.mxu0 0
        %2052 = vmatprep.subr.bf16.mxu0 0
        %2053 = vmatpush1.bf16.msra.mxu0 0
        %2054 = vmatprep.mubr.bf16.mxu0 0
        %2055 = vmatmul.mubr.bf16.gmra.mrb[0].mxu0 %v1936
        %v2056 = vpop.f32.mrb[0].mxu0
        %v2057 = vadd.f32 0.0, %v2056
        %v2058 = vpop.f32.mrb[0].mxu0
        %v2059 = vpop.f32.mrb[0].mxu0
        %v2060 = vpop.f32.mrb[0].mxu0
        %2061 = vdwg.mxu0
        %v2062 = vadd.f32 %v1895, %v2057
        %v2063 = vld [vmem:[#allocation4 + $0x4] sm:$0xff]
        %v2064 = vpack.c.bf16 %v2063, %v2063
        %s2065 = scalar_lea.vmem %s3, 288
        %v2066 = vld [vmem:[%s2065] sm:$0xf]
        %v2067 = vld [vmem:[%s2065 + $0x4] sm:$0xf]
        %v2068 = vld [vmem:[%s2065 + $0x8] sm:$0xf]
        %v2069 = vld [vmem:[%s2065 + $0xc] sm:$0xf]
        %v2070 = vld [vmem:[%s2065 + $0x10] sm:$0xf]
        %v2071 = vld [vmem:[%s2065 + $0x14] sm:$0xf]
        %v2072 = vld [vmem:[%s2065 + $0x18] sm:$0xf]
        %v2073 = vld [vmem:[%s2065 + $0x1c] sm:$0xf]
        %v2074 = vld [vmem:[%s2065 + $0x20] sm:$0xf]
        %v2084 = vunpack.c.l.b16 %v2066
        %v2085 = vunpack.c.l.b16 %v2067
        %v2086 = vunpack.c.l.b16 %v2068
        %v2087 = vunpack.c.l.b16 %v2069
        %v2088 = vunpack.c.l.b16 %v2070
        %v2089 = vunpack.c.l.b16 %v2071
        %v2090 = vunpack.c.l.b16 %v2072
        %v2091 = vunpack.c.l.b16 %v2073
        %v2092 = vunpack.c.l.b16 %v2074
        %v2093 = vpack.c.b16 %v2085, %v2084
        %v2094 = vpack.c.b16 %v2087, %v2086
        %v2095 = vpack.c.b16 %v2089, %v2088
        %v2096 = vpack.c.b16 %v2091, %v2090
        %v2097 = vpack.c.b16 %v2092, %v2092
        %v2103 = vsel %vm1357, %v2064, 0
        %v2106 = vsel %vm415, %v2097, 0
        %2108 = vmatprep.subr.bf16.mxu0 0
        %2109 = vmatpush1.bf16.msra.mxu0 %v2093
        %2110 = vmatprep.subr.bf16.mxu0 0
        %2111 = vmatpush1.bf16.msra.mxu0 %v2094
        %2112 = vmatprep.subr.bf16.mxu0 0
        %2113 = vmatpush1.bf16.msra.mxu0 %v2095
        %2114 = vmatprep.subr.bf16.mxu0 0
        %2115 = vmatpush1.bf16.msra.mxu0 %v2096
        %2116 = vmatprep.subr.bf16.mxu0 0
        %2117 = vmatpush1.bf16.msra.mxu0 %v2106
        %2118 = vmatprep.subr.bf16.mxu0 0
        %2119 = vmatpush1.bf16.msra.mxu0 0
        %2120 = vmatprep.subr.bf16.mxu0 0
        %2121 = vmatpush1.bf16.msra.mxu0 0
        %2122 = vmatprep.subr.bf16.mxu0 0
        %2123 = vmatpush1.bf16.msra.mxu0 0
        %2124 = vmatprep.subr.bf16.mxu0 0
        %2125 = vmatpush1.bf16.msra.mxu0 0
        %2126 = vmatprep.subr.bf16.mxu0 0
        %2127 = vmatpush1.bf16.msra.mxu0 0
        %2128 = vmatprep.subr.bf16.mxu0 0
        %2129 = vmatpush1.bf16.msra.mxu0 0
        %2130 = vmatprep.subr.bf16.mxu0 0
        %2131 = vmatpush1.bf16.msra.mxu0 0
        %2132 = vmatprep.subr.bf16.mxu0 0
        %2133 = vmatpush1.bf16.msra.mxu0 0
        %2134 = vmatprep.subr.bf16.mxu0 0
        %2135 = vmatpush1.bf16.msra.mxu0 0
        %2136 = vmatprep.subr.bf16.mxu0 0
        %2137 = vmatpush1.bf16.msra.mxu0 0
        %2138 = vmatprep.subr.bf16.mxu0 0
        %2139 = vmatpush1.bf16.msra.mxu0 0
        %2140 = vmatprep.mubr.bf16.mxu0 0
        %2141 = vmatmul.mubr.bf16.gmra.mrb[0].mxu0 %v2103
        %v2142 = vpop.f32.mrb[0].mxu0
        %v2143 = vadd.f32 0.0, %v2142
        %v2144 = vpop.f32.mrb[0].mxu0
        %v2145 = vpop.f32.mrb[0].mxu0
        %v2146 = vpop.f32.mrb[0].mxu0
        %2147 = vdwg.mxu0
        %v2148 = vadd.f32 %v1981, %v2143
        %s2149 = scalar_lea.vmem %s3, 324
        %v2150 = vld [vmem:[%s2149] sm:$0xf]
        %v2151 = vld [vmem:[%s2149 + $0x4] sm:$0xf]
        %v2152 = vld [vmem:[%s2149 + $0x8] sm:$0xf]
        %v2153 = vld [vmem:[%s2149 + $0xc] sm:$0xf]
        %v2154 = vld [vmem:[%s2149 + $0x10] sm:$0xf]
        %v2155 = vld [vmem:[%s2149 + $0x14] sm:$0xf]
        %v2156 = vld [vmem:[%s2149 + $0x18] sm:$0xf]
        %v2157 = vld [vmem:[%s2149 + $0x1c] sm:$0xf]
        %v2158 = vld [vmem:[%s2149 + $0x20] sm:$0xf]
        %v2168 = vunpack.c.l.b16 %v2150
        %v2169 = vunpack.c.l.b16 %v2151
        %v2170 = vunpack.c.l.b16 %v2152
        %v2171 = vunpack.c.l.b16 %v2153
        %v2172 = vunpack.c.l.b16 %v2154
        %v2173 = vunpack.c.l.b16 %v2155
        %v2174 = vunpack.c.l.b16 %v2156
        %v2175 = vunpack.c.l.b16 %v2157
        %v2176 = vunpack.c.l.b16 %v2158
        %v2177 = vpack.c.b16 %v2169, %v2168
        %v2178 = vpack.c.b16 %v2171, %v2170
        %v2179 = vpack.c.b16 %v2173, %v2172
        %v2180 = vpack.c.b16 %v2175, %v2174
        %v2181 = vpack.c.b16 %v2176, %v2176
        %v2187 = vsel %vm415, %v2181, 0
        %2189 = vmatprep.subr.bf16.mxu0 0
        %2190 = vmatpush1.bf16.msra.mxu0 %v2177
        %2191 = vmatprep.subr.bf16.mxu0 0
        %2192 = vmatpush1.bf16.msra.mxu0 %v2178
        %2193 = vmatprep.subr.bf16.mxu0 0
        %2194 = vmatpush1.bf16.msra.mxu0 %v2179
        %2195 = vmatprep.subr.bf16.mxu0 0
        %2196 = vmatpush1.bf16.msra.mxu0 %v2180
        %2197 = vmatprep.subr.bf16.mxu0 0
        %2198 = vmatpush1.bf16.msra.mxu0 %v2187
        %2199 = vmatprep.subr.bf16.mxu0 0
        %2200 = vmatpush1.bf16.msra.mxu0 0
        %2201 = vmatprep.subr.bf16.mxu0 0
        %2202 = vmatpush1.bf16.msra.mxu0 0
        %2203 = vmatprep.subr.bf16.mxu0 0
        %2204 = vmatpush1.bf16.msra.mxu0 0
        %2205 = vmatprep.subr.bf16.mxu0 0
        %2206 = vmatpush1.bf16.msra.mxu0 0
        %2207 = vmatprep.subr.bf16.mxu0 0
        %2208 = vmatpush1.bf16.msra.mxu0 0
        %2209 = vmatprep.subr.bf16.mxu0 0
        %2210 = vmatpush1.bf16.msra.mxu0 0
        %2211 = vmatprep.subr.bf16.mxu0 0
        %2212 = vmatpush1.bf16.msra.mxu0 0
        %2213 = vmatprep.subr.bf16.mxu0 0
        %2214 = vmatpush1.bf16.msra.mxu0 0
        %2215 = vmatprep.subr.bf16.mxu0 0
        %2216 = vmatpush1.bf16.msra.mxu0 0
        %2217 = vmatprep.subr.bf16.mxu0 0
        %2218 = vmatpush1.bf16.msra.mxu0 0
        %2219 = vmatprep.subr.bf16.mxu0 0
        %2220 = vmatpush1.bf16.msra.mxu0 0
        %2221 = vmatprep.mubr.bf16.mxu0 0
        %2222 = vmatmul.mubr.bf16.gmra.mrb[0].mxu0 %v2103
        %v2223 = vpop.f32.mrb[0].mxu0
        %v2224 = vadd.f32 0.0, %v2223
        %v2225 = vpop.f32.mrb[0].mxu0
        %v2226 = vpop.f32.mrb[0].mxu0
        %v2227 = vpop.f32.mrb[0].mxu0
        %2228 = vdwg.mxu0
        %v2229 = vadd.f32 %v2062, %v2224
        %v2230 = vld [vmem:[%s4] sm:$0x1]
        %v2232 = vlaneseq
        %v2233 = vshrl.u32 %v2232, 7
        %v2234 = vsub.s32 0, %v2233
        %v2235 = vrot.slane %v2230, %v2234
        %v2237 = vadd.f32 %v2148, %v2235
        %v2238 = vmax.f32 %v2237, 0.0
        %vm2239 = vcmask 523264
        %2240 = vst.msk [vmem:[#allocation5] sm:$0xff] %vm2239, %v2238
        %v2241 = vld [vmem:[%s4] sm:$0x1]
        %v2243 = vlaneseq
        %v2244 = vshrl.u32 %v2243, 7
        %v2245 = vsub.s32 0, %v2244
        %v2246 = vrot.slane %v2241, %v2245
        %v2248 = vadd.f32 %v2229, %v2246
        %v2249 = vmax.f32 %v2248, 0.0
        %2250 = vst.msk [vmem:[#allocation6] sm:$0xff] %vm2239, %v2249
        %v2251 = vld [vmem:[#allocation5] ss:$2 sm:$0xf]
        %s2252 = scalar_lea.vmem [#allocation5], 1
        %v2253 = vld [vmem:[%s2252] ss:$2 sm:$0xf]
        %v2254 = vmax.f32 %v2251, %v2253
        %v2255 = vld [vmem:[#allocation6] ss:$2 sm:$0xf]
        %s2256 = scalar_lea.vmem [#allocation6], 1
        %v2257 = vld [vmem:[%s2256] ss:$2 sm:$0xf]
        %v2258 = vmax.f32 %v2255, %v2257
        %v2259 = vmax.f32 %v2254, %v2258
        %vm2260 = vcmask 519168
        %2261 = vst.msk [vmem:[#allocation7] sm:$0xf] %vm2260, %v2259
        %v2262 = vld [vmem:[#allocation7] sm:$0x1]
        %v2263 = vpack.c.bf16 %v2262, %v2262
        %v2264 = vld [vmem:[%s5] sm:$0xf]
        %v2265 = vld [vmem:[%s5 + $0x4] sm:$0xf]
        %v2266 = vld [vmem:[%s5 + $0x8] sm:$0xf]
        %v2267 = vld [vmem:[%s5 + $0xc] sm:$0xf]
        %v2268 = vld [vmem:[%s5 + $0x10] sm:$0xf]
        %v2269 = vld [vmem:[%s5 + $0x14] sm:$0xf]
        %v2270 = vld [vmem:[%s5 + $0x18] sm:$0xf]
        %v2271 = vld [vmem:[%s5 + $0x1c] sm:$0xf]
        %v2272 = vld [vmem:[#allocation7 + $0x1] sm:$0x1]
        %v2273 = vpack.c.bf16 %v2272, %v2272
        %s2274 = scalar_lea.vmem %s5, 32
        %v2275 = vld [vmem:[%s2274] sm:$0xf]
        %v2276 = vld [vmem:[%s2274 + $0x4] sm:$0xf]
        %v2277 = vld [vmem:[%s2274 + $0x8] sm:$0xf]
        %v2278 = vld [vmem:[%s2274 + $0xc] sm:$0xf]
        %v2279 = vld [vmem:[%s2274 + $0x10] sm:$0xf]
        %v2280 = vld [vmem:[%s2274 + $0x14] sm:$0xf]
        %v2281 = vld [vmem:[%s2274 + $0x18] sm:$0xf]
        %v2282 = vld [vmem:[%s2274 + $0x1c] sm:$0xf]
        %v2291 = vunpack.c.l.b16 %v2275
        %v2292 = vunpack.c.l.b16 %v2276
        %v2293 = vunpack.c.l.b16 %v2277
        %v2294 = vunpack.c.l.b16 %v2278
        %v2295 = vunpack.c.l.b16 %v2279
        %v2296 = vunpack.c.l.b16 %v2280
        %v2297 = vunpack.c.l.b16 %v2281
        %v2298 = vunpack.c.l.b16 %v2282
        %v2299 = vpack.c.b16 %v2292, %v2291
        %v2300 = vpack.c.b16 %v2294, %v2293
        %v2301 = vpack.c.b16 %v2296, %v2295
        %v2302 = vpack.c.b16 %v2298, %v2297
        %v2308 = vsel %vm2239, %v2273, 0
        %2310 = vmatprep.subr.bf16.mxu0 0
        %2311 = vmatpush1.bf16.msra.mxu0 %v2299
        %2312 = vmatprep.subr.bf16.mxu0 0
        %2313 = vmatpush1.bf16.msra.mxu0 %v2300
        %2314 = vmatprep.subr.bf16.mxu0 0
        %2315 = vmatpush1.bf16.msra.mxu0 %v2301
        %2316 = vmatprep.subr.bf16.mxu0 0
        %2317 = vmatpush1.bf16.msra.mxu0 %v2302
        %2318 = vmatprep.subr.bf16.mxu0 0
        %2319 = vmatpush1.bf16.msra.mxu0 0
        %2320 = vmatprep.subr.bf16.mxu0 0
        %2321 = vmatpush1.bf16.msra.mxu0 0
        %2322 = vmatprep.subr.bf16.mxu0 0
        %2323 = vmatpush1.bf16.msra.mxu0 0
        %2324 = vmatprep.subr.bf16.mxu0 0
        %2325 = vmatpush1.bf16.msra.mxu0 0
        %2326 = vmatprep.subr.bf16.mxu0 0
        %2327 = vmatpush1.bf16.msra.mxu0 0
        %2328 = vmatprep.subr.bf16.mxu0 0
        %2329 = vmatpush1.bf16.msra.mxu0 0
        %2330 = vmatprep.subr.bf16.mxu0 0
        %2331 = vmatpush1.bf16.msra.mxu0 0
        %2332 = vmatprep.subr.bf16.mxu0 0
        %2333 = vmatpush1.bf16.msra.mxu0 0
        %2334 = vmatprep.subr.bf16.mxu0 0
        %2335 = vmatpush1.bf16.msra.mxu0 0
        %2336 = vmatprep.subr.bf16.mxu0 0
        %2337 = vmatpush1.bf16.msra.mxu0 0
        %2338 = vmatprep.subr.bf16.mxu0 0
        %2339 = vmatpush1.bf16.msra.mxu0 0
        %2340 = vmatprep.subr.bf16.mxu0 0
        %2341 = vmatpush1.bf16.msra.mxu0 0
        %2342 = vmatprep.mubr.bf16.mxu0 0
        %2343 = vmatmul.mubr.bf16.gmra.mrb[0].mxu0 %v2308
        %v2344 = vpop.f32.mrb[0].mxu0
        %v2345 = vadd.f32 0.0, %v2344
        %v2346 = vpop.f32.mrb[0].mxu0
        %v2347 = vpop.f32.mrb[0].mxu0
        %v2348 = vpop.f32.mrb[0].mxu0
        %2349 = vdwg.mxu0
        %v2358 = vunpack.c.l.b16 %v2264
        %v2359 = vunpack.c.l.b16 %v2265
        %v2360 = vunpack.c.l.b16 %v2266
        %v2361 = vunpack.c.l.b16 %v2267
        %v2362 = vunpack.c.l.b16 %v2268
        %v2363 = vunpack.c.l.b16 %v2269
        %v2364 = vunpack.c.l.b16 %v2270
        %v2365 = vunpack.c.l.b16 %v2271
        %v2366 = vpack.c.b16 %v2359, %v2358
        %v2367 = vpack.c.b16 %v2361, %v2360
        %v2368 = vpack.c.b16 %v2363, %v2362
        %v2369 = vpack.c.b16 %v2365, %v2364
        %v2375 = vsel %vm2239, %v2263, 0
        %2377 = vmatprep.subr.bf16.mxu0 0
        %2378 = vmatpush1.bf16.msra.mxu0 %v2366
        %2379 = vmatprep.subr.bf16.mxu0 0
        %2380 = vmatpush1.bf16.msra.mxu0 %v2367
        %2381 = vmatprep.subr.bf16.mxu0 0
        %2382 = vmatpush1.bf16.msra.mxu0 %v2368
        %2383 = vmatprep.subr.bf16.mxu0 0
        %2384 = vmatpush1.bf16.msra.mxu0 %v2369
        %2385 = vmatprep.subr.bf16.mxu0 0
        %2386 = vmatpush1.bf16.msra.mxu0 0
        %2387 = vmatprep.subr.bf16.mxu0 0
        %2388 = vmatpush1.bf16.msra.mxu0 0
        %2389 = vmatprep.subr.bf16.mxu0 0
        %2390 = vmatpush1.bf16.msra.mxu0 0
        %2391 = vmatprep.subr.bf16.mxu0 0
        %2392 = vmatpush1.bf16.msra.mxu0 0
        %2393 = vmatprep.subr.bf16.mxu0 0
        %2394 = vmatpush1.bf16.msra.mxu0 0
        %2395 = vmatprep.subr.bf16.mxu0 0
        %2396 = vmatpush1.bf16.msra.mxu0 0
        %2397 = vmatprep.subr.bf16.mxu0 0
        %2398 = vmatpush1.bf16.msra.mxu0 0
        %2399 = vmatprep.subr.bf16.mxu0 0
        %2400 = vmatpush1.bf16.msra.mxu0 0
        %2401 = vmatprep.subr.bf16.mxu0 0
        %2402 = vmatpush1.bf16.msra.mxu0 0
        %2403 = vmatprep.subr.bf16.mxu0 0
        %2404 = vmatpush1.bf16.msra.mxu0 0
        %2405 = vmatprep.subr.bf16.mxu0 0
        %2406 = vmatpush1.bf16.msra.mxu0 0
        %2407 = vmatprep.subr.bf16.mxu0 0
        %2408 = vmatpush1.bf16.msra.mxu0 0
        %2409 = vmatprep.mubr.bf16.mxu0 0
        %2410 = vmatmul.mubr.bf16.gmra.mrb[0].mxu0 %v2375
        %v2411 = vpop.f32.mrb[0].mxu0
        %v2412 = vadd.f32 %v2345, %v2411
        %v2413 = vpop.f32.mrb[0].mxu0
        %v2414 = vpop.f32.mrb[0].mxu0
        %v2415 = vpop.f32.mrb[0].mxu0
        %2416 = vdwg.mxu0
        %v2417 = vld [vmem:[#allocation7 + $0x2] sm:$0x1]
        %v2418 = vpack.c.bf16 %v2417, %v2417
        %s2419 = scalar_lea.vmem %s5, 64
        %v2420 = vld [vmem:[%s2419] sm:$0xf]
        %v2421 = vld [vmem:[%s2419 + $0x4] sm:$0xf]
        %v2422 = vld [vmem:[%s2419 + $0x8] sm:$0xf]
        %v2423 = vld [vmem:[%s2419 + $0xc] sm:$0xf]
        %v2424 = vld [vmem:[%s2419 + $0x10] sm:$0xf]
        %v2425 = vld [vmem:[%s2419 + $0x14] sm:$0xf]
        %v2426 = vld [vmem:[%s2419 + $0x18] sm:$0xf]
        %v2427 = vld [vmem:[%s2419 + $0x1c] sm:$0xf]
        %v2436 = vunpack.c.l.b16 %v2420
        %v2437 = vunpack.c.l.b16 %v2421
        %v2438 = vunpack.c.l.b16 %v2422
        %v2439 = vunpack.c.l.b16 %v2423
        %v2440 = vunpack.c.l.b16 %v2424
        %v2441 = vunpack.c.l.b16 %v2425
        %v2442 = vunpack.c.l.b16 %v2426
        %v2443 = vunpack.c.l.b16 %v2427
        %v2444 = vpack.c.b16 %v2437, %v2436
        %v2445 = vpack.c.b16 %v2439, %v2438
        %v2446 = vpack.c.b16 %v2441, %v2440
        %v2447 = vpack.c.b16 %v2443, %v2442
        %v2453 = vsel %vm2239, %v2418, 0
        %2455 = vmatprep.subr.bf16.mxu0 0
        %2456 = vmatpush1.bf16.msra.mxu0 %v2444
        %2457 = vmatprep.subr.bf16.mxu0 0
        %2458 = vmatpush1.bf16.msra.mxu0 %v2445
        %2459 = vmatprep.subr.bf16.mxu0 0
        %2460 = vmatpush1.bf16.msra.mxu0 %v2446
        %2461 = vmatprep.subr.bf16.mxu0 0
        %2462 = vmatpush1.bf16.msra.mxu0 %v2447
        %2463 = vmatprep.subr.bf16.mxu0 0
        %2464 = vmatpush1.bf16.msra.mxu0 0
        %2465 = vmatprep.subr.bf16.mxu0 0
        %2466 = vmatpush1.bf16.msra.mxu0 0
        %2467 = vmatprep.subr.bf16.mxu0 0
        %2468 = vmatpush1.bf16.msra.mxu0 0
        %2469 = vmatprep.subr.bf16.mxu0 0
        %2470 = vmatpush1.bf16.msra.mxu0 0
        %2471 = vmatprep.subr.bf16.mxu0 0
        %2472 = vmatpush1.bf16.msra.mxu0 0
        %2473 = vmatprep.subr.bf16.mxu0 0
        %2474 = vmatpush1.bf16.msra.mxu0 0
        %2475 = vmatprep.subr.bf16.mxu0 0
        %2476 = vmatpush1.bf16.msra.mxu0 0
        %2477 = vmatprep.subr.bf16.mxu0 0
        %2478 = vmatpush1.bf16.msra.mxu0 0
        %2479 = vmatprep.subr.bf16.mxu0 0
        %2480 = vmatpush1.bf16.msra.mxu0 0
        %2481 = vmatprep.subr.bf16.mxu0 0
        %2482 = vmatpush1.bf16.msra.mxu0 0
        %2483 = vmatprep.subr.bf16.mxu0 0
        %2484 = vmatpush1.bf16.msra.mxu0 0
        %2485 = vmatprep.subr.bf16.mxu0 0
        %2486 = vmatpush1.bf16.msra.mxu0 0
        %2487 = vmatprep.mubr.bf16.mxu0 0
        %2488 = vmatmul.mubr.bf16.gmra.mrb[0].mxu0 %v2453
        %v2489 = vpop.f32.mrb[0].mxu0
        %v2490 = vadd.f32 0.0, %v2489
        %v2491 = vpop.f32.mrb[0].mxu0
        %v2492 = vpop.f32.mrb[0].mxu0
        %v2493 = vpop.f32.mrb[0].mxu0
        %2494 = vdwg.mxu0
        %v2495 = vadd.f32 %v2412, %v2490
        %v2496 = vld [vmem:[#allocation7 + $0x3] sm:$0x1]
        %v2497 = vpack.c.bf16 %v2496, %v2496
        %s2498 = scalar_lea.vmem %s5, 96
        %v2499 = vld [vmem:[%s2498] sm:$0xf]
        %v2500 = vld [vmem:[%s2498 + $0x4] sm:$0xf]
        %v2501 = vld [vmem:[%s2498 + $0x8] sm:$0xf]
        %v2502 = vld [vmem:[%s2498 + $0xc] sm:$0xf]
        %v2503 = vld [vmem:[%s2498 + $0x10] sm:$0xf]
        %v2504 = vld [vmem:[%s2498 + $0x14] sm:$0xf]
        %v2505 = vld [vmem:[%s2498 + $0x18] sm:$0xf]
        %v2506 = vld [vmem:[%s2498 + $0x1c] sm:$0xf]
        %v2515 = vunpack.c.l.b16 %v2499
        %v2516 = vunpack.c.l.b16 %v2500
        %v2517 = vunpack.c.l.b16 %v2501
        %v2518 = vunpack.c.l.b16 %v2502
        %v2519 = vunpack.c.l.b16 %v2503
        %v2520 = vunpack.c.l.b16 %v2504
        %v2521 = vunpack.c.l.b16 %v2505
        %v2522 = vunpack.c.l.b16 %v2506
        %v2523 = vpack.c.b16 %v2516, %v2515
        %v2524 = vpack.c.b16 %v2518, %v2517
        %v2525 = vpack.c.b16 %v2520, %v2519
        %v2526 = vpack.c.b16 %v2522, %v2521
        %v2532 = vsel %vm2239, %v2497, 0
        %2534 = vmatprep.subr.bf16.mxu0 0
        %2535 = vmatpush1.bf16.msra.mxu0 %v2523
        %2536 = vmatprep.subr.bf16.mxu0 0
        %2537 = vmatpush1.bf16.msra.mxu0 %v2524
        %2538 = vmatprep.subr.bf16.mxu0 0
        %2539 = vmatpush1.bf16.msra.mxu0 %v2525
        %2540 = vmatprep.subr.bf16.mxu0 0
        %2541 = vmatpush1.bf16.msra.mxu0 %v2526
        %2542 = vmatprep.subr.bf16.mxu0 0
        %2543 = vmatpush1.bf16.msra.mxu0 0
        %2544 = vmatprep.subr.bf16.mxu0 0
        %2545 = vmatpush1.bf16.msra.mxu0 0
        %2546 = vmatprep.subr.bf16.mxu0 0
        %2547 = vmatpush1.bf16.msra.mxu0 0
        %2548 = vmatprep.subr.bf16.mxu0 0
        %2549 = vmatpush1.bf16.msra.mxu0 0
        %2550 = vmatprep.subr.bf16.mxu0 0
        %2551 = vmatpush1.bf16.msra.mxu0 0
        %2552 = vmatprep.subr.bf16.mxu0 0
        %2553 = vmatpush1.bf16.msra.mxu0 0
        %2554 = vmatprep.subr.bf16.mxu0 0
        %2555 = vmatpush1.bf16.msra.mxu0 0
        %2556 = vmatprep.subr.bf16.mxu0 0
        %2557 = vmatpush1.bf16.msra.mxu0 0
        %2558 = vmatprep.subr.bf16.mxu0 0
        %2559 = vmatpush1.bf16.msra.mxu0 0
        %2560 = vmatprep.subr.bf16.mxu0 0
        %2561 = vmatpush1.bf16.msra.mxu0 0
        %2562 = vmatprep.subr.bf16.mxu0 0
        %2563 = vmatpush1.bf16.msra.mxu0 0
        %2564 = vmatprep.subr.bf16.mxu0 0
        %2565 = vmatpush1.bf16.msra.mxu0 0
        %2566 = vmatprep.mubr.bf16.mxu0 0
        %2567 = vmatmul.mubr.bf16.gmra.mrb[0].mxu0 %v2532
        %v2568 = vpop.f32.mrb[0].mxu0
        %v2569 = vadd.f32 0.0, %v2568
        %v2570 = vpop.f32.mrb[0].mxu0
        %v2571 = vpop.f32.mrb[0].mxu0
        %v2572 = vpop.f32.mrb[0].mxu0
        %2573 = vdwg.mxu0
        %v2574 = vadd.f32 %v2495, %v2569
        %v2575 = vld [vmem:[%s6] sm:$0x1]
        %v2576 = vadd.f32 %v2574, %v2575
        %v2577 = vmax.f32 %v2576, 0.0
        %v2578 = vpack.c.bf16 %v2577, %v2577
        %v2579 = vld [vmem:[%s7] sm:$0xf]
        %v2580 = vld [vmem:[%s7 + $0x4] sm:$0xf]
        %v2581 = vld [vmem:[%s7 + $0x8] sm:$0xf]
        %v2582 = vld [vmem:[%s7 + $0xc] sm:$0xf]
        %v2583 = vld [vmem:[%s7 + $0x10] sm:$0xf]
        %v2584 = vld [vmem:[%s7 + $0x14] sm:$0xf]
        %v2585 = vld [vmem:[%s7 + $0x18] sm:$0xf]
        %v2586 = vld [vmem:[%s7 + $0x1c] sm:$0xf]
        %v2587 = vld [vmem:[%s7 + $0x20] sm:$0xf]
        %v2588 = vld [vmem:[%s7 + $0x24] sm:$0xf]
        %v2589 = vld [vmem:[%s7 + $0x28] sm:$0xf]
        %v2590 = vld [vmem:[%s7 + $0x2c] sm:$0xf]
        %v2591 = vld [vmem:[%s7 + $0x30] sm:$0xf]
        %v2592 = vld [vmem:[%s7 + $0x34] sm:$0xf]
        %v2593 = vld [vmem:[%s7 + $0x38] sm:$0xf]
        %v2594 = vld [vmem:[%s8] sm:$0x1]
        %v2610 = vunpack.c.l.b16 %v2579
        %v2611 = vunpack.c.l.b16 %v2580
        %v2612 = vunpack.c.l.b16 %v2581
        %v2613 = vunpack.c.l.b16 %v2582
        %v2614 = vunpack.c.l.b16 %v2583
        %v2615 = vunpack.c.l.b16 %v2584
        %v2616 = vunpack.c.l.b16 %v2585
        %v2617 = vunpack.c.l.b16 %v2586
        %v2618 = vunpack.c.l.b16 %v2587
        %v2619 = vunpack.c.l.b16 %v2588
        %v2620 = vunpack.c.l.b16 %v2589
        %v2621 = vunpack.c.l.b16 %v2590
        %v2622 = vunpack.c.l.b16 %v2591
        %v2623 = vunpack.c.l.b16 %v2592
        %v2624 = vunpack.c.l.b16 %v2593
        %v2625 = vpack.c.b16 %v2611, %v2610
        %v2626 = vpack.c.b16 %v2613, %v2612
        %v2627 = vpack.c.b16 %v2615, %v2614
        %v2628 = vpack.c.b16 %v2617, %v2616
        %v2629 = vpack.c.b16 %v2619, %v2618
        %v2630 = vpack.c.b16 %v2621, %v2620
        %v2631 = vpack.c.b16 %v2623, %v2622
        %v2632 = vpack.c.b16 %v2624, %v2624
        %vm2640 = vcmask 982016
        %v2642 = vsel %vm2640, %v2578, 0
        %v2645 = vsel %vm415, %v2632, 0
        %2647 = vmatprep.subr.bf16.mxu0 0
        %2648 = vmatpush1.bf16.msra.mxu0 %v2625
        %2649 = vmatprep.subr.bf16.mxu0 0
        %2650 = vmatpush1.bf16.msra.mxu0 %v2626
        %2651 = vmatprep.subr.bf16.mxu0 0
        %2652 = vmatpush1.bf16.msra.mxu0 %v2627
        %2653 = vmatprep.subr.bf16.mxu0 0
        %2654 = vmatpush1.bf16.msra.mxu0 %v2628
        %2655 = vmatprep.subr.bf16.mxu0 0
        %2656 = vmatpush1.bf16.msra.mxu0 %v2629
        %2657 = vmatprep.subr.bf16.mxu0 0
        %2658 = vmatpush1.bf16.msra.mxu0 %v2630
        %2659 = vmatprep.subr.bf16.mxu0 0
        %2660 = vmatpush1.bf16.msra.mxu0 %v2631
        %2661 = vmatprep.subr.bf16.mxu0 0
        %2662 = vmatpush1.bf16.msra.mxu0 %v2645
        %2663 = vmatprep.subr.bf16.mxu0 0
        %2664 = vmatpush1.bf16.msra.mxu0 0
        %2665 = vmatprep.subr.bf16.mxu0 0
        %2666 = vmatpush1.bf16.msra.mxu0 0
        %2667 = vmatprep.subr.bf16.mxu0 0
        %2668 = vmatpush1.bf16.msra.mxu0 0
        %2669 = vmatprep.subr.bf16.mxu0 0
        %2670 = vmatpush1.bf16.msra.mxu0 0
        %2671 = vmatprep.subr.bf16.mxu0 0
        %2672 = vmatpush1.bf16.msra.mxu0 0
        %2673 = vmatprep.subr.bf16.mxu0 0
        %2674 = vmatpush1.bf16.msra.mxu0 0
        %2675 = vmatprep.subr.bf16.mxu0 0
        %2676 = vmatpush1.bf16.msra.mxu0 0
        %2677 = vmatprep.subr.bf16.mxu0 0
        %2678 = vmatpush1.bf16.msra.mxu0 0
        %2679 = vmatprep.mubr.bf16.mxu0 0
        %2680 = vmatmul.mubr.bf16.gmra.mrb[0].mxu0 %v2642
        %v2681 = vpop.f32.mrb[0].mxu0
        %v2682 = vadd.f32 %v2594, %v2681
        %v2683 = vpop.f32.mrb[0].mxu0
        %v2684 = vpop.f32.mrb[0].mxu0
        %v2685 = vpop.f32.mrb[0].mxu0
        %2686 = vdwg.mxu0
        %v2687 = vmax.f32 %v2682, 0.0
        %v2688 = vld [vmem:[%s9] sm:$0xff]
        %v2689 = vld [vmem:[%s9 + $0x8] sm:$0xff]
        %v2690 = vld [vmem:[%s9 + $0x10] sm:$0xff]
        %v2691 = vld [vmem:[%s9 + $0x18] sm:$0xff]
        %v2692 = vld [vmem:[%s9 + $0x20] sm:$0xff]
        %v2693 = vld [vmem:[%s9 + $0x28] sm:$0xff]
        %v2694 = vld [vmem:[%s9 + $0x30] sm:$0xff]
        %v2695 = vld [vmem:[%s9 + $0x38] sm:$0xff]
        %v2696 = vld [vmem:[%s9 + $0x40] sm:$0xff]
        %v2697 = vld [vmem:[%s9 + $0x48] sm:$0xff]
        %v2698 = vld [vmem:[%s9 + $0x50] sm:$0xf]
        %v2699 = vld [vmem:[%s10] sm:$0x1]
        %vm2700 = vcmask 687104
        %v2702 = vsel %vm2700, %v2687, 0
        %v2705 = vsel %vm415, %v2698, 0
        %2707 = vmatprep.subr.mxu0 0.0
        %2708 = vmatpush1.msra.mxu0 %v2688
        %2709 = vmatprep.subr.mxu0 0.0
        %2710 = vmatpush1.msra.mxu0 %v2689
        %2711 = vmatprep.subr.mxu0 0.0
        %2712 = vmatpush1.msra.mxu0 %v2690
        %2713 = vmatprep.subr.mxu0 0.0
        %2714 = vmatpush1.msra.mxu0 %v2691
        %2715 = vmatprep.subr.mxu0 0.0
        %2716 = vmatpush1.msra.mxu0 %v2692
        %2717 = vmatprep.subr.mxu0 0.0
        %2718 = vmatpush1.msra.mxu0 %v2693
        %2719 = vmatprep.subr.mxu0 0.0
        %2720 = vmatpush1.msra.mxu0 %v2694
        %2721 = vmatprep.subr.mxu0 0.0
        %2722 = vmatpush1.msra.mxu0 %v2695
        %2723 = vmatprep.subr.mxu0 0.0
        %2724 = vmatpush1.msra.mxu0 %v2696
        %2725 = vmatprep.subr.mxu0 0.0
        %2726 = vmatpush1.msra.mxu0 %v2697
        %2727 = vmatprep.subr.mxu0 0.0
        %2728 = vmatpush1.msra.mxu0 %v2705
        %2729 = vmatprep.subr.mxu0 0.0
        %2730 = vmatpush1.msra.mxu0 0.0
        %2731 = vmatprep.subr.mxu0 0.0
        %2732 = vmatpush1.msra.mxu0 0.0
        %2733 = vmatprep.subr.mxu0 0.0
        %2734 = vmatpush1.msra.mxu0 0.0
        %2735 = vmatprep.subr.mxu0 0.0
        %2736 = vmatpush1.msra.mxu0 0.0
        %2737 = vmatprep.subr.mxu0 0.0
        %2738 = vmatpush1.msra.mxu0 0.0
        %2739 = vmatprep.subr.mxu0 0.0
        %2740 = vmatpush1.msra.mxu0 0.0
        %2741 = vmatprep.subr.mxu0 0.0
        %2742 = vmatpush1.msra.mxu0 0.0
        %2743 = vmatprep.subr.mxu0 0.0
        %2744 = vmatpush1.msra.mxu0 0.0
        %2745 = vmatprep.subr.mxu0 0.0
        %2746 = vmatpush1.msra.mxu0 0.0
        %2747 = vmatprep.subr.mxu0 0.0
        %2748 = vmatpush1.msra.mxu0 0.0
        %2749 = vmatprep.subr.mxu0 0.0
        %2750 = vmatpush1.msra.mxu0 0.0
        %2751 = vmatprep.subr.mxu0 0.0
        %2752 = vmatpush1.msra.mxu0 0.0
        %2753 = vmatprep.subr.mxu0 0.0
        %2754 = vmatpush1.msra.mxu0 0.0
        %2755 = vmatprep.subr.mxu0 0.0
        %2756 = vmatpush1.msra.mxu0 0.0
        %2757 = vmatprep.subr.mxu0 0.0
        %2758 = vmatpush1.msra.mxu0 0.0
        %2759 = vmatprep.subr.mxu0 0.0
        %2760 = vmatpush1.msra.mxu0 0.0
        %2761 = vmatprep.subr.mxu0 0.0
        %2762 = vmatpush1.msra.mxu0 0.0
        %2763 = vmatprep.subr.mxu0 0.0
        %2764 = vmatpush1.msra.mxu0 0.0
        %2765 = vmatprep.subr.mxu0 0.0
        %2766 = vmatpush1.msra.mxu0 0.0
        %2767 = vmatprep.subr.mxu0 0.0
        %2768 = vmatpush1.msra.mxu0 0.0
        %2769 = vmatprep.subr.mxu0 0.0
        %2770 = vmatpush1.msra.mxu0 0.0
        %2771 = vmatprep.mubr.f32.mxu0 0.0
        %2772 = vmatmul.mubr.f32.gmra.mrb[0].mxu0 %v2702
        %v2773 = vpop.f32.mrb[0].mxu0
        %v2774 = vadd.f32 %v2699, %v2773
        %v2775 = vpop.f32.mrb[0].mxu0
        %2776 = vdwg.mxu0
        %2777 = vst [vmem:[%s378] sm:$0x1] %v2774
        %s2778 = sand.u32 %s269, 1
        %s2779 = scalar_lea.sflag [#allocation9], %s2778
        %s2780 = sand.u32 %s269, 1
        %s2781 = scalar_lea.vmem [#allocation8], %s2780
        // Predicated region
        $region65: #{lenet_forward.1} parent=63 // pred_check
          %p2782 = pneg %p279
        $region66: #{lenet_forward.1} parent=63 // pred_check_branch
          %2784 = sbr.rel (%p2782) target = $region68
        $region67: #{lenet_forward.1} parent=63 // pred_region
          %s2786 = ssub.s32 16, 16
          %2787 = vsyncadd %s2779, %s2786
          %s2788 = smul.addr %s25, 16
          %s2789 = scalar_lea.hbm %s11, %s2788
          %s2791 = sshll.u32 %s2781, 4
          %s2792 = int_to_ptr.vmem [resolvable:$true] %s2791
          %2794 = dma.vmem_to_hbm [thread:$0]  %s2792, 16, %s2789, %s2779
        $region68: #{lenet_forward.1} parent=63 // pred_fallthru
          _
      $region64: #{lenet_forward.1} parent=5 // pred_fallthru
        _
      %p2795 = scmp.le.s32.totalorder 2, %s20
      // Predicated region
      $region69: #{lenet_forward.1} parent=5 // pred_check
        %p2796 = pneg %p2795
      $region70: #{lenet_forward.1} parent=5 // pred_check_branch
        %2798 = sbr.rel (%p2796) target = $region72
      $region71: #{lenet_forward.1} parent=5 // pred_region
        %s2799 = ssub.s32 %s20, 2
        // Predicated region
        $region73: #{lenet_forward.1} parent=71 // pred_check
          %p2800 = pneg %p285
        $region74: #{lenet_forward.1} parent=71 // pred_check_branch
          %2802 = sbr.rel (%p2800) target = $region76
        $region75: #{lenet_forward.1} parent=71 // pred_region
          %s2803 = sand.u32 %s270, 1
          %s2804 = scalar_lea.sflag [#allocation9], %s2803
          %s2805 = sand.u32 %s270, 1
          %s2806 = scalar_lea.vmem [#allocation8], %s2805
          %2807 = dma.done %s2804, 16
        $region76: #{lenet_forward.1} parent=71 // pred_fallthru
          _
      $region72: #{lenet_forward.1} parent=5 // pred_fallthru
        _
    $region6: #{lenet_forward.1} parent=1 // loop_footer
      %s24 = sadd.s32 1, %s20
    $region7: #{lenet_forward.1} parent=1 // loop_footer_branch
      %19 = sbr.rel target = $region3
    $region8: #{lenet_forward.1} parent=1 // loop_exit
      _
    %2808 = vsyncpa [#allocation9], 1
    %s2809 = scalar_lea.sflag [#allocation9], 1
    %2810 = vsyncpa %s2809, 1

</llo_original>
